<compile_context>
chip_gen: v7x
topology: tpu7x:2x2x1
jax: 0.10.0
libtpu: 0.0.40
codegen_flags: <defaults>
</compile_context>

<pallas_src>
import functools

import jax
import jax.numpy as jnp
from jax.experimental import pallas as pl
from jax.experimental.pallas import tpu as pltpu

_VMEM_LIMIT = 48 * 1024 * 1024   # above default scoped limit, below v7x physical
_LN_EPS = 1e-5


def _round_up(x, m):
    return ((x + m - 1) // m) * m


def _pick_div_tile(dim, pref, align):
    """Largest tile <= pref that is a multiple of `align` and divides `dim`
    (falls back to the full dim when dim is small or unaligned)."""
    if dim <= pref or dim % align != 0:
        return dim
    t = (pref // align) * align
    while dim % t != 0:
        t -= align
    return t


# ---------------------------------------------------------------------------
# Tiled fused linear: out = act(x @ W + b)
# ---------------------------------------------------------------------------
def _linear_kernel(x_ref, w_ref, b_ref, o_ref, acc_ref, *, activation):
    k = pl.program_id(2)

    @pl.when(k == 0)
    def _init():
        acc_ref[...] = jnp.zeros_like(acc_ref)

    acc_ref[...] += jnp.dot(x_ref[...], w_ref[...],
                            preferred_element_type=jnp.float32)

    @pl.when(k == pl.num_programs(2) - 1)
    def _finalize():
        y = acc_ref[...] + b_ref[...]
        if activation == "relu":
            y = jnp.maximum(y, 0.0)
        elif activation == "softplus":
            y = jnp.maximum(y, 0.0) + jnp.log1p(jnp.exp(-jnp.abs(y)))
        o_ref[...] = y


def linear(x, w, b, activation=None, *, tm=256, tn=256, tk=512):
    """Tiled matmul + bias (+ activation). x:(M,K) w:(K,N) b:(N,). bf16 MXU,
    f32 accumulate. M/N grid axes are "parallel" (megacore), K is "arbitrary"."""
    M, K = x.shape
    N = w.shape[1]
    tm = min(tm, _round_up(M, 16))     # 16: bf16 sublane packing
    tn = min(tn, _round_up(N, 128))
    tk = min(tk, _round_up(K, 128))
    Mp, Kp, Np = _round_up(M, tm), _round_up(K, tk), _round_up(N, tn)

    xp = jnp.pad(x, ((0, Mp - M), (0, Kp - K))).astype(jnp.bfloat16)
    wp = jnp.pad(w, ((0, Kp - K), (0, Np - N))).astype(jnp.bfloat16)
    bp = jnp.pad(b, (0, Np - N)).astype(jnp.float32).reshape(1, Np)

    grid = (Mp // tm, Np // tn, Kp // tk)
    out = pl.pallas_call(
        functools.partial(_linear_kernel, activation=activation),
        grid=grid,
        in_specs=[
            pl.BlockSpec((tm, tk), lambda i, j, k: (i, k)),
            pl.BlockSpec((tk, tn), lambda i, j, k: (k, j)),
            pl.BlockSpec((1, tn), lambda i, j, k: (0, j)),
        ],
        out_specs=pl.BlockSpec((tm, tn), lambda i, j, k: (i, j)),
        out_shape=jax.ShapeDtypeStruct((Mp, Np), jnp.float32),
        scratch_shapes=[pltpu.VMEM((tm, tn), jnp.float32)],
        compiler_params=pltpu.CompilerParams(
            dimension_semantics=("parallel", "parallel", "arbitrary"),
            vmem_limit_bytes=_VMEM_LIMIT),
    )(xp, wp, bp)
    return out[:M, :N]


# ---------------------------------------------------------------------------
# Fused attention block: per-head softmax attention + out-projection
#                        + residual add + LayerNorm1 (one launch per batch row)
# ---------------------------------------------------------------------------
def _attn_block_kernel(qkv_ref, x_ref, wo_ref, bo_ref, g_ref, beta_ref, o_ref,
                       *, nhead, scale, eps):
    S = qkv_ref.shape[1]
    D = x_ref.shape[2]
    dh = D // nhead

    qkv = qkv_ref[0].astype(jnp.float32)      # (S, 3D)
    wo = wo_ref[...]                          # (D, D) bf16

    # out_proj(concat_h(attn_h)) == sum_h attn_h @ Wo[h*dh:(h+1)*dh, :]
    proj = jnp.zeros((S, D), jnp.float32)
    for h in range(nhead):
        lo = h * dh
        qh = qkv[:, lo:lo + dh]
        kh = qkv[:, D + lo:D + lo + dh]
        vh = qkv[:, 2 * D + lo:2 * D + lo + dh]
        s = jax.lax.dot_general(qh, kh, (((1,), (1,)), ((), ())),
                                preferred_element_type=jnp.float32) * scale
        s = s - jnp.max(s, axis=-1, keepdims=True)
        p = jnp.exp(s)
        p = p * pl.reciprocal(jnp.sum(p, axis=-1, keepdims=True), approx=True)
        oh = jnp.dot(p, vh, preferred_element_type=jnp.float32)        # (S, dh)
        proj = proj + jnp.dot(oh.astype(jnp.bfloat16), wo[lo:lo + dh, :],
                              preferred_element_type=jnp.float32)

    y = x_ref[0].astype(jnp.float32) + proj + bo_ref[...].astype(jnp.float32)
    mean = jnp.mean(y, axis=-1, keepdims=True)
    yc = y - mean
    var = jnp.mean(yc * yc, axis=-1, keepdims=True)
    o_ref[0] = (yc * jax.lax.rsqrt(var + eps)) * g_ref[...].astype(jnp.float32) \
               + beta_ref[...].astype(jnp.float32)


def attention_block(qkv, x, wo, bo, g, beta, *, nhead):
    """qkv:(B,S,3D) from the fused QKV linear; x:(B,S,D) residual input."""
    B, S, D = x.shape
    assert D % nhead == 0, "d_model must be divisible by nhead"
    dh = D // nhead
    scale = 1.0 / (dh ** 0.5)
    return pl.pallas_call(
        functools.partial(_attn_block_kernel, nhead=nhead, scale=scale,
                          eps=_LN_EPS),
        grid=(B,),
        in_specs=[
            pl.BlockSpec((1, S, 3 * D), lambda bi: (bi, 0, 0)),
            pl.BlockSpec((1, S, D), lambda bi: (bi, 0, 0)),
            pl.BlockSpec((D, D), lambda bi: (0, 0)),
            pl.BlockSpec((1, D), lambda bi: (0, 0)),
            pl.BlockSpec((1, D), lambda bi: (0, 0)),
            pl.BlockSpec((1, D), lambda bi: (0, 0)),
        ],
        out_specs=pl.BlockSpec((1, S, D), lambda bi: (bi, 0, 0)),
        out_shape=jax.ShapeDtypeStruct((B, S, D), jnp.float32),
        compiler_params=pltpu.CompilerParams(
            dimension_semantics=("parallel",),
            vmem_limit_bytes=_VMEM_LIMIT),
    )(qkv, x, wo.astype(jnp.bfloat16), bo.reshape(1, D),
      g.reshape(1, D), beta.reshape(1, D))


# ---------------------------------------------------------------------------
# Fused FFN block: (W1 + ReLU + W2) tiled over the 4D hidden + residual + LN2.
# The (M, 4D) hidden activation never touches HBM.
# ---------------------------------------------------------------------------
def _ffn_block_kernel(x_ref, w1_ref, b1_ref, w2_ref, b2_ref, g_ref, beta_ref,
                      o_ref, acc_ref, *, eps):
    h = pl.program_id(1)

    @pl.when(h == 0)
    def _init():
        acc_ref[...] = jnp.zeros_like(acc_ref)

    x_bf = x_ref[...].astype(jnp.bfloat16)
    hid = jnp.dot(x_bf, w1_ref[...], preferred_element_type=jnp.float32)
    hid = jnp.maximum(hid + b1_ref[...], 0.0)
    acc_ref[...] += jnp.dot(hid.astype(jnp.bfloat16), w2_ref[...],
                            preferred_element_type=jnp.float32)

    @pl.when(h == pl.num_programs(1) - 1)
    def _finalize():
        y = acc_ref[...] + b2_ref[...] + x_ref[...].astype(jnp.float32)
        mean = jnp.mean(y, axis=-1, keepdims=True)
        yc = y - mean
        var = jnp.mean(yc * yc, axis=-1, keepdims=True)
        o_ref[...] = (yc * jax.lax.rsqrt(var + eps)) * g_ref[...] + beta_ref[...]


def ffn_block(x, w1, b1, w2, b2, g, beta, *, tm=256, th=512):
    """x:(M,D) -> LN2(x + relu(x@W1+b1)@W2 + b2), hidden tiled in VMEM."""
    M, D = x.shape
    H = w1.shape[1]
    tm = min(tm, _round_up(M, 8))
    Mp = _round_up(M, tm)
    th = _pick_div_tile(H, th, 128)

    xp = jnp.pad(x, ((0, Mp - M), (0, 0)))
    grid = (Mp // tm, H // th)
    out = pl.pallas_call(
        functools.partial(_ffn_block_kernel, eps=_LN_EPS),
        grid=grid,
        in_specs=[
            pl.BlockSpec((tm, D), lambda i, h: (i, 0)),
            pl.BlockSpec((D, th), lambda i, h: (0, h)),
            pl.BlockSpec((1, th), lambda i, h: (0, h)),
            pl.BlockSpec((th, D), lambda i, h: (h, 0)),
            pl.BlockSpec((1, D), lambda i, h: (0, 0)),
            pl.BlockSpec((1, D), lambda i, h: (0, 0)),
            pl.BlockSpec((1, D), lambda i, h: (0, 0)),
        ],
        out_specs=pl.BlockSpec((tm, D), lambda i, h: (i, 0)),
        out_shape=jax.ShapeDtypeStruct((Mp, D), jnp.float32),
        scratch_shapes=[pltpu.VMEM((tm, D), jnp.float32)],
        compiler_params=pltpu.CompilerParams(
            dimension_semantics=("parallel", "arbitrary"),
            vmem_limit_bytes=_VMEM_LIMIT),
    )(xp, w1.astype(jnp.bfloat16), b1.reshape(1, H).astype(jnp.float32),
      w2.astype(jnp.bfloat16), b2.reshape(1, D).astype(jnp.float32),
      g.reshape(1, D), beta.reshape(1, D))
    return out[:M]


# ---------------------------------------------------------------------------
# NTLBG statistics: query-conditioned diag-Gaussian Mahalanobis distance +
# query->frame attention (softplus of sigma fused into this kernel).
# ---------------------------------------------------------------------------
def _ntlbg_kernel(v_ref, mu_ref, sr_ref, q_ref, dist_ref, w_ref, att_ref):
    v = v_ref[...].astype(jnp.float32)       # (B, T, D) projected video feats
    mu = mu_ref[...].astype(jnp.float32)     # (B, D)
    sr = sr_ref[...].astype(jnp.float32)     # (B, D) raw sigma (pre-softplus)
    q = q_ref[...].astype(jnp.float32)       # (B, D)

    sig = jnp.maximum(sr, 0.0) + jnp.log1p(jnp.exp(-jnp.abs(sr)))   # softplus
    inv_sig = 1.0 / (sig + 1e-6)

    diff = v - mu[:, None, :]
    dist = jnp.sum(diff * diff * inv_sig[:, None, :], axis=-1)      # (B, T)

    scale = 1.0 / (v.shape[-1] ** 0.5)
    scores = jnp.sum(v * q[:, None, :], axis=-1) * scale            # (B, T)
    scores = scores - jnp.max(scores, axis=-1, keepdims=True)
    p = jnp.exp(scores)
    p = p * pl.reciprocal(jnp.sum(p, axis=-1, keepdims=True), approx=True)

    dist_ref[...] = dist
    w_ref[...] = p
    att_ref[...] = p[:, :, None] * v


def ntlbg_stats(vproj, mu_q, sig_raw, query):
    B, T, D = vproj.shape
    return pl.pallas_call(
        _ntlbg_kernel,
        grid=(1,),
        in_specs=[
            pl.BlockSpec((B, T, D), lambda i: (0, 0, 0)),
            pl.BlockSpec((B, D), lambda i: (0, 0)),
            pl.BlockSpec((B, D), lambda i: (0, 0)),
            pl.BlockSpec((B, D), lambda i: (0, 0)),
        ],
        out_specs=(
            pl.BlockSpec((B, T), lambda i: (0, 0)),
            pl.BlockSpec((B, T), lambda i: (0, 0)),
            pl.BlockSpec((B, T, D), lambda i: (0, 0, 0)),
        ),
        out_shape=(
            jax.ShapeDtypeStruct((B, T), jnp.float32),
            jax.ShapeDtypeStruct((B, T), jnp.float32),
            jax.ShapeDtypeStruct((B, T, D), jnp.float32),
        ),
        compiler_params=pltpu.CompilerParams(
            dimension_semantics=("arbitrary",),
            vmem_limit_bytes=_VMEM_LIMIT),
    )(vproj, mu_q, sig_raw, query)


# ---------------------------------------------------------------------------
# Model glue
# ---------------------------------------------------------------------------
def transformer_encoder_layer(x, lp, nhead):
    """PyTorch nn.TransformerEncoderLayer (post-LN, ReLU FFN, eval mode).
    3 pallas_calls: fused-QKV linear, attn+outproj+add+LN1, FFN+add+LN2."""
    B, S, D = x.shape
    x2 = x.reshape(B * S, D)
    qkv = linear(x2, lp["w_qkv"], lp["b_qkv"]).reshape(B, S, 3 * D)
    x_ln1 = attention_block(qkv, x, lp["wo"], lp["bo"],
                            lp["ln1_g"], lp["ln1_b"], nhead=nhead)
    y = ffn_block(x_ln1.reshape(B * S, D), lp["w1"], lp["b1"],
                  lp["w2"], lp["b2"], lp["ln2_g"], lp["ln2_b"])
    return y.reshape(B, S, D)


def make_params(key, d_vision, d_lang, vocab, nhead, n_layers):
    keys = iter(jax.random.split(key, 64))

    def lin(din, dout):
        return (0.02 * jax.random.normal(next(keys), (din, dout), jnp.float32),
                jnp.zeros((dout,), jnp.float32))

    p = {}
    p["temporal_encoding"] = jax.random.normal(next(keys), (1000, d_lang),
                                               jnp.float32)
    p["vp_w"], p["vp_b"] = lin(d_vision, d_lang)            # vision_projection
    p["musig_w"], p["musig_b"] = lin(d_lang, 2 * d_lang)    # fused mu/sigma heads
    layers = []
    for _ in range(n_layers):
        lp = {}
        lp["w_qkv"], lp["b_qkv"] = lin(d_lang, 3 * d_lang)  # fused Q/K/V
        lp["wo"], lp["bo"] = lin(d_lang, d_lang)
        lp["ln1_g"] = jnp.ones((d_lang,), jnp.float32)
        lp["ln1_b"] = jnp.zeros((d_lang,), jnp.float32)
        lp["w1"], lp["b1"] = lin(d_lang, 4 * d_lang)
        lp["w2"], lp["b2"] = lin(4 * d_lang, d_lang)
        lp["ln2_g"] = jnp.ones((d_lang,), jnp.float32)
        lp["ln2_b"] = jnp.zeros((d_lang,), jnp.float32)
        layers.append(lp)
    p["fusion_layers"] = layers
    p["th1_w"], p["th1_b"] = lin(d_lang, d_lang)            # task_head[0]
    p["th2_w"], p["th2_b"] = lin(d_lang, vocab)             # task_head[3]
    return p


def ntlbg_llm_forward(params, frame_features, text_features, *, num_reps, nhead):
    """Forward pass of RealNTLBGLLM (labels=None path, eval-mode dropout)."""
    B, T, D = frame_features.shape

    # encode_video_frames tail: add temporal positional encoding
    vfeat = frame_features + params["temporal_encoding"][:T][None, :, :]

    # vision_projection (tiled linear)
    vproj = linear(vfeat.reshape(B * T, D), params["vp_w"], params["vp_b"])
    Dl = vproj.shape[-1]
    vproj = vproj.reshape(B, T, Dl)

    # NTLBG: fused mu/sigma head (one (D,2D) matmul); softplus + Mahalanobis +
    # query->frame attention in one kernel.
    mu_sig = linear(text_features, params["musig_w"], params["musig_b"])
    mu_q, sig_raw = mu_sig[:, :Dl], mu_sig[:, Dl:]
    dist, attn_w, attended = ntlbg_stats(vproj, mu_q, sig_raw, text_features)

    # representative selection: K frames with smallest Mahalanobis distance
    # (data-dependent top-k + gather kept in JAX glue)
    _, rep_idx = jax.lax.top_k(-dist, num_reps)                       # (B, K)
    rep_feats = jnp.take_along_axis(vproj, rep_idx[:, :, None], axis=1)

    # multimodal fusion
    fused = jnp.concatenate(
        [attended, rep_feats, text_features[:, None, :]], axis=1)     # (B,T+K+1,Dl)
    for lp in params["fusion_layers"]:
        fused = transformer_encoder_layer(fused, lp, nhead)

    final = jnp.mean(fused, axis=1)                                   # (B, Dl)

    # task head (dropout is identity at inference); vocab axis N-tiled in linear
    h = linear(final, params["th1_w"], params["th1_b"], activation="relu")
    logits = linear(h, params["th2_w"], params["th2_b"])

    return {
        "logits": logits,
        "representative_features": rep_feats,
        "representative_indices": rep_idx,
        "mahalanobis_distances": dist,
        "attention_weights": attn_w,
        "ntlbg_constraint_loss": None,
    }


# ---------------------------------------------------------------------------
if __name__ == "__main__":
    B, T = 2, 8
    D_VISION = 32   # CLIP pooled feature dim (== lang dim, as in the real cfg)
    D_LANG = 32
    VOCAB = 64
    NHEAD = 8
    NUM_REPS = 6
    N_LAYERS = 2

    key = jax.random.PRNGKey(0)
    kp, kv, kt = jax.random.split(key, 3)
    params = make_params(kp, D_VISION, D_LANG, VOCAB, NHEAD, N_LAYERS)

    frame_features = jax.random.normal(kv, (B, T, D_VISION), jnp.float32)
    text_features = jax.random.normal(kt, (B, D_LANG), jnp.float32)

    fwd = jax.jit(functools.partial(ntlbg_llm_forward,
                                    num_reps=NUM_REPS, nhead=NHEAD))
    out = fwd(params, frame_features, text_features)
    jax.block_until_ready(out)

    assert out["logits"].shape == (B, VOCAB)
    assert out["representative_features"].shape == (B, NUM_REPS, D_LANG)
    assert out["representative_indices"].shape == (B, NUM_REPS)
    assert out["mahalanobis_distances"].shape == (B, T)
    assert out["attention_weights"].shape == (B, T)
    print("KERNEL_OK")
</pallas_src>

<mosaic_0001>
module attributes {stable_mosaic.version = 11 : i64} {
  func.func @_linear_kernel(%arg0: i32, %arg1: i32, %arg2: i32, %arg3: memref<16x128xbf16, #tpu.memory_space<vmem>>, %arg4: memref<128x128xbf16, #tpu.memory_space<vmem>>, %arg5: memref<1x128xf32, #tpu.memory_space<vmem>>, %arg6: memref<16x128xf32, #tpu.memory_space<vmem>>, %arg7: memref<16x128xf32, #tpu.memory_space<vmem>>) attributes {dimension_semantics = [#tpu.dimension_semantics<parallel>, #tpu.dimension_semantics<parallel>, #tpu.dimension_semantics<arbitrary>], iteration_bounds = array<i64: 1, 1, 1>, scalar_prefetch = 0 : i64, scratch_operands = 1 : i64, tpu.core_type = #tpu.core_type<tc>, window_params = [{transform_indices = @transform_0, window_bounds = array<i64: 16, 128>}, {transform_indices = @transform_1, window_bounds = array<i64: 128, 128>}, {transform_indices = @transform_2, window_bounds = array<i64: 1, 128>}, {transform_indices = @transform_3, window_bounds = array<i64: 16, 128>}]} {
    %c0_i32 = arith.constant 0 : i32
    %0 = arith.cmpi eq, %arg2, %c0_i32 : i32
    %1 = arith.extui %0 : i1 to i32
    %c0_i32_0 = arith.constant 0 : i32
    %2 = arith.cmpi ne, %1, %c0_i32_0 : i32
    scf.if %2 {
      %cst_10 = arith.constant 0.000000e+00 : f32
      %12 = vector.broadcast %cst_10 : f32 to vector<16x128xf32>
      %c0_11 = arith.constant 0 : index
      %c0_12 = arith.constant 0 : index
      %13 = vector.load %arg7[%c0_11, %c0_12] : memref<16x128xf32, #tpu.memory_space<vmem>>, vector<16x128xf32>
      tpu.vector_store %arg7[%c0_11, %c0_12], %12 {strides = array<i32>} : memref<16x128xf32, #tpu.memory_space<vmem>>, vector<16x128xf32>,
    } else {
    }
    %c0 = arith.constant 0 : index
    %c0_1 = arith.constant 0 : index
    %3 = vector.load %arg7[%c0, %c0_1] : memref<16x128xf32, #tpu.memory_space<vmem>>, vector<16x128xf32>
    %c0_2 = arith.constant 0 : index
    %c0_3 = arith.constant 0 : index
    %4 = vector.load %arg3[%c0_2, %c0_3] : memref<16x128xbf16, #tpu.memory_space<vmem>>, vector<16x128xbf16>
    %c0_4 = arith.constant 0 : index
    %c0_5 = arith.constant 0 : index
    %5 = vector.load %arg4[%c0_4, %c0_5] : memref<128x128xbf16, #tpu.memory_space<vmem>>, vector<128x128xbf16>
    %cst = arith.constant dense<0.000000e+00> : vector<16x128xf32>
    %6 = tpu.matmul %4, %5, %cst {dimension_numbers = #tpu.dot_dimension_numbers<[1], [0], [0], [1], [0, 0, 1, 1], [], []>} : vector<16x128xbf16>, vector<128x128xbf16>, vector<16x128xf32> -> vector<16x128xf32>
    %7 = arith.addf %3, %6 : vector<16x128xf32>
    %c0_6 = arith.constant 0 : index
    %c0_7 = arith.constant 0 : index
    %8 = vector.load %arg7[%c0_6, %c0_7] : memref<16x128xf32, #tpu.memory_space<vmem>>, vector<16x128xf32>
    tpu.vector_store %arg7[%c0_6, %c0_7], %7 {strides = array<i32>} : memref<16x128xf32, #tpu.memory_space<vmem>>, vector<16x128xf32>,
    %c0_i32_8 = arith.constant 0 : i32
    %9 = arith.cmpi eq, %arg2, %c0_i32_8 : i32
    %10 = arith.extui %9 : i1 to i32
    %c0_i32_9 = arith.constant 0 : i32
    %11 = arith.cmpi ne, %10, %c0_i32_9 : i32
    scf.if %11 {
      %c0_10 = arith.constant 0 : index
      %c0_11 = arith.constant 0 : index
      %12 = vector.load %arg7[%c0_10, %c0_11] : memref<16x128xf32, #tpu.memory_space<vmem>>, vector<16x128xf32>
      %c0_12 = arith.constant 0 : index
      %c0_13 = arith.constant 0 : index
      %13 = vector.load %arg5[%c0_12, %c0_13] : memref<1x128xf32, #tpu.memory_space<vmem>>, vector<1x128xf32>
      %14 = vector.broadcast %13 : vector<1x128xf32> to vector<16x128xf32>
      %15 = arith.addf %12, %14 : vector<16x128xf32>
      %c0_14 = arith.constant 0 : index
      %c0_15 = arith.constant 0 : index
      %16 = vector.load %arg6[%c0_14, %c0_15] : memref<16x128xf32, #tpu.memory_space<vmem>>, vector<16x128xf32>
      tpu.vector_store %arg6[%c0_14, %c0_15], %15 {strides = array<i32>} : memref<16x128xf32, #tpu.memory_space<vmem>>, vector<16x128xf32>,
    } else {
    }
    return
  }
  func.func @transform_0(%arg0: i32, %arg1: i32, %arg2: i32) -> (i32, i32) {
    %c0_i32 = arith.constant 0 : i32
    return %arg0, %arg2 : i32, i32
  }
  func.func @transform_1(%arg0: i32, %arg1: i32, %arg2: i32) -> (i32, i32) {
    %c0_i32 = arith.constant 0 : i32
    return %arg2, %arg1 : i32, i32
  }
  func.func @transform_2(%arg0: i32, %arg1: i32, %arg2: i32) -> (i32, i32) {
    %c0_i32 = arith.constant 0 : i32
    %c0_i32_0 = arith.constant 0 : i32
    return %c0_i32, %arg1 : i32, i32
  }
  func.func @transform_3(%arg0: i32, %arg1: i32, %arg2: i32) -> (i32, i32) {
    %c0_i32 = arith.constant 0 : i32
    return %arg0, %arg1 : i32, i32
  }
}

module attributes {stable_mosaic.version = 11 : i64} {
  func.func @_ntlbg_kernel(%arg0: i32, %arg1: memref<2x8x32xf32, #tpu.memory_space<vmem>>, %arg2: memref<2x32xf32, #tpu.memory_space<vmem>>, %arg3: memref<2x32xf32, #tpu.memory_space<vmem>>, %arg4: memref<2x32xf32, #tpu.memory_space<vmem>>, %arg5: memref<2x8xf32, #tpu.memory_space<vmem>>, %arg6: memref<2x8xf32, #tpu.memory_space<vmem>>, %arg7: memref<2x8x32xf32, #tpu.memory_space<vmem>>) attributes {dimension_semantics = [#tpu.dimension_semantics<arbitrary>], iteration_bounds = array<i64: 1>, scalar_prefetch = 0 : i64, scratch_operands = 0 : i64, tpu.core_type = #tpu.core_type<tc>, window_params = [{pipeline_mode = #tpu.pipeline_mode<synchronous>, transform_indices = @transform_0, window_bounds = array<i64: 2, 8, 32>}, {pipeline_mode = #tpu.pipeline_mode<synchronous>, transform_indices = @transform_1, window_bounds = array<i64: 2, 32>}, {pipeline_mode = #tpu.pipeline_mode<synchronous>, transform_indices = @transform_2, window_bounds = array<i64: 2, 32>}, {pipeline_mode = #tpu.pipeline_mode<synchronous>, transform_indices = @transform_3, window_bounds = array<i64: 2, 32>}, {pipeline_mode = #tpu.pipeline_mode<synchronous>, transform_indices = @transform_4, window_bounds = array<i64: 2, 8>}, {pipeline_mode = #tpu.pipeline_mode<synchronous>, transform_indices = @transform_5, window_bounds = array<i64: 2, 8>}, {pipeline_mode = #tpu.pipeline_mode<synchronous>, transform_indices = @transform_6, window_bounds = array<i64: 2, 8, 32>}]} {
    %c0 = arith.constant 0 : index
    %c0_0 = arith.constant 0 : index
    %c0_1 = arith.constant 0 : index
    %0 = vector.load %arg1[%c0, %c0_0, %c0_1] : memref<2x8x32xf32, #tpu.memory_space<vmem>>, vector<2x8x32xf32>
    %c0_2 = arith.constant 0 : index
    %c0_3 = arith.constant 0 : index
    %1 = vector.load %arg2[%c0_2, %c0_3] : memref<2x32xf32, #tpu.memory_space<vmem>>, vector<2x32xf32>
    %c0_4 = arith.constant 0 : index
    %c0_5 = arith.constant 0 : index
    %2 = vector.load %arg3[%c0_4, %c0_5] : memref<2x32xf32, #tpu.memory_space<vmem>>, vector<2x32xf32>
    %c0_6 = arith.constant 0 : index
    %c0_7 = arith.constant 0 : index
    %3 = vector.load %arg4[%c0_6, %c0_7] : memref<2x32xf32, #tpu.memory_space<vmem>>, vector<2x32xf32>
    %cst = arith.constant 0.000000e+00 : f32
    %4 = vector.broadcast %cst : f32 to vector<2x32xf32>
    %5 = arith.maximumf %2, %4 : vector<2x32xf32>
    %6 = math.absf %2 : vector<2x32xf32>
    %cst_8 = arith.constant 0.000000e+00 : f32
    %7 = vector.broadcast %cst_8 : f32 to vector<2x32xf32>
    %8 = arith.subf %7, %6 : vector<2x32xf32>
    %9 = math.exp %8 : vector<2x32xf32>
    %10 = math.log1p %9 : vector<2x32xf32>
    %11 = arith.addf %5, %10 : vector<2x32xf32>
    %cst_9 = arith.constant 9.99999997E-7 : f32
    %12 = vector.broadcast %cst_9 : f32 to vector<2x32xf32>
    %13 = arith.addf %11, %12 : vector<2x32xf32>
    %cst_10 = arith.constant 1.000000e+00 : f32
    %14 = vector.broadcast %cst_10 : f32 to vector<2x32xf32>
    %15 = arith.divf %14, %13 : vector<2x32xf32>
    %16 = vector.shape_cast %1 : vector<2x32xf32> to vector<2x1x32xf32>
    %17 = vector.broadcast %16 : vector<2x1x32xf32> to vector<2x8x32xf32>
    %18 = arith.subf %0, %17 : vector<2x8x32xf32>
    %19 = arith.mulf %18, %18 : vector<2x8x32xf32>
    %20 = vector.shape_cast %15 : vector<2x32xf32> to vector<2x1x32xf32>
    %21 = vector.broadcast %20 : vector<2x1x32xf32> to vector<2x8x32xf32>
    %22 = arith.mulf %19, %21 : vector<2x8x32xf32>
    %cst_11 = arith.constant dense<0.000000e+00> : vector<2x8xf32>
    %23 = vector.multi_reduction <add>, %22, %cst_11 [2] : vector<2x8x32xf32> to vector<2x8xf32>
    %24 = vector.shape_cast %3 : vector<2x32xf32> to vector<2x1x32xf32>
    %25 = vector.broadcast %24 : vector<2x1x32xf32> to vector<2x8x32xf32>
    %26 = arith.mulf %0, %25 : vector<2x8x32xf32>
    %cst_12 = arith.constant dense<0.000000e+00> : vector<2x8xf32>
    %27 = vector.multi_reduction <add>, %26, %cst_12 [2] : vector<2x8x32xf32> to vector<2x8xf32>
    %cst_13 = arith.constant 0.176776692 : f32
    %28 = vector.broadcast %cst_13 : f32 to vector<2x8xf32>
    %29 = arith.mulf %27, %28 : vector<2x8xf32>
    %cst_14 = arith.constant dense<0xFF800000> : vector<2xf32>
    %30 = vector.multi_reduction <maximumf>, %29, %cst_14 [1] : vector<2x8xf32> to vector<2xf32>
    %31 = vector.shape_cast %30 : vector<2xf32> to vector<2x1xf32>
    %32 = vector.broadcast %31 : vector<2x1xf32> to vector<2x8xf32>
    %33 = arith.subf %29, %32 : vector<2x8xf32>
    %34 = math.exp %33 : vector<2x8xf32>
    %cst_15 = arith.constant dense<0.000000e+00> : vector<2xf32>
    %35 = vector.multi_reduction <add>, %34, %cst_15 [1] : vector<2x8xf32> to vector<2xf32>
    %36 = vector.shape_cast %35 : vector<2xf32> to vector<2x1xf32>
    %37 = tpu.reciprocal %36 {approx = true} : vector<2x1xf32> -> vector<2x1xf32>
    %38 = vector.broadcast %37 : vector<2x1xf32> to vector<2x8xf32>
    %39 = arith.mulf %34, %38 : vector<2x8xf32>
    %c0_16 = arith.constant 0 : index
    %c0_17 = arith.constant 0 : index
    %40 = vector.load %arg5[%c0_16, %c0_17] : memref<2x8xf32, #tpu.memory_space<vmem>>, vector<2x8xf32>
    tpu.vector_store %arg5[%c0_16, %c0_17], %23 {strides = array<i32>} : memref<2x8xf32, #tpu.memory_space<vmem>>, vector<2x8xf32>,
    %c0_18 = arith.constant 0 : index
    %c0_19 = arith.constant 0 : index
    %41 = vector.load %arg6[%c0_18, %c0_19] : memref<2x8xf32, #tpu.memory_space<vmem>>, vector<2x8xf32>
    tpu.vector_store %arg6[%c0_18, %c0_19], %39 {strides = array<i32>} : memref<2x8xf32, #tpu.memory_space<vmem>>, vector<2x8xf32>,
    %42 = vector.shape_cast %39 : vector<2x8xf32> to vector<2x8x1xf32>
    %43 = vector.broadcast %42 : vector<2x8x1xf32> to vector<2x8x32xf32>
    %44 = arith.mulf %43, %0 : vector<2x8x32xf32>
    %c0_20 = arith.constant 0 : index
    %c0_21 = arith.constant 0 : index
    %c0_22 = arith.constant 0 : index
    %45 = vector.load %arg7[%c0_20, %c0_21, %c0_22] : memref<2x8x32xf32, #tpu.memory_space<vmem>>, vector<2x8x32xf32>
    tpu.vector_store %arg7[%c0_20, %c0_21, %c0_22], %44 {strides = array<i32>} : memref<2x8x32xf32, #tpu.memory_space<vmem>>, vector<2x8x32xf32>,
    return
  }
  func.func @transform_0(%arg0: i32) -> (i32, i32, i32) {
    %c0_i32 = arith.constant 0 : i32
    %c0_i32_0 = arith.constant 0 : i32
    %c0_i32_1 = arith.constant 0 : i32
    %c0_i32_2 = arith.constant 0 : i32
    return %c0_i32, %c0_i32_0, %c0_i32_1 : i32, i32, i32
  }
  func.func @transform_1(%arg0: i32) -> (i32, i32) {
    %c0_i32 = arith.constant 0 : i32
    %c0_i32_0 = arith.constant 0 : i32
    %c0_i32_1 = arith.constant 0 : i32
    return %c0_i32, %c0_i32_0 : i32, i32
  }
  func.func @transform_2(%arg0: i32) -> (i32, i32) {
    %c0_i32 = arith.constant 0 : i32
    %c0_i32_0 = arith.constant 0 : i32
    %c0_i32_1 = arith.constant 0 : i32
    return %c0_i32, %c0_i32_0 : i32, i32
  }
  func.func @transform_3(%arg0: i32) -> (i32, i32) {
    %c0_i32 = arith.constant 0 : i32
    %c0_i32_0 = arith.constant 0 : i32
    %c0_i32_1 = arith.constant 0 : i32
    return %c0_i32, %c0_i32_0 : i32, i32
  }
  func.func @transform_4(%arg0: i32) -> (i32, i32) {
    %c0_i32 = arith.constant 0 : i32
    %c0_i32_0 = arith.constant 0 : i32
    %c0_i32_1 = arith.constant 0 : i32
    return %c0_i32, %c0_i32_0 : i32, i32
  }
  func.func @transform_5(%arg0: i32) -> (i32, i32) {
    %c0_i32 = arith.constant 0 : i32
    %c0_i32_0 = arith.constant 0 : i32
    %c0_i32_1 = arith.constant 0 : i32
    return %c0_i32, %c0_i32_0 : i32, i32
  }
  func.func @transform_6(%arg0: i32) -> (i32, i32, i32) {
    %c0_i32 = arith.constant 0 : i32
    %c0_i32_0 = arith.constant 0 : i32
    %c0_i32_1 = arith.constant 0 : i32
    %c0_i32_2 = arith.constant 0 : i32
    return %c0_i32, %c0_i32_0, %c0_i32_1 : i32, i32, i32
  }
}

module attributes {stable_mosaic.version = 11 : i64} {
  func.func @_linear_kernel(%arg0: i32, %arg1: i32, %arg2: i32, %arg3: memref<32x128xbf16, #tpu.memory_space<vmem>>, %arg4: memref<128x128xbf16, #tpu.memory_space<vmem>>, %arg5: memref<1x128xf32, #tpu.memory_space<vmem>>, %arg6: memref<32x128xf32, #tpu.memory_space<vmem>>, %arg7: memref<32x128xf32, #tpu.memory_space<vmem>>) attributes {dimension_semantics = [#tpu.dimension_semantics<parallel>, #tpu.dimension_semantics<parallel>, #tpu.dimension_semantics<arbitrary>], iteration_bounds = array<i64: 1, 1, 1>, scalar_prefetch = 0 : i64, scratch_operands = 1 : i64, tpu.core_type = #tpu.core_type<tc>, window_params = [{transform_indices = @transform_0, window_bounds = array<i64: 32, 128>}, {transform_indices = @transform_1, window_bounds = array<i64: 128, 128>}, {transform_indices = @transform_2, window_bounds = array<i64: 1, 128>}, {transform_indices = @transform_3, window_bounds = array<i64: 32, 128>}]} {
    %c0_i32 = arith.constant 0 : i32
    %0 = arith.cmpi eq, %arg2, %c0_i32 : i32
    %1 = arith.extui %0 : i1 to i32
    %c0_i32_0 = arith.constant 0 : i32
    %2 = arith.cmpi ne, %1, %c0_i32_0 : i32
    scf.if %2 {
      %cst_10 = arith.constant 0.000000e+00 : f32
      %12 = vector.broadcast %cst_10 : f32 to vector<32x128xf32>
      %c0_11 = arith.constant 0 : index
      %c0_12 = arith.constant 0 : index
      %13 = vector.load %arg7[%c0_11, %c0_12] : memref<32x128xf32, #tpu.memory_space<vmem>>, vector<32x128xf32>
      tpu.vector_store %arg7[%c0_11, %c0_12], %12 {strides = array<i32>} : memref<32x128xf32, #tpu.memory_space<vmem>>, vector<32x128xf32>,
    } else {
    }
    %c0 = arith.constant 0 : index
    %c0_1 = arith.constant 0 : index
    %3 = vector.load %arg7[%c0, %c0_1] : memref<32x128xf32, #tpu.memory_space<vmem>>, vector<32x128xf32>
    %c0_2 = arith.constant 0 : index
    %c0_3 = arith.constant 0 : index
    %4 = vector.load %arg3[%c0_2, %c0_3] : memref<32x128xbf16, #tpu.memory_space<vmem>>, vector<32x128xbf16>
    %c0_4 = arith.constant 0 : index
    %c0_5 = arith.constant 0 : index
    %5 = vector.load %arg4[%c0_4, %c0_5] : memref<128x128xbf16, #tpu.memory_space<vmem>>, vector<128x128xbf16>
    %cst = arith.constant dense<0.000000e+00> : vector<32x128xf32>
    %6 = tpu.matmul %4, %5, %cst {dimension_numbers = #tpu.dot_dimension_numbers<[1], [0], [0], [1], [0, 0, 1, 1], [], []>} : vector<32x128xbf16>, vector<128x128xbf16>, vector<32x128xf32> -> vector<32x128xf32>
    %7 = arith.addf %3, %6 : vector<32x128xf32>
    %c0_6 = arith.constant 0 : index
    %c0_7 = arith.constant 0 : index
    %8 = vector.load %arg7[%c0_6, %c0_7] : memref<32x128xf32, #tpu.memory_space<vmem>>, vector<32x128xf32>
    tpu.vector_store %arg7[%c0_6, %c0_7], %7 {strides = array<i32>} : memref<32x128xf32, #tpu.memory_space<vmem>>, vector<32x128xf32>,
    %c0_i32_8 = arith.constant 0 : i32
    %9 = arith.cmpi eq, %arg2, %c0_i32_8 : i32
    %10 = arith.extui %9 : i1 to i32
    %c0_i32_9 = arith.constant 0 : i32
    %11 = arith.cmpi ne, %10, %c0_i32_9 : i32
    scf.if %11 {
      %c0_10 = arith.constant 0 : index
      %c0_11 = arith.constant 0 : index
      %12 = vector.load %arg7[%c0_10, %c0_11] : memref<32x128xf32, #tpu.memory_space<vmem>>, vector<32x128xf32>
      %c0_12 = arith.constant 0 : index
      %c0_13 = arith.constant 0 : index
      %13 = vector.load %arg5[%c0_12, %c0_13] : memref<1x128xf32, #tpu.memory_space<vmem>>, vector<1x128xf32>
      %14 = vector.broadcast %13 : vector<1x128xf32> to vector<32x128xf32>
      %15 = arith.addf %12, %14 : vector<32x128xf32>
      %c0_14 = arith.constant 0 : index
      %c0_15 = arith.constant 0 : index
      %16 = vector.load %arg6[%c0_14, %c0_15] : memref<32x128xf32, #tpu.memory_space<vmem>>, vector<32x128xf32>
      tpu.vector_store %arg6[%c0_14, %c0_15], %15 {strides = array<i32>} : memref<32x128xf32, #tpu.memory_space<vmem>>, vector<32x128xf32>,
    } else {
    }
    return
  }
  func.func @transform_0(%arg0: i32, %arg1: i32, %arg2: i32) -> (i32, i32) {
    %c0_i32 = arith.constant 0 : i32
    return %arg0, %arg2 : i32, i32
  }
  func.func @transform_1(%arg0: i32, %arg1: i32, %arg2: i32) -> (i32, i32) {
    %c0_i32 = arith.constant 0 : i32
    return %arg2, %arg1 : i32, i32
  }
  func.func @transform_2(%arg0: i32, %arg1: i32, %arg2: i32) -> (i32, i32) {
    %c0_i32 = arith.constant 0 : i32
    %c0_i32_0 = arith.constant 0 : i32
    return %c0_i32, %arg1 : i32, i32
  }
  func.func @transform_3(%arg0: i32, %arg1: i32, %arg2: i32) -> (i32, i32) {
    %c0_i32 = arith.constant 0 : i32
    return %arg0, %arg1 : i32, i32
  }
}

module attributes {stable_mosaic.version = 11 : i64} {
  func.func @_attn_block_kernel(%arg0: i32, %arg1: memref<1x15x96xf32, #tpu.memory_space<vmem>>, %arg2: memref<1x15x32xf32, #tpu.memory_space<vmem>>, %arg3: memref<32x32xbf16, #tpu.memory_space<vmem>>, %arg4: memref<1x32xf32, #tpu.memory_space<vmem>>, %arg5: memref<1x32xf32, #tpu.memory_space<vmem>>, %arg6: memref<1x32xf32, #tpu.memory_space<vmem>>, %arg7: memref<1x15x32xf32, #tpu.memory_space<vmem>>) attributes {dimension_semantics = [#tpu.dimension_semantics<parallel>], iteration_bounds = array<i64: 2>, scalar_prefetch = 0 : i64, scratch_operands = 0 : i64, tpu.core_type = #tpu.core_type<tc>, window_params = [{transform_indices = @transform_0, window_bounds = array<i64: 1, 15, 96>}, {transform_indices = @transform_1, window_bounds = array<i64: 1, 15, 32>}, {pipeline_mode = #tpu.pipeline_mode<synchronous>, transform_indices = @transform_2, window_bounds = array<i64: 32, 32>}, {pipeline_mode = #tpu.pipeline_mode<synchronous>, transform_indices = @transform_3, window_bounds = array<i64: 1, 32>}, {pipeline_mode = #tpu.pipeline_mode<synchronous>, transform_indices = @transform_4, window_bounds = array<i64: 1, 32>}, {pipeline_mode = #tpu.pipeline_mode<synchronous>, transform_indices = @transform_5, window_bounds = array<i64: 1, 32>}, {transform_indices = @transform_6, window_bounds = array<i64: 1, 15, 32>}]} {
    %c0 = arith.constant 0 : index
    %c0_0 = arith.constant 0 : index
    %c0_1 = arith.constant 0 : index
    %0 = vector.load %arg1[%c0, %c0_0, %c0_1] : memref<1x15x96xf32, #tpu.memory_space<vmem>>, vector<1x15x96xf32>
    %1 = vector.shape_cast %0 : vector<1x15x96xf32> to vector<15x96xf32>
    %c0_2 = arith.constant 0 : index
    %c0_3 = arith.constant 0 : index
    %2 = vector.load %arg3[%c0_2, %c0_3] : memref<32x32xbf16, #tpu.memory_space<vmem>>, vector<32x32xbf16>
    %cst = arith.constant 0.000000e+00 : f32
    %3 = vector.broadcast %cst : f32 to vector<15x32xf32>
    %4 = vector.extract_strided_slice %1 {offsets = [0, 0], sizes = [15, 4], strides = [1, 1]} : vector<15x96xf32> to vector<15x4xf32>
    %5 = vector.extract_strided_slice %1 {offsets = [0, 32], sizes = [15, 4], strides = [1, 1]} : vector<15x96xf32> to vector<15x4xf32>
    %6 = vector.extract_strided_slice %1 {offsets = [0, 64], sizes = [15, 4], strides = [1, 1]} : vector<15x96xf32> to vector<15x4xf32>
    %cst_4 = arith.constant dense<0.000000e+00> : vector<15x15xf32>
    %7 = tpu.matmul %4, %5, %cst_4 {dimension_numbers = #tpu.dot_dimension_numbers<[1], [1], [0], [0], [0, 0, 1, 0], [], []>} : vector<15x4xf32>, vector<15x4xf32>, vector<15x15xf32> -> vector<15x15xf32>
    %cst_5 = arith.constant 5.000000e-01 : f32
    %8 = vector.broadcast %cst_5 : f32 to vector<15x15xf32>
    %9 = arith.mulf %7, %8 : vector<15x15xf32>
    %cst_6 = arith.constant dense<0xFF800000> : vector<15xf32>
    %10 = vector.multi_reduction <maximumf>, %9, %cst_6 [1] : vector<15x15xf32> to vector<15xf32>
    %11 = vector.shape_cast %10 : vector<15xf32> to vector<15x1xf32>
    %12 = vector.broadcast %11 : vector<15x1xf32> to vector<15x15xf32>
    %13 = arith.subf %9, %12 : vector<15x15xf32>
    %14 = math.exp %13 : vector<15x15xf32>
    %cst_7 = arith.constant dense<0.000000e+00> : vector<15xf32>
    %15 = vector.multi_reduction <add>, %14, %cst_7 [1] : vector<15x15xf32> to vector<15xf32>
    %16 = vector.shape_cast %15 : vector<15xf32> to vector<15x1xf32>
    %17 = tpu.reciprocal %16 {approx = true} : vector<15x1xf32> -> vector<15x1xf32>
    %18 = vector.broadcast %17 : vector<15x1xf32> to vector<15x15xf32>
    %19 = arith.mulf %14, %18 : vector<15x15xf32>
    %cst_8 = arith.constant dense<0.000000e+00> : vector<15x4xf32>
    %20 = tpu.matmul %19, %6, %cst_8 {dimension_numbers = #tpu.dot_dimension_numbers<[1], [0], [0], [1], [0, 0, 1, 1], [], []>} : vector<15x15xf32>, vector<15x4xf32>, vector<15x4xf32> -> vector<15x4xf32>
    %21 = arith.truncf %20 : vector<15x4xf32> to vector<15x4xbf16>
    %22 = vector.extract_strided_slice %2 {offsets = [0, 0], sizes = [4, 32], strides = [1, 1]} : vector<32x32xbf16> to vector<4x32xbf16>
    %cst_9 = arith.constant dense<0.000000e+00> : vector<15x32xf32>
    %23 = tpu.matmul %21, %22, %cst_9 {dimension_numbers = #tpu.dot_dimension_numbers<[1], [0], [0], [1], [0, 0, 1, 1], [], []>} : vector<15x4xbf16>, vector<4x32xbf16>, vector<15x32xf32> -> vector<15x32xf32>
    %24 = arith.addf %3, %23 : vector<15x32xf32>
    %25 = vector.extract_strided_slice %1 {offsets = [0, 4], sizes = [15, 4], strides = [1, 1]} : vector<15x96xf32> to vector<15x4xf32>
    %26 = vector.extract_strided_slice %1 {offsets = [0, 36], sizes = [15, 4], strides = [1, 1]} : vector<15x96xf32> to vector<15x4xf32>
    %27 = vector.extract_strided_slice %1 {offsets = [0, 68], sizes = [15, 4], strides = [1, 1]} : vector<15x96xf32> to vector<15x4xf32>
    %cst_10 = arith.constant dense<0.000000e+00> : vector<15x15xf32>
    %28 = tpu.matmul %25, %26, %cst_10 {dimension_numbers = #tpu.dot_dimension_numbers<[1], [1], [0], [0], [0, 0, 1, 0], [], []>} : vector<15x4xf32>, vector<15x4xf32>, vector<15x15xf32> -> vector<15x15xf32>
    %cst_11 = arith.constant 5.000000e-01 : f32
    %29 = vector.broadcast %cst_11 : f32 to vector<15x15xf32>
    %30 = arith.mulf %28, %29 : vector<15x15xf32>
    %cst_12 = arith.constant dense<0xFF800000> : vector<15xf32>
    %31 = vector.multi_reduction <maximumf>, %30, %cst_12 [1] : vector<15x15xf32> to vector<15xf32>
    %32 = vector.shape_cast %31 : vector<15xf32> to vector<15x1xf32>
    %33 = vector.broadcast %32 : vector<15x1xf32> to vector<15x15xf32>
    %34 = arith.subf %30, %33 : vector<15x15xf32>
    %35 = math.exp %34 : vector<15x15xf32>
    %cst_13 = arith.constant dense<0.000000e+00> : vector<15xf32>
    %36 = vector.multi_reduction <add>, %35, %cst_13 [1] : vector<15x15xf32> to vector<15xf32>
    %37 = vector.shape_cast %36 : vector<15xf32> to vector<15x1xf32>
    %38 = tpu.reciprocal %37 {approx = true} : vector<15x1xf32> -> vector<15x1xf32>
    %39 = vector.broadcast %38 : vector<15x1xf32> to vector<15x15xf32>
    %40 = arith.mulf %35, %39 : vector<15x15xf32>
    %cst_14 = arith.constant dense<0.000000e+00> : vector<15x4xf32>
    %41 = tpu.matmul %40, %27, %cst_14 {dimension_numbers = #tpu.dot_dimension_numbers<[1], [0], [0], [1], [0, 0, 1, 1], [], []>} : vector<15x15xf32>, vector<15x4xf32>, vector<15x4xf32> -> vector<15x4xf32>
    %42 = arith.truncf %41 : vector<15x4xf32> to vector<15x4xbf16>
    %43 = vector.extract_strided_slice %2 {offsets = [4, 0], sizes = [4, 32], strides = [1, 1]} : vector<32x32xbf16> to vector<4x32xbf16>
    %cst_15 = arith.constant dense<0.000000e+00> : vector<15x32xf32>
    %44 = tpu.matmul %42, %43, %cst_15 {dimension_numbers = #tpu.dot_dimension_numbers<[1], [0], [0], [1], [0, 0, 1, 1], [], []>} : vector<15x4xbf16>, vector<4x32xbf16>, vector<15x32xf32> -> vector<15x32xf32>
    %45 = arith.addf %24, %44 : vector<15x32xf32>
    %46 = vector.extract_strided_slice %1 {offsets = [0, 8], sizes = [15, 4], strides = [1, 1]} : vector<15x96xf32> to vector<15x4xf32>
    %47 = vector.extract_strided_slice %1 {offsets = [0, 40], sizes = [15, 4], strides = [1, 1]} : vector<15x96xf32> to vector<15x4xf32>
    %48 = vector.extract_strided_slice %1 {offsets = [0, 72], sizes = [15, 4], strides = [1, 1]} : vector<15x96xf32> to vector<15x4xf32>
    %cst_16 = arith.constant dense<0.000000e+00> : vector<15x15xf32>
    %49 = tpu.matmul %46, %47, %cst_16 {dimension_numbers = #tpu.dot_dimension_numbers<[1], [1], [0], [0], [0, 0, 1, 0], [], []>} : vector<15x4xf32>, vector<15x4xf32>, vector<15x15xf32> -> vector<15x15xf32>
    %cst_17 = arith.constant 5.000000e-01 : f32
    %50 = vector.broadcast %cst_17 : f32 to vector<15x15xf32>
    %51 = arith.mulf %49, %50 : vector<15x15xf32>
    %cst_18 = arith.constant dense<0xFF800000> : vector<15xf32>
    %52 = vector.multi_reduction <maximumf>, %51, %cst_18 [1] : vector<15x15xf32> to vector<15xf32>
    %53 = vector.shape_cast %52 : vector<15xf32> to vector<15x1xf32>
    %54 = vector.broadcast %53 : vector<15x1xf32> to vector<15x15xf32>
    %55 = arith.subf %51, %54 : vector<15x15xf32>
    %56 = math.exp %55 : vector<15x15xf32>
    %cst_19 = arith.constant dense<0.000000e+00> : vector<15xf32>
    %57 = vector.multi_reduction <add>, %56, %cst_19 [1] : vector<15x15xf32> to vector<15xf32>
    %58 = vector.shape_cast %57 : vector<15xf32> to vector<15x1xf32>
    %59 = tpu.reciprocal %58 {approx = true} : vector<15x1xf32> -> vector<15x1xf32>
    %60 = vector.broadcast %59 : vector<15x1xf32> to vector<15x15xf32>
    %61 = arith.mulf %56, %60 : vector<15x15xf32>
    %cst_20 = arith.constant dense<0.000000e+00> : vector<15x4xf32>
    %62 = tpu.matmul %61, %48, %cst_20 {dimension_numbers = #tpu.dot_dimension_numbers<[1], [0], [0], [1], [0, 0, 1, 1], [], []>} : vector<15x15xf32>, vector<15x4xf32>, vector<15x4xf32> -> vector<15x4xf32>
    %63 = arith.truncf %62 : vector<15x4xf32> to vector<15x4xbf16>
    %64 = vector.extract_strided_slice %2 {offsets = [8, 0], sizes = [4, 32], strides = [1, 1]} : vector<32x32xbf16> to vector<4x32xbf16>
    %cst_21 = arith.constant dense<0.000000e+00> : vector<15x32xf32>
    %65 = tpu.matmul %63, %64, %cst_21 {dimension_numbers = #tpu.dot_dimension_numbers<[1], [0], [0], [1], [0, 0, 1, 1], [], []>} : vector<15x4xbf16>, vector<4x32xbf16>, vector<15x32xf32> -> vector<15x32xf32>
    %66 = arith.addf %45, %65 : vector<15x32xf32>
    %67 = vector.extract_strided_slice %1 {offsets = [0, 12], sizes = [15, 4], strides = [1, 1]} : vector<15x96xf32> to vector<15x4xf32>
    %68 = vector.extract_strided_slice %1 {offsets = [0, 44], sizes = [15, 4], strides = [1, 1]} : vector<15x96xf32> to vector<15x4xf32>
    %69 = vector.extract_strided_slice %1 {offsets = [0, 76], sizes = [15, 4], strides = [1, 1]} : vector<15x96xf32> to vector<15x4xf32>
    %cst_22 = arith.constant dense<0.000000e+00> : vector<15x15xf32>
    %70 = tpu.matmul %67, %68, %cst_22 {dimension_numbers = #tpu.dot_dimension_numbers<[1], [1], [0], [0], [0, 0, 1, 0], [], []>} : vector<15x4xf32>, vector<15x4xf32>, vector<15x15xf32> -> vector<15x15xf32>
    %cst_23 = arith.constant 5.000000e-01 : f32
    %71 = vector.broadcast %cst_23 : f32 to vector<15x15xf32>
    %72 = arith.mulf %70, %71 : vector<15x15xf32>
    %cst_24 = arith.constant dense<0xFF800000> : vector<15xf32>
    %73 = vector.multi_reduction <maximumf>, %72, %cst_24 [1] : vector<15x15xf32> to vector<15xf32>
    %74 = vector.shape_cast %73 : vector<15xf32> to vector<15x1xf32>
    %75 = vector.broadcast %74 : vector<15x1xf32> to vector<15x15xf32>
    %76 = arith.subf %72, %75 : vector<15x15xf32>
    %77 = math.exp %76 : vector<15x15xf32>
    %cst_25 = arith.constant dense<0.000000e+00> : vector<15xf32>
    %78 = vector.multi_reduction <add>, %77, %cst_25 [1] : vector<15x15xf32> to vector<15xf32>
    %79 = vector.shape_cast %78 : vector<15xf32> to vector<15x1xf32>
    %80 = tpu.reciprocal %79 {approx = true} : vector<15x1xf32> -> vector<15x1xf32>
    %81 = vector.broadcast %80 : vector<15x1xf32> to vector<15x15xf32>
    %82 = arith.mulf %77, %81 : vector<15x15xf32>
    %cst_26 = arith.constant dense<0.000000e+00> : vector<15x4xf32>
    %83 = tpu.matmul %82, %69, %cst_26 {dimension_numbers = #tpu.dot_dimension_numbers<[1], [0], [0], [1], [0, 0, 1, 1], [], []>} : vector<15x15xf32>, vector<15x4xf32>, vector<15x4xf32> -> vector<15x4xf32>
    %84 = arith.truncf %83 : vector<15x4xf32> to vector<15x4xbf16>
    %85 = vector.extract_strided_slice %2 {offsets = [12, 0], sizes = [4, 32], strides = [1, 1]} : vector<32x32xbf16> to vector<4x32xbf16>
    %cst_27 = arith.constant dense<0.000000e+00> : vector<15x32xf32>
    %86 = tpu.matmul %84, %85, %cst_27 {dimension_numbers = #tpu.dot_dimension_numbers<[1], [0], [0], [1], [0, 0, 1, 1], [], []>} : vector<15x4xbf16>, vector<4x32xbf16>, vector<15x32xf32> -> vector<15x32xf32>
    %87 = arith.addf %66, %86 : vector<15x32xf32>
    %88 = vector.extract_strided_slice %1 {offsets = [0, 16], sizes = [15, 4], strides = [1, 1]} : vector<15x96xf32> to vector<15x4xf32>
    %89 = vector.extract_strided_slice %1 {offsets = [0, 48], sizes = [15, 4], strides = [1, 1]} : vector<15x96xf32> to vector<15x4xf32>
    %90 = vector.extract_strided_slice %1 {offsets = [0, 80], sizes = [15, 4], strides = [1, 1]} : vector<15x96xf32> to vector<15x4xf32>
    %cst_28 = arith.constant dense<0.000000e+00> : vector<15x15xf32>
    %91 = tpu.matmul %88, %89, %cst_28 {dimension_numbers = #tpu.dot_dimension_numbers<[1], [1], [0], [0], [0, 0, 1, 0], [], []>} : vector<15x4xf32>, vector<15x4xf32>, vector<15x15xf32> -> vector<15x15xf32>
    %cst_29 = arith.constant 5.000000e-01 : f32
    %92 = vector.broadcast %cst_29 : f32 to vector<15x15xf32>
    %93 = arith.mulf %91, %92 : vector<15x15xf32>
    %cst_30 = arith.constant dense<0xFF800000> : vector<15xf32>
    %94 = vector.multi_reduction <maximumf>, %93, %cst_30 [1] : vector<15x15xf32> to vector<15xf32>
    %95 = vector.shape_cast %94 : vector<15xf32> to vector<15x1xf32>
    %96 = vector.broadcast %95 : vector<15x1xf32> to vector<15x15xf32>
    %97 = arith.subf %93, %96 : vector<15x15xf32>
    %98 = math.exp %97 : vector<15x15xf32>
    %cst_31 = arith.constant dense<0.000000e+00> : vector<15xf32>
    %99 = vector.multi_reduction <add>, %98, %cst_31 [1] : vector<15x15xf32> to vector<15xf32>
    %100 = vector.shape_cast %99 : vector<15xf32> to vector<15x1xf32>
    %101 = tpu.reciprocal %100 {approx = true} : vector<15x1xf32> -> vector<15x1xf32>
    %102 = vector.broadcast %101 : vector<15x1xf32> to vector<15x15xf32>
    %103 = arith.mulf %98, %102 : vector<15x15xf32>
    %cst_32 = arith.constant dense<0.000000e+00> : vector<15x4xf32>
    %104 = tpu.matmul %103, %90, %cst_32 {dimension_numbers = #tpu.dot_dimension_numbers<[1], [0], [0], [1], [0, 0, 1, 1], [], []>} : vector<15x15xf32>, vector<15x4xf32>, vector<15x4xf32> -> vector<15x4xf32>
    %105 = arith.truncf %104 : vector<15x4xf32> to vector<15x4xbf16>
    %106 = vector.extract_strided_slice %2 {offsets = [16, 0], sizes = [4, 32], strides = [1, 1]} : vector<32x32xbf16> to vector<4x32xbf16>
    %cst_33 = arith.constant dense<0.000000e+00> : vector<15x32xf32>
    %107 = tpu.matmul %105, %106, %cst_33 {dimension_numbers = #tpu.dot_dimension_numbers<[1], [0], [0], [1], [0, 0, 1, 1], [], []>} : vector<15x4xbf16>, vector<4x32xbf16>, vector<15x32xf32> -> vector<15x32xf32>
    %108 = arith.addf %87, %107 : vector<15x32xf32>
    %109 = vector.extract_strided_slice %1 {offsets = [0, 20], sizes = [15, 4], strides = [1, 1]} : vector<15x96xf32> to vector<15x4xf32>
    %110 = vector.extract_strided_slice %1 {offsets = [0, 52], sizes = [15, 4], strides = [1, 1]} : vector<15x96xf32> to vector<15x4xf32>
    %111 = vector.extract_strided_slice %1 {offsets = [0, 84], sizes = [15, 4], strides = [1, 1]} : vector<15x96xf32> to vector<15x4xf32>
    %cst_34 = arith.constant dense<0.000000e+00> : vector<15x15xf32>
    %112 = tpu.matmul %109, %110, %cst_34 {dimension_numbers = #tpu.dot_dimension_numbers<[1], [1], [0], [0], [0, 0, 1, 0], [], []>} : vector<15x4xf32>, vector<15x4xf32>, vector<15x15xf32> -> vector<15x15xf32>
    %cst_35 = arith.constant 5.000000e-01 : f32
    %113 = vector.broadcast %cst_35 : f32 to vector<15x15xf32>
    %114 = arith.mulf %112, %113 : vector<15x15xf32>
    %cst_36 = arith.constant dense<0xFF800000> : vector<15xf32>
    %115 = vector.multi_reduction <maximumf>, %114, %cst_36 [1] : vector<15x15xf32> to vector<15xf32>
    %116 = vector.shape_cast %115 : vector<15xf32> to vector<15x1xf32>
    %117 = vector.broadcast %116 : vector<15x1xf32> to vector<15x15xf32>
    %118 = arith.subf %114, %117 : vector<15x15xf32>
    %119 = math.exp %118 : vector<15x15xf32>
    %cst_37 = arith.constant dense<0.000000e+00> : vector<15xf32>
    %120 = vector.multi_reduction <add>, %119, %cst_37 [1] : vector<15x15xf32> to vector<15xf32>
    %121 = vector.shape_cast %120 : vector<15xf32> to vector<15x1xf32>
    %122 = tpu.reciprocal %121 {approx = true} : vector<15x1xf32> -> vector<15x1xf32>
    %123 = vector.broadcast %122 : vector<15x1xf32> to vector<15x15xf32>
    %124 = arith.mulf %119, %123 : vector<15x15xf32>
    %cst_38 = arith.constant dense<0.000000e+00> : vector<15x4xf32>
    %125 = tpu.matmul %124, %111, %cst_38 {dimension_numbers = #tpu.dot_dimension_numbers<[1], [0], [0], [1], [0, 0, 1, 1], [], []>} : vector<15x15xf32>, vector<15x4xf32>, vector<15x4xf32> -> vector<15x4xf32>
    %126 = arith.truncf %125 : vector<15x4xf32> to vector<15x4xbf16>
    %127 = vector.extract_strided_slice %2 {offsets = [20, 0], sizes = [4, 32], strides = [1, 1]} : vector<32x32xbf16> to vector<4x32xbf16>
    %cst_39 = arith.constant dense<0.000000e+00> : vector<15x32xf32>
    %128 = tpu.matmul %126, %127, %cst_39 {dimension_numbers = #tpu.dot_dimension_numbers<[1], [0], [0], [1], [0, 0, 1, 1], [], []>} : vector<15x4xbf16>, vector<4x32xbf16>, vector<15x32xf32> -> vector<15x32xf32>
    %129 = arith.addf %108, %128 : vector<15x32xf32>
    %130 = vector.extract_strided_slice %1 {offsets = [0, 24], sizes = [15, 4], strides = [1, 1]} : vector<15x96xf32> to vector<15x4xf32>
    %131 = vector.extract_strided_slice %1 {offsets = [0, 56], sizes = [15, 4], strides = [1, 1]} : vector<15x96xf32> to vector<15x4xf32>
    %132 = vector.extract_strided_slice %1 {offsets = [0, 88], sizes = [15, 4], strides = [1, 1]} : vector<15x96xf32> to vector<15x4xf32>
    %cst_40 = arith.constant dense<0.000000e+00> : vector<15x15xf32>
    %133 = tpu.matmul %130, %131, %cst_40 {dimension_numbers = #tpu.dot_dimension_numbers<[1], [1], [0], [0], [0, 0, 1, 0], [], []>} : vector<15x4xf32>, vector<15x4xf32>, vector<15x15xf32> -> vector<15x15xf32>
    %cst_41 = arith.constant 5.000000e-01 : f32
    %134 = vector.broadcast %cst_41 : f32 to vector<15x15xf32>
    %135 = arith.mulf %133, %134 : vector<15x15xf32>
    %cst_42 = arith.constant dense<0xFF800000> : vector<15xf32>
    %136 = vector.multi_reduction <maximumf>, %135, %cst_42 [1] : vector<15x15xf32> to vector<15xf32>
    %137 = vector.shape_cast %136 : vector<15xf32> to vector<15x1xf32>
    %138 = vector.broadcast %137 : vector<15x1xf32> to vector<15x15xf32>
    %139 = arith.subf %135, %138 : vector<15x15xf32>
    %140 = math.exp %139 : vector<15x15xf32>
    %cst_43 = arith.constant dense<0.000000e+00> : vector<15xf32>
    %141 = vector.multi_reduction <add>, %140, %cst_43 [1] : vector<15x15xf32> to vector<15xf32>
    %142 = vector.shape_cast %141 : vector<15xf32> to vector<15x1xf32>
    %143 = tpu.reciprocal %142 {approx = true} : vector<15x1xf32> -> vector<15x1xf32>
    %144 = vector.broadcast %143 : vector<15x1xf32> to vector<15x15xf32>
    %145 = arith.mulf %140, %144 : vector<15x15xf32>
    %cst_44 = arith.constant dense<0.000000e+00> : vector<15x4xf32>
    %146 = tpu.matmul %145, %132, %cst_44 {dimension_numbers = #tpu.dot_dimension_numbers<[1], [0], [0], [1], [0, 0, 1, 1], [], []>} : vector<15x15xf32>, vector<15x4xf32>, vector<15x4xf32> -> vector<15x4xf32>
    %147 = arith.truncf %146 : vector<15x4xf32> to vector<15x4xbf16>
    %148 = vector.extract_strided_slice %2 {offsets = [24, 0], sizes = [4, 32], strides = [1, 1]} : vector<32x32xbf16> to vector<4x32xbf16>
    %cst_45 = arith.constant dense<0.000000e+00> : vector<15x32xf32>
    %149 = tpu.matmul %147, %148, %cst_45 {dimension_numbers = #tpu.dot_dimension_numbers<[1], [0], [0], [1], [0, 0, 1, 1], [], []>} : vector<15x4xbf16>, vector<4x32xbf16>, vector<15x32xf32> -> vector<15x32xf32>
    %150 = arith.addf %129, %149 : vector<15x32xf32>
    %151 = vector.extract_strided_slice %1 {offsets = [0, 28], sizes = [15, 4], strides = [1, 1]} : vector<15x96xf32> to vector<15x4xf32>
    %152 = vector.extract_strided_slice %1 {offsets = [0, 60], sizes = [15, 4], strides = [1, 1]} : vector<15x96xf32> to vector<15x4xf32>
    %153 = vector.extract_strided_slice %1 {offsets = [0, 92], sizes = [15, 4], strides = [1, 1]} : vector<15x96xf32> to vector<15x4xf32>
    %cst_46 = arith.constant dense<0.000000e+00> : vector<15x15xf32>
    %154 = tpu.matmul %151, %152, %cst_46 {dimension_numbers = #tpu.dot_dimension_numbers<[1], [1], [0], [0], [0, 0, 1, 0], [], []>} : vector<15x4xf32>, vector<15x4xf32>, vector<15x15xf32> -> vector<15x15xf32>
    %cst_47 = arith.constant 5.000000e-01 : f32
    %155 = vector.broadcast %cst_47 : f32 to vector<15x15xf32>
    %156 = arith.mulf %154, %155 : vector<15x15xf32>
    %cst_48 = arith.constant dense<0xFF800000> : vector<15xf32>
    %157 = vector.multi_reduction <maximumf>, %156, %cst_48 [1] : vector<15x15xf32> to vector<15xf32>
    %158 = vector.shape_cast %157 : vector<15xf32> to vector<15x1xf32>
    %159 = vector.broadcast %158 : vector<15x1xf32> to vector<15x15xf32>
    %160 = arith.subf %156, %159 : vector<15x15xf32>
    %161 = math.exp %160 : vector<15x15xf32>
    %cst_49 = arith.constant dense<0.000000e+00> : vector<15xf32>
    %162 = vector.multi_reduction <add>, %161, %cst_49 [1] : vector<15x15xf32> to vector<15xf32>
    %163 = vector.shape_cast %162 : vector<15xf32> to vector<15x1xf32>
    %164 = tpu.reciprocal %163 {approx = true} : vector<15x1xf32> -> vector<15x1xf32>
    %165 = vector.broadcast %164 : vector<15x1xf32> to vector<15x15xf32>
    %166 = arith.mulf %161, %165 : vector<15x15xf32>
    %cst_50 = arith.constant dense<0.000000e+00> : vector<15x4xf32>
    %167 = tpu.matmul %166, %153, %cst_50 {dimension_numbers = #tpu.dot_dimension_numbers<[1], [0], [0], [1], [0, 0, 1, 1], [], []>} : vector<15x15xf32>, vector<15x4xf32>, vector<15x4xf32> -> vector<15x4xf32>
    %168 = arith.truncf %167 : vector<15x4xf32> to vector<15x4xbf16>
    %169 = vector.extract_strided_slice %2 {offsets = [28, 0], sizes = [4, 32], strides = [1, 1]} : vector<32x32xbf16> to vector<4x32xbf16>
    %cst_51 = arith.constant dense<0.000000e+00> : vector<15x32xf32>
    %170 = tpu.matmul %168, %169, %cst_51 {dimension_numbers = #tpu.dot_dimension_numbers<[1], [0], [0], [1], [0, 0, 1, 1], [], []>} : vector<15x4xbf16>, vector<4x32xbf16>, vector<15x32xf32> -> vector<15x32xf32>
    %171 = arith.addf %150, %170 : vector<15x32xf32>
    %c0_52 = arith.constant 0 : index
    %c0_53 = arith.constant 0 : index
    %c0_54 = arith.constant 0 : index
    %172 = vector.load %arg2[%c0_52, %c0_53, %c0_54] : memref<1x15x32xf32, #tpu.memory_space<vmem>>, vector<1x15x32xf32>
    %173 = vector.shape_cast %172 : vector<1x15x32xf32> to vector<15x32xf32>
    %174 = arith.addf %173, %171 : vector<15x32xf32>
    %c0_55 = arith.constant 0 : index
    %c0_56 = arith.constant 0 : index
    %175 = vector.load %arg4[%c0_55, %c0_56] : memref<1x32xf32, #tpu.memory_space<vmem>>, vector<1x32xf32>
    %176 = vector.broadcast %175 : vector<1x32xf32> to vector<15x32xf32>
    %177 = arith.addf %174, %176 : vector<15x32xf32>
    %cst_57 = arith.constant dense<0.000000e+00> : vector<15xf32>
    %178 = vector.multi_reduction <add>, %177, %cst_57 [1] : vector<15x32xf32> to vector<15xf32>
    %179 = vector.shape_cast %178 : vector<15xf32> to vector<15x1xf32>
    %cst_58 = arith.constant 3.200000e+01 : f32
    %180 = vector.broadcast %cst_58 : f32 to vector<15x1xf32>
    %181 = arith.divf %179, %180 : vector<15x1xf32>
    %182 = vector.broadcast %181 : vector<15x1xf32> to vector<15x32xf32>
    %183 = arith.subf %177, %182 : vector<15x32xf32>
    %184 = arith.mulf %183, %183 : vector<15x32xf32>
    %cst_59 = arith.constant dense<0.000000e+00> : vector<15xf32>
    %185 = vector.multi_reduction <add>, %184, %cst_59 [1] : vector<15x32xf32> to vector<15xf32>
    %186 = vector.shape_cast %185 : vector<15xf32> to vector<15x1xf32>
    %cst_60 = arith.constant 3.200000e+01 : f32
    %187 = vector.broadcast %cst_60 : f32 to vector<15x1xf32>
    %188 = arith.divf %186, %187 : vector<15x1xf32>
    %cst_61 = arith.constant 9.99999974E-6 : f32
    %189 = vector.broadcast %cst_61 : f32 to vector<15x1xf32>
    %190 = arith.addf %188, %189 : vector<15x1xf32>
    %191 = math.rsqrt %190 : vector<15x1xf32>
    %192 = vector.broadcast %191 : vector<15x1xf32> to vector<15x32xf32>
    %193 = arith.mulf %183, %192 : vector<15x32xf32>
    %c0_62 = arith.constant 0 : index
    %c0_63 = arith.constant 0 : index
    %194 = vector.load %arg5[%c0_62, %c0_63] : memref<1x32xf32, #tpu.memory_space<vmem>>, vector<1x32xf32>
    %195 = vector.broadcast %194 : vector<1x32xf32> to vector<15x32xf32>
    %196 = arith.mulf %193, %195 : vector<15x32xf32>
    %c0_64 = arith.constant 0 : index
    %c0_65 = arith.constant 0 : index
    %197 = vector.load %arg6[%c0_64, %c0_65] : memref<1x32xf32, #tpu.memory_space<vmem>>, vector<1x32xf32>
    %198 = vector.broadcast %197 : vector<1x32xf32> to vector<15x32xf32>
    %199 = arith.addf %196, %198 : vector<15x32xf32>
    %c0_66 = arith.constant 0 : index
    %c0_67 = arith.constant 0 : index
    %c0_68 = arith.constant 0 : index
    %200 = vector.load %arg7[%c0_66, %c0_67, %c0_68] : memref<1x15x32xf32, #tpu.memory_space<vmem>>, vector<1x15x32xf32>
    %201 = vector.shape_cast %200 : vector<1x15x32xf32> to vector<15x32xf32>
    %202 = vector.shape_cast %199 : vector<15x32xf32> to vector<1x15x32xf32>
    tpu.vector_store %arg7[%c0_66, %c0_67, %c0_68], %202 {strides = array<i32>} : memref<1x15x32xf32, #tpu.memory_space<vmem>>, vector<1x15x32xf32>,
    return
  }
  func.func @transform_0(%arg0: i32) -> (i32, i32, i32) {
    %c0_i32 = arith.constant 0 : i32
    %c0_i32_0 = arith.constant 0 : i32
    %c0_i32_1 = arith.constant 0 : i32
    return %arg0, %c0_i32, %c0_i32_0 : i32, i32, i32
  }
  func.func @transform_1(%arg0: i32) -> (i32, i32, i32) {
    %c0_i32 = arith.constant 0 : i32
    %c0_i32_0 = arith.constant 0 : i32
    %c0_i32_1 = arith.constant 0 : i32
    return %arg0, %c0_i32, %c0_i32_0 : i32, i32, i32
  }
  func.func @transform_2(%arg0: i32) -> (i32, i32) {
    %c0_i32 = arith.constant 0 : i32
    %c0_i32_0 = arith.constant 0 : i32
    %c0_i32_1 = arith.constant 0 : i32
    return %c0_i32, %c0_i32_0 : i32, i32
  }
  func.func @transform_3(%arg0: i32) -> (i32, i32) {
    %c0_i32 = arith.constant 0 : i32
    %c0_i32_0 = arith.constant 0 : i32
    %c0_i32_1 = arith.constant 0 : i32
    return %c0_i32, %c0_i32_0 : i32, i32
  }
  func.func @transform_4(%arg0: i32) -> (i32, i32) {
    %c0_i32 = arith.constant 0 : i32
    %c0_i32_0 = arith.constant 0 : i32
    %c0_i32_1 = arith.constant 0 : i32
    return %c0_i32, %c0_i32_0 : i32, i32
  }
  func.func @transform_5(%arg0: i32) -> (i32, i32) {
    %c0_i32 = arith.constant 0 : i32
    %c0_i32_0 = arith.constant 0 : i32
    %c0_i32_1 = arith.constant 0 : i32
    return %c0_i32, %c0_i32_0 : i32, i32
  }
  func.func @transform_6(%arg0: i32) -> (i32, i32, i32) {
    %c0_i32 = arith.constant 0 : i32
    %c0_i32_0 = arith.constant 0 : i32
    %c0_i32_1 = arith.constant 0 : i32
    return %arg0, %c0_i32, %c0_i32_0 : i32, i32, i32
  }
}

module attributes {stable_mosaic.version = 11 : i64} {
  func.func @_ffn_block_kernel(%arg0: i32, %arg1: i32, %arg2: memref<32x32xf32, #tpu.memory_space<vmem>>, %arg3: memref<32x128xbf16, #tpu.memory_space<vmem>>, %arg4: memref<1x128xf32, #tpu.memory_space<vmem>>, %arg5: memref<128x32xbf16, #tpu.memory_space<vmem>>, %arg6: memref<1x32xf32, #tpu.memory_space<vmem>>, %arg7: memref<1x32xf32, #tpu.memory_space<vmem>>, %arg8: memref<1x32xf32, #tpu.memory_space<vmem>>, %arg9: memref<32x32xf32, #tpu.memory_space<vmem>>, %arg10: memref<32x32xf32, #tpu.memory_space<vmem>>) attributes {dimension_semantics = [#tpu.dimension_semantics<parallel>, #tpu.dimension_semantics<arbitrary>], iteration_bounds = array<i64: 1, 1>, scalar_prefetch = 0 : i64, scratch_operands = 1 : i64, tpu.core_type = #tpu.core_type<tc>, window_params = [{transform_indices = @transform_0, window_bounds = array<i64: 32, 32>}, {transform_indices = @transform_1, window_bounds = array<i64: 32, 128>}, {transform_indices = @transform_2, window_bounds = array<i64: 1, 128>}, {transform_indices = @transform_3, window_bounds = array<i64: 128, 32>}, {pipeline_mode = #tpu.pipeline_mode<synchronous>, transform_indices = @transform_4, window_bounds = array<i64: 1, 32>}, {pipeline_mode = #tpu.pipeline_mode<synchronous>, transform_indices = @transform_5, window_bounds = array<i64: 1, 32>}, {pipeline_mode = #tpu.pipeline_mode<synchronous>, transform_indices = @transform_6, window_bounds = array<i64: 1, 32>}, {transform_indices = @transform_7, window_bounds = array<i64: 32, 32>}]} {
    %c0_i32 = arith.constant 0 : i32
    %0 = arith.cmpi eq, %arg1, %c0_i32 : i32
    %1 = arith.extui %0 : i1 to i32
    %c0_i32_0 = arith.constant 0 : i32
    %2 = arith.cmpi ne, %1, %c0_i32_0 : i32
    scf.if %2 {
      %cst_16 = arith.constant 0.000000e+00 : f32
      %21 = vector.broadcast %cst_16 : f32 to vector<32x32xf32>
      %c0_17 = arith.constant 0 : index
      %c0_18 = arith.constant 0 : index
      %22 = vector.load %arg10[%c0_17, %c0_18] : memref<32x32xf32, #tpu.memory_space<vmem>>, vector<32x32xf32>
      tpu.vector_store %arg10[%c0_17, %c0_18], %21 {strides = array<i32>} : memref<32x32xf32, #tpu.memory_space<vmem>>, vector<32x32xf32>,
    } else {
    }
    %c0 = arith.constant 0 : index
    %c0_1 = arith.constant 0 : index
    %3 = vector.load %arg2[%c0, %c0_1] : memref<32x32xf32, #tpu.memory_space<vmem>>, vector<32x32xf32>
    %4 = arith.truncf %3 : vector<32x32xf32> to vector<32x32xbf16>
    %c0_2 = arith.constant 0 : index
    %c0_3 = arith.constant 0 : index
    %5 = vector.load %arg3[%c0_2, %c0_3] : memref<32x128xbf16, #tpu.memory_space<vmem>>, vector<32x128xbf16>
    %cst = arith.constant dense<0.000000e+00> : vector<32x128xf32>
    %6 = tpu.matmul %4, %5, %cst {dimension_numbers = #tpu.dot_dimension_numbers<[1], [0], [0], [1], [0, 0, 1, 1], [], []>} : vector<32x32xbf16>, vector<32x128xbf16>, vector<32x128xf32> -> vector<32x128xf32>
    %c0_4 = arith.constant 0 : index
    %c0_5 = arith.constant 0 : index
    %7 = vector.load %arg4[%c0_4, %c0_5] : memref<1x128xf32, #tpu.memory_space<vmem>>, vector<1x128xf32>
    %8 = vector.broadcast %7 : vector<1x128xf32> to vector<32x128xf32>
    %9 = arith.addf %6, %8 : vector<32x128xf32>
    %cst_6 = arith.constant 0.000000e+00 : f32
    %10 = vector.broadcast %cst_6 : f32 to vector<32x128xf32>
    %11 = arith.maximumf %9, %10 : vector<32x128xf32>
    %c0_7 = arith.constant 0 : index
    %c0_8 = arith.constant 0 : index
    %12 = vector.load %arg10[%c0_7, %c0_8] : memref<32x32xf32, #tpu.memory_space<vmem>>, vector<32x32xf32>
    %13 = arith.truncf %11 : vector<32x128xf32> to vector<32x128xbf16>
    %c0_9 = arith.constant 0 : index
    %c0_10 = arith.constant 0 : index
    %14 = vector.load %arg5[%c0_9, %c0_10] : memref<128x32xbf16, #tpu.memory_space<vmem>>, vector<128x32xbf16>
    %cst_11 = arith.constant dense<0.000000e+00> : vector<32x32xf32>
    %15 = tpu.matmul %13, %14, %cst_11 {dimension_numbers = #tpu.dot_dimension_numbers<[1], [0], [0], [1], [0, 0, 1, 1], [], []>} : vector<32x128xbf16>, vector<128x32xbf16>, vector<32x32xf32> -> vector<32x32xf32>
    %16 = arith.addf %12, %15 : vector<32x32xf32>
    %c0_12 = arith.constant 0 : index
    %c0_13 = arith.constant 0 : index
    %17 = vector.load %arg10[%c0_12, %c0_13] : memref<32x32xf32, #tpu.memory_space<vmem>>, vector<32x32xf32>
    tpu.vector_store %arg10[%c0_12, %c0_13], %16 {strides = array<i32>} : memref<32x32xf32, #tpu.memory_space<vmem>>, vector<32x32xf32>,
    %c0_i32_14 = arith.constant 0 : i32
    %18 = arith.cmpi eq, %arg1, %c0_i32_14 : i32
    %19 = arith.extui %18 : i1 to i32
    %c0_i32_15 = arith.constant 0 : i32
    %20 = arith.cmpi ne, %19, %c0_i32_15 : i32
    scf.if %20 {
      %c0_16 = arith.constant 0 : index
      %c0_17 = arith.constant 0 : index
      %21 = vector.load %arg10[%c0_16, %c0_17] : memref<32x32xf32, #tpu.memory_space<vmem>>, vector<32x32xf32>
      %c0_18 = arith.constant 0 : index
      %c0_19 = arith.constant 0 : index
      %22 = vector.load %arg6[%c0_18, %c0_19] : memref<1x32xf32, #tpu.memory_space<vmem>>, vector<1x32xf32>
      %23 = vector.broadcast %22 : vector<1x32xf32> to vector<32x32xf32>
      %24 = arith.addf %21, %23 : vector<32x32xf32>
      %c0_20 = arith.constant 0 : index
      %c0_21 = arith.constant 0 : index
      %25 = vector.load %arg2[%c0_20, %c0_21] : memref<32x32xf32, #tpu.memory_space<vmem>>, vector<32x32xf32>
      %26 = arith.addf %24, %25 : vector<32x32xf32>
      %cst_22 = arith.constant dense<0.000000e+00> : vector<32xf32>
      %27 = vector.multi_reduction <add>, %26, %cst_22 [1] : vector<32x32xf32> to vector<32xf32>
      %28 = vector.shape_cast %27 : vector<32xf32> to vector<32x1xf32>
      %cst_23 = arith.constant 3.200000e+01 : f32
      %29 = vector.broadcast %cst_23 : f32 to vector<32x1xf32>
      %30 = arith.divf %28, %29 : vector<32x1xf32>
      %31 = vector.broadcast %30 : vector<32x1xf32> to vector<32x32xf32>
      %32 = arith.subf %26, %31 : vector<32x32xf32>
      %33 = arith.mulf %32, %32 : vector<32x32xf32>
      %cst_24 = arith.constant dense<0.000000e+00> : vector<32xf32>
      %34 = vector.multi_reduction <add>, %33, %cst_24 [1] : vector<32x32xf32> to vector<32xf32>
      %35 = vector.shape_cast %34 : vector<32xf32> to vector<32x1xf32>
      %cst_25 = arith.constant 3.200000e+01 : f32
      %36 = vector.broadcast %cst_25 : f32 to vector<32x1xf32>
      %37 = arith.divf %35, %36 : vector<32x1xf32>
      %cst_26 = arith.constant 9.99999974E-6 : f32
      %38 = vector.broadcast %cst_26 : f32 to vector<32x1xf32>
      %39 = arith.addf %37, %38 : vector<32x1xf32>
      %40 = math.rsqrt %39 : vector<32x1xf32>
      %41 = vector.broadcast %40 : vector<32x1xf32> to vector<32x32xf32>
      %42 = arith.mulf %32, %41 : vector<32x32xf32>
      %c0_27 = arith.constant 0 : index
      %c0_28 = arith.constant 0 : index
      %43 = vector.load %arg7[%c0_27, %c0_28] : memref<1x32xf32, #tpu.memory_space<vmem>>, vector<1x32xf32>
      %44 = vector.broadcast %43 : vector<1x32xf32> to vector<32x32xf32>
      %45 = arith.mulf %42, %44 : vector<32x32xf32>
      %c0_29 = arith.constant 0 : index
      %c0_30 = arith.constant 0 : index
      %46 = vector.load %arg8[%c0_29, %c0_30] : memref<1x32xf32, #tpu.memory_space<vmem>>, vector<1x32xf32>
      %47 = vector.broadcast %46 : vector<1x32xf32> to vector<32x32xf32>
      %48 = arith.addf %45, %47 : vector<32x32xf32>
      %c0_31 = arith.constant 0 : index
      %c0_32 = arith.constant 0 : index
      %49 = vector.load %arg9[%c0_31, %c0_32] : memref<32x32xf32, #tpu.memory_space<vmem>>, vector<32x32xf32>
      tpu.vector_store %arg9[%c0_31, %c0_32], %48 {strides = array<i32>} : memref<32x32xf32, #tpu.memory_space<vmem>>, vector<32x32xf32>,
    } else {
    }
    return
  }
  func.func @transform_0(%arg0: i32, %arg1: i32) -> (i32, i32) {
    %c0_i32 = arith.constant 0 : i32
    %c0_i32_0 = arith.constant 0 : i32
    return %arg0, %c0_i32 : i32, i32
  }
  func.func @transform_1(%arg0: i32, %arg1: i32) -> (i32, i32) {
    %c0_i32 = arith.constant 0 : i32
    %c0_i32_0 = arith.constant 0 : i32
    return %c0_i32, %arg1 : i32, i32
  }
  func.func @transform_2(%arg0: i32, %arg1: i32) -> (i32, i32) {
    %c0_i32 = arith.constant 0 : i32
    %c0_i32_0 = arith.constant 0 : i32
    return %c0_i32, %arg1 : i32, i32
  }
  func.func @transform_3(%arg0: i32, %arg1: i32) -> (i32, i32) {
    %c0_i32 = arith.constant 0 : i32
    %c0_i32_0 = arith.constant 0 : i32
    return %arg1, %c0_i32 : i32, i32
  }
  func.func @transform_4(%arg0: i32, %arg1: i32) -> (i32, i32) {
    %c0_i32 = arith.constant 0 : i32
    %c0_i32_0 = arith.constant 0 : i32
    %c0_i32_1 = arith.constant 0 : i32
    return %c0_i32, %c0_i32_0 : i32, i32
  }
  func.func @transform_5(%arg0: i32, %arg1: i32) -> (i32, i32) {
    %c0_i32 = arith.constant 0 : i32
    %c0_i32_0 = arith.constant 0 : i32
    %c0_i32_1 = arith.constant 0 : i32
    return %c0_i32, %c0_i32_0 : i32, i32
  }
  func.func @transform_6(%arg0: i32, %arg1: i32) -> (i32, i32) {
    %c0_i32 = arith.constant 0 : i32
    %c0_i32_0 = arith.constant 0 : i32
    %c0_i32_1 = arith.constant 0 : i32
    return %c0_i32, %c0_i32_0 : i32, i32
  }
  func.func @transform_7(%arg0: i32, %arg1: i32) -> (i32, i32) {
    %c0_i32 = arith.constant 0 : i32
    %c0_i32_0 = arith.constant 0 : i32
    return %arg0, %c0_i32 : i32, i32
  }
}

module attributes {stable_mosaic.version = 11 : i64} {
  func.func @_linear_kernel(%arg0: i32, %arg1: i32, %arg2: i32, %arg3: memref<16x128xbf16, #tpu.memory_space<vmem>>, %arg4: memref<128x128xbf16, #tpu.memory_space<vmem>>, %arg5: memref<1x128xf32, #tpu.memory_space<vmem>>, %arg6: memref<16x128xf32, #tpu.memory_space<vmem>>, %arg7: memref<16x128xf32, #tpu.memory_space<vmem>>) attributes {dimension_semantics = [#tpu.dimension_semantics<parallel>, #tpu.dimension_semantics<parallel>, #tpu.dimension_semantics<arbitrary>], iteration_bounds = array<i64: 1, 1, 1>, scalar_prefetch = 0 : i64, scratch_operands = 1 : i64, tpu.core_type = #tpu.core_type<tc>, window_params = [{transform_indices = @transform_0, window_bounds = array<i64: 16, 128>}, {transform_indices = @transform_1, window_bounds = array<i64: 128, 128>}, {transform_indices = @transform_2, window_bounds = array<i64: 1, 128>}, {transform_indices = @transform_3, window_bounds = array<i64: 16, 128>}]} {
    %c0_i32 = arith.constant 0 : i32
    %0 = arith.cmpi eq, %arg2, %c0_i32 : i32
    %1 = arith.extui %0 : i1 to i32
    %c0_i32_0 = arith.constant 0 : i32
    %2 = arith.cmpi ne, %1, %c0_i32_0 : i32
    scf.if %2 {
      %cst_10 = arith.constant 0.000000e+00 : f32
      %12 = vector.broadcast %cst_10 : f32 to vector<16x128xf32>
      %c0_11 = arith.constant 0 : index
      %c0_12 = arith.constant 0 : index
      %13 = vector.load %arg7[%c0_11, %c0_12] : memref<16x128xf32, #tpu.memory_space<vmem>>, vector<16x128xf32>
      tpu.vector_store %arg7[%c0_11, %c0_12], %12 {strides = array<i32>} : memref<16x128xf32, #tpu.memory_space<vmem>>, vector<16x128xf32>,
    } else {
    }
    %c0 = arith.constant 0 : index
    %c0_1 = arith.constant 0 : index
    %3 = vector.load %arg7[%c0, %c0_1] : memref<16x128xf32, #tpu.memory_space<vmem>>, vector<16x128xf32>
    %c0_2 = arith.constant 0 : index
    %c0_3 = arith.constant 0 : index
    %4 = vector.load %arg3[%c0_2, %c0_3] : memref<16x128xbf16, #tpu.memory_space<vmem>>, vector<16x128xbf16>
    %c0_4 = arith.constant 0 : index
    %c0_5 = arith.constant 0 : index
    %5 = vector.load %arg4[%c0_4, %c0_5] : memref<128x128xbf16, #tpu.memory_space<vmem>>, vector<128x128xbf16>
    %cst = arith.constant dense<0.000000e+00> : vector<16x128xf32>
    %6 = tpu.matmul %4, %5, %cst {dimension_numbers = #tpu.dot_dimension_numbers<[1], [0], [0], [1], [0, 0, 1, 1], [], []>} : vector<16x128xbf16>, vector<128x128xbf16>, vector<16x128xf32> -> vector<16x128xf32>
    %7 = arith.addf %3, %6 : vector<16x128xf32>
    %c0_6 = arith.constant 0 : index
    %c0_7 = arith.constant 0 : index
    %8 = vector.load %arg7[%c0_6, %c0_7] : memref<16x128xf32, #tpu.memory_space<vmem>>, vector<16x128xf32>
    tpu.vector_store %arg7[%c0_6, %c0_7], %7 {strides = array<i32>} : memref<16x128xf32, #tpu.memory_space<vmem>>, vector<16x128xf32>,
    %c0_i32_8 = arith.constant 0 : i32
    %9 = arith.cmpi eq, %arg2, %c0_i32_8 : i32
    %10 = arith.extui %9 : i1 to i32
    %c0_i32_9 = arith.constant 0 : i32
    %11 = arith.cmpi ne, %10, %c0_i32_9 : i32
    scf.if %11 {
      %c0_10 = arith.constant 0 : index
      %c0_11 = arith.constant 0 : index
      %12 = vector.load %arg7[%c0_10, %c0_11] : memref<16x128xf32, #tpu.memory_space<vmem>>, vector<16x128xf32>
      %c0_12 = arith.constant 0 : index
      %c0_13 = arith.constant 0 : index
      %13 = vector.load %arg5[%c0_12, %c0_13] : memref<1x128xf32, #tpu.memory_space<vmem>>, vector<1x128xf32>
      %14 = vector.broadcast %13 : vector<1x128xf32> to vector<16x128xf32>
      %15 = arith.addf %12, %14 : vector<16x128xf32>
      %cst_14 = arith.constant 0.000000e+00 : f32
      %16 = vector.broadcast %cst_14 : f32 to vector<16x128xf32>
      %17 = arith.maximumf %15, %16 : vector<16x128xf32>
      %c0_15 = arith.constant 0 : index
      %c0_16 = arith.constant 0 : index
      %18 = vector.load %arg6[%c0_15, %c0_16] : memref<16x128xf32, #tpu.memory_space<vmem>>, vector<16x128xf32>
      tpu.vector_store %arg6[%c0_15, %c0_16], %17 {strides = array<i32>} : memref<16x128xf32, #tpu.memory_space<vmem>>, vector<16x128xf32>,
    } else {
    }
    return
  }
  func.func @transform_0(%arg0: i32, %arg1: i32, %arg2: i32) -> (i32, i32) {
    %c0_i32 = arith.constant 0 : i32
    return %arg0, %arg2 : i32, i32
  }
  func.func @transform_1(%arg0: i32, %arg1: i32, %arg2: i32) -> (i32, i32) {
    %c0_i32 = arith.constant 0 : i32
    return %arg2, %arg1 : i32, i32
  }
  func.func @transform_2(%arg0: i32, %arg1: i32, %arg2: i32) -> (i32, i32) {
    %c0_i32 = arith.constant 0 : i32
    %c0_i32_0 = arith.constant 0 : i32
    return %c0_i32, %arg1 : i32, i32
  }
  func.func @transform_3(%arg0: i32, %arg1: i32, %arg2: i32) -> (i32, i32) {
    %c0_i32 = arith.constant 0 : i32
    return %arg0, %arg1 : i32, i32
  }
}

</mosaic_0001>

<llo_original>
// kernel: neg.1
$region0: #{neg.1}
  #allocation0 [shape = 's32[1]{0}', space=sflag, size = 0x4, scoped, tag = 'scoped memory for neg.1']
  %s0 = inlined_call_operand.vmem [shape: f32[2,8], index: 0, kind: input, shape index: {}]
  %s1 = inlined_call_operand.vmem [shape: f32[2,8], index: 1, kind: output, shape index: {}]
  %v2 = vld [vmem:[%s0] sm:$0x3]
  %3 = xla_tuple %v2
  %4 = xla_tuple %3
  %v5 = vxor.u32 %v2, 2147483648
  %6 = xla_tuple %v5
  %7 = vst [vmem:[%s1] sm:$0x3] %v5

// kernel: ntlbg_llm_forward.11
$region0: #{ntlbg_llm_forward.11}
  #allocation0 [shape = 'u32[]', space=smem, size = 0x4, offset = 0x4, fixed_abs, tag = 'smem constant byte address 0x4 - core index']
  #allocation1 [shape = 'u32[144,128]{1,0:T(1,128)}', space=vmem, size = 0x12000, scoped, tag = 'internal scratch']
  #allocation2 [shape = 'f32[16,128]{1,0:T(8,128)}', space=vmem, size = 0x2000, scoped, tag = 'scratch operand']
  %s0 = inlined_call_operand.vmem [shape: bf16[16,128], index: 0, kind: input, shape index: {}]
  %s1 = inlined_call_operand.vmem [shape: bf16[128,128], index: 1, kind: input, shape index: {}]
  %s2 = inlined_call_operand.vmem [shape: f32[1,128], index: 2, kind: input, shape index: {}]
  %s3 = inlined_call_operand.vmem [shape: f32[16,128], index: 3, kind: output, shape index: {}]
  %s4 = sld [smem:[#allocation0]]
  $region30: #{ntlbg_llm_forward.11} parent=0
    _
  %s6 = ssub.s32 1, %s4
  %s7 = scalar_select 0, %s6, %s4
  // Predicated region
  $region2: #{ntlbg_llm_forward.11} parent=0 // pred_check
    _
  $region3: #{ntlbg_llm_forward.11} parent=0 // pred_check_branch
    %9 = sbr.rel (0) target = $region5
  $region4: #{ntlbg_llm_forward.11} parent=0 // pred_region
    _
  $region5: #{ntlbg_llm_forward.11} parent=0 // pred_fallthru
    _
  // Predicated region
  $region6: #{ntlbg_llm_forward.11} parent=0 // pred_check
    _
  $region7: #{ntlbg_llm_forward.11} parent=0 // pred_check_branch
    %11 = sbr.rel (0) target = $region9
  $region8: #{ntlbg_llm_forward.11} parent=0 // pred_region
    _
  $region9: #{ntlbg_llm_forward.11} parent=0 // pred_fallthru
    _
  // Predicated region
  $region10: #{ntlbg_llm_forward.11} parent=0 // pred_check
    _
  $region11: #{ntlbg_llm_forward.11} parent=0 // pred_check_branch
    %13 = sbr.rel (0) target = $region13
  $region12: #{ntlbg_llm_forward.11} parent=0 // pred_region
    _
  $region13: #{ntlbg_llm_forward.11} parent=0 // pred_fallthru
    _
  %p15 = scmp.eq.s32.totalorder 0, 0
  // Predicated region
  $region14: #{ntlbg_llm_forward.11} parent=0 // pred_check
    %p16 = pneg %p15
  $region15: #{ntlbg_llm_forward.11} parent=0 // pred_check_branch
    %18 = sbr.rel (%p16) target = $region17
  $region16: #{ntlbg_llm_forward.11} parent=0 // pred_region
    %19 = vst [vmem:[#allocation2] sm:$0xff] 0.0
    %20 = vst [vmem:[#allocation2 + $0x8] sm:$0xff] 0.0
  $region17: #{ntlbg_llm_forward.11} parent=0 // pred_fallthru
    _
  %v21 = vld [vmem:[#allocation2] sm:$0xff]
  %v22 = vld [vmem:[#allocation2 + $0x8] sm:$0xff]
  %v23 = vld [vmem:[%s0] sm:$0xf]
  %v24 = vld [vmem:[%s0 + $0x4] sm:$0xf]
  %v25 = vld [vmem:[%s1] sm:$0xf]
  %v26 = vld [vmem:[%s1 + $0x4] sm:$0xf]
  %v27 = vld [vmem:[%s1 + $0x8] sm:$0xf]
  %v28 = vld [vmem:[%s1 + $0xc] sm:$0xf]
  %v29 = vld [vmem:[%s1 + $0x10] sm:$0xf]
  %v30 = vld [vmem:[%s1 + $0x14] sm:$0xf]
  %v31 = vld [vmem:[%s1 + $0x18] sm:$0xf]
  %v32 = vld [vmem:[%s1 + $0x1c] sm:$0xf]
  %v33 = vld [vmem:[%s1 + $0x20] sm:$0xf]
  %v34 = vld [vmem:[%s1 + $0x24] sm:$0xf]
  %v35 = vld [vmem:[%s1 + $0x28] sm:$0xf]
  %v36 = vld [vmem:[%s1 + $0x2c] sm:$0xf]
  %v37 = vld [vmem:[%s1 + $0x30] sm:$0xf]
  %v38 = vld [vmem:[%s1 + $0x34] sm:$0xf]
  %v39 = vld [vmem:[%s1 + $0x38] sm:$0xf]
  %v40 = vld [vmem:[%s1 + $0x3c] sm:$0xf]
  %v43 = vunpack.c.l.b16 %v23
  %v44 = vunpack.c.l.b16 %v24
  %v45 = vpack.c.b16 %v44, %v43
  %v63 = vunpack.c.l.b16 %v25
  %v64 = vunpack.c.l.b16 %v26
  %v65 = vunpack.c.l.b16 %v27
  %v66 = vunpack.c.l.b16 %v28
  %v67 = vunpack.c.l.b16 %v29
  %v68 = vunpack.c.l.b16 %v30
  %v69 = vunpack.c.l.b16 %v31
  %v70 = vunpack.c.l.b16 %v32
  %v71 = vunpack.c.l.b16 %v33
  %v72 = vunpack.c.l.b16 %v34
  %v73 = vunpack.c.l.b16 %v35
  %v74 = vunpack.c.l.b16 %v36
  %v75 = vunpack.c.l.b16 %v37
  %v76 = vunpack.c.l.b16 %v38
  %v77 = vunpack.c.l.b16 %v39
  %v78 = vunpack.c.l.b16 %v40
  %v79 = vpack.c.b16 %v64, %v63
  %v80 = vpack.c.b16 %v66, %v65
  %v81 = vpack.c.b16 %v68, %v67
  %v82 = vpack.c.b16 %v70, %v69
  %v83 = vpack.c.b16 %v72, %v71
  %v84 = vpack.c.b16 %v74, %v73
  %v85 = vpack.c.b16 %v76, %v75
  %v86 = vpack.c.b16 %v78, %v77
  %95 = vmatprep.subr.bf16.mxu0 0
  %96 = vmatpush1.bf16.msra.mxu0 %v79
  %97 = vmatprep.subr.bf16.mxu0 0
  %98 = vmatpush1.bf16.msra.mxu0 %v80
  %99 = vmatprep.subr.bf16.mxu0 0
  %100 = vmatpush1.bf16.msra.mxu0 %v81
  %101 = vmatprep.subr.bf16.mxu0 0
  %102 = vmatpush1.bf16.msra.mxu0 %v82
  %103 = vmatprep.subr.bf16.mxu0 0
  %104 = vmatpush1.bf16.msra.mxu0 %v83
  %105 = vmatprep.subr.bf16.mxu0 0
  %106 = vmatpush1.bf16.msra.mxu0 %v84
  %107 = vmatprep.subr.bf16.mxu0 0
  %108 = vmatpush1.bf16.msra.mxu0 %v85
  %109 = vmatprep.subr.bf16.mxu0 0
  %110 = vmatpush1.bf16.msra.mxu0 %v86
  %111 = vmatprep.subr.bf16.mxu0 0
  %112 = vmatpush1.bf16.msra.mxu0 0
  %113 = vmatprep.subr.bf16.mxu0 0
  %114 = vmatpush1.bf16.msra.mxu0 0
  %115 = vmatprep.subr.bf16.mxu0 0
  %116 = vmatpush1.bf16.msra.mxu0 0
  %117 = vmatprep.subr.bf16.mxu0 0
  %118 = vmatpush1.bf16.msra.mxu0 0
  %119 = vmatprep.subr.bf16.mxu0 0
  %120 = vmatpush1.bf16.msra.mxu0 0
  %121 = vmatprep.subr.bf16.mxu0 0
  %122 = vmatpush1.bf16.msra.mxu0 0
  %123 = vmatprep.subr.bf16.mxu0 0
  %124 = vmatpush1.bf16.msra.mxu0 0
  %125 = vmatprep.subr.bf16.mxu0 0
  %126 = vmatpush1.bf16.msra.mxu0 0
  %127 = vmatprep.mubr.bf16.mxu0 0
  %128 = vmatmul.mubr.bf16.gmra.mrb[0].mxu0 %v45
  %v129 = vpop.f32.mrb[0].mxu0
  %v130 = vadd.f32 0.0, %v129
  %v131 = vpop.f32.mrb[0].mxu0
  %v132 = vpop.f32.mrb[0].mxu0
  %v133 = vadd.f32 0.0, %v132
  %v134 = vpop.f32.mrb[0].mxu0
  %135 = vdwg.mxu0
  %v136 = vadd.f32 %v21, %v130
  %v137 = vadd.f32 %v22, %v133
  %138 = vst [vmem:[#allocation2] sm:$0xff] %v136
  %139 = vst [vmem:[#allocation2 + $0x8] sm:$0xff] %v137
  // Predicated region
  $region18: #{ntlbg_llm_forward.11} parent=0 // pred_check
    %p140 = pneg %p15
  $region19: #{ntlbg_llm_forward.11} parent=0 // pred_check_branch
    %142 = sbr.rel (%p140) target = $region21
  $region20: #{ntlbg_llm_forward.11} parent=0 // pred_region
    %v143 = vld [vmem:[#allocation2] sm:$0xff]
    %v144 = vld [vmem:[#allocation2 + $0x8] sm:$0xff]
    %v145 = vld [vmem:[%s2] sm:$0x1]
    %v147 = vlaneseq
    %v148 = vshrl.u32 %v147, 7
    %v149 = vsub.s32 0, %v148
    %v150 = vrot.slane %v145, %v149
    %v152 = vadd.f32 %v143, %v150
    %v153 = vadd.f32 %v144, %v150
    %154 = vst [vmem:[%s3] sm:$0xff] %v152
    %155 = vst [vmem:[%s3 + $0x8] sm:$0xff] %v153
  $region21: #{ntlbg_llm_forward.11} parent=0 // pred_fallthru
    _
  // Predicated region
  $region22: #{ntlbg_llm_forward.11} parent=0 // pred_check
    _
  $region23: #{ntlbg_llm_forward.11} parent=0 // pred_check_branch
    %157 = sbr.rel (0) target = $region25
  $region24: #{ntlbg_llm_forward.11} parent=0 // pred_region
    _
  $region25: #{ntlbg_llm_forward.11} parent=0 // pred_fallthru
    _
  // Predicated region
  $region26: #{ntlbg_llm_forward.11} parent=0 // pred_check
    _
  $region27: #{ntlbg_llm_forward.11} parent=0 // pred_check_branch
    %159 = sbr.rel (0) target = $region29
  $region28: #{ntlbg_llm_forward.11} parent=0 // pred_region
    _
  $region29: #{ntlbg_llm_forward.11} parent=0 // pred_fallthru
    _

// kernel: ntlbg_llm_forward.13
$region0: #{ntlbg_llm_forward.13}
  #allocation0 [shape = 'u32[]', space=smem, size = 0x4, offset = 0x4, fixed_abs, tag = 'smem constant byte address 0x4 - core index']
  #allocation1 [shape = 'u32[144,128]{1,0:T(1,128)}', space=vmem, size = 0x12000, scoped, tag = 'internal scratch']
  %s0 = inlined_call_operand.vmem [shape: f32[2,8,32], index: 0, kind: input, shape index: {}]
  %s1 = inlined_call_operand.vmem [shape: f32[2,32], index: 1, kind: input, shape index: {}]
  %s2 = inlined_call_operand.vmem [shape: f32[2,32], index: 2, kind: input, shape index: {}]
  %s3 = inlined_call_operand.vmem [shape: f32[2,32], index: 3, kind: input, shape index: {}]
  %s4 = inlined_call_operand.vmem [shape: f32[2,8], index: 4, kind: output, shape index: {0}]
  %s5 = inlined_call_operand.hbm [shape: f32[2,8], index: 5, kind: output, shape index: {1}]
  %s6 = inlined_call_operand.vmem [shape: f32[2,8,32], index: 6, kind: output, shape index: {2}]
  %7 = xla_tuple %s4, %s5, %s6
  %s8 = sld [smem:[#allocation0]]
  $region42: #{ntlbg_llm_forward.13} parent=0
    _
  %s10 = ssub.s32 1, %s8
  %s11 = scalar_select 0, %s10, %s8
  $region1: #{ntlbg_llm_forward.13} parent=0
    #allocation2 [shape = 'u8[1024]{0}', space=vmem, size = 0x400, scoped, tag = 'output window, operand 1, single buffered']
    #allocation3 [shape = 's32[1]{0}', space=sflag, size = 0x4, scoped, tag = 'scoped memory for ntlbg_llm_forward.13']
    %12 = vsyncpa [#allocation3], 0
    // Predicated region
    $region2: #{ntlbg_llm_forward.13} parent=1 // pred_check
      _
    $region3: #{ntlbg_llm_forward.13} parent=1 // pred_check_branch
      %14 = sbr.rel (0) target = $region5
    $region4: #{ntlbg_llm_forward.13} parent=1 // pred_region
      _
    $region5: #{ntlbg_llm_forward.13} parent=1 // pred_fallthru
      _
    // Predicated region
    $region6: #{ntlbg_llm_forward.13} parent=1 // pred_check
      _
    $region7: #{ntlbg_llm_forward.13} parent=1 // pred_check_branch
      %16 = sbr.rel (0) target = $region9
    $region8: #{ntlbg_llm_forward.13} parent=1 // pred_region
      _
    $region9: #{ntlbg_llm_forward.13} parent=1 // pred_fallthru
      _
    // Predicated region
    $region10: #{ntlbg_llm_forward.13} parent=1 // pred_check
      _
    $region11: #{ntlbg_llm_forward.13} parent=1 // pred_check_branch
      %18 = sbr.rel (0) target = $region13
    $region12: #{ntlbg_llm_forward.13} parent=1 // pred_region
      _
    $region13: #{ntlbg_llm_forward.13} parent=1 // pred_fallthru
      _
    // Predicated region
    $region14: #{ntlbg_llm_forward.13} parent=1 // pred_check
      _
    $region15: #{ntlbg_llm_forward.13} parent=1 // pred_check_branch
      %20 = sbr.rel (0) target = $region17
    $region16: #{ntlbg_llm_forward.13} parent=1 // pred_region
      _
    $region17: #{ntlbg_llm_forward.13} parent=1 // pred_fallthru
      _
    %v21 = vld [vmem:[%s0] sm:$0xff]
    %v22 = vld [vmem:[%s0 + $0x8] sm:$0xff]
    %v23 = vld [vmem:[%s1] sm:$0x3]
    %v24 = vld [vmem:[%s2] sm:$0x3]
    %v25 = vld [vmem:[%s3] sm:$0x3]
    %v26 = vmax.f32 %v24, 0.0
    %v27 = vand.u32 2147483647, %v24
    %v28 = vsub.f32 0.0, %v27
    %v29 = vmul.f32 %v28, 1.442695
    %v30 = vpow.pop %v29
    %v31 = vadd.f32 %v30, 1.0
    %v32 = vlog2.pop %v31
    %v33 = vmul.f32 %v32, 0.6931472
    %v34 = vmul.f32 -0.5, %v30
    %v35 = vadd.f32 %v34, 1.0
    %v36 = vmul.f32 %v35, %v30
    %v37 = vand.u32 2147483647, %v30
    %vm38 = vcmp.lt.f32.partialorder %v37, 0.0004427343
    %v39 = vsel %vm38, %v36, %v33
    %v40 = vadd.f32 %v26, %v39
    %v41 = vadd.f32 %v40, 1e-06
    %v42 = vrcp.pop %v41
    %v43 = vmul.f32 1.0, %v42
    %v46 = vunpack.c.l.s4 1966171168
    %v47 = vunpack.c.0.s8 %v46
    %v48 = vlaneseq
    %v49 = vshrl.u32 %v48, 7
    %v50 = vsub.s32 %v47, %v49
    %v51 = vrot.slane %v23, %v50
    %v52 = vcombine.high %v51, %v51
    %v54 = vunpack.c.l.s4 1966171168
    %v55 = vunpack.c.0.s8 %v54
    %v56 = vlaneseq
    %v57 = vshrl.u32 %v56, 7
    %v58 = vsub.s32 %v55, %v57
    %v59 = vrot.slane %v51, %v58
    %v61 = vunpack.c.l.s4 1966171168
    %v62 = vunpack.c.0.s8 %v61
    %v63 = vlaneseq
    %v64 = vshrl.u32 %v63, 7
    %v65 = vsub.s32 %v62, %v64
    %v66 = vrot.slane %v52, %v65
    %v67 = vlaneseq
    %v68 = vshrl.u32 %v67, 7
    %v69 = vsub.s32 0, %v68
    %v70 = vrot.slane %v59, %v69
    %v71 = vlaneseq
    %v72 = vshrl.u32 %v71, 7
    %v73 = vsub.s32 0, %v72
    %v74 = vrot.slane %v66, %v73
    %v77 = vsub.f32 %v21, %v70
    %v78 = vsub.f32 %v22, %v74
    %v79 = vmul.f32 %v77, %v77
    %v80 = vmul.f32 %v78, %v78
    %v83 = vunpack.c.l.s4 1966171168
    %v84 = vunpack.c.0.s8 %v83
    %v85 = vlaneseq
    %v86 = vshrl.u32 %v85, 7
    %v87 = vsub.s32 %v84, %v86
    %v88 = vrot.slane %v43, %v87
    %v89 = vcombine.high %v88, %v88
    %v91 = vunpack.c.l.s4 1966171168
    %v92 = vunpack.c.0.s8 %v91
    %v93 = vlaneseq
    %v94 = vshrl.u32 %v93, 7
    %v95 = vsub.s32 %v92, %v94
    %v96 = vrot.slane %v88, %v95
    %v98 = vunpack.c.l.s4 1966171168
    %v99 = vunpack.c.0.s8 %v98
    %v100 = vlaneseq
    %v101 = vshrl.u32 %v100, 7
    %v102 = vsub.s32 %v99, %v101
    %v103 = vrot.slane %v89, %v102
    %v104 = vlaneseq
    %v105 = vshrl.u32 %v104, 7
    %v106 = vsub.s32 0, %v105
    %v107 = vrot.slane %v96, %v106
    %v108 = vlaneseq
    %v109 = vshrl.u32 %v108, 7
    %v110 = vsub.s32 0, %v109
    %v111 = vrot.slane %v103, %v110
    %v114 = vmul.f32 %v79, %v107
    %v115 = vmul.f32 %v80, %v111
    %vm116 = vcmask 261120
    %v117 = vsel %vm116, %v114, 0.0
    %118 = vadd.xlane.f32.xlu0 %v117
    %v119 = vpop.xlane.xlu0 %118
    %v120 = vsel %vm116, %v115, 0.0
    %121 = vadd.xlane.f32.xlu0 %v120
    %v122 = vpop.xlane.xlu0 %121
    %v125 = vunpack.c.l.s4 1966171168
    %v126 = vunpack.c.0.s8 %v125
    %v127 = vlaneseq
    %v128 = vshrl.u32 %v127, 7
    %v129 = vsub.s32 %v126, %v128
    %v130 = vrot.slane %v25, %v129
    %v131 = vcombine.high %v130, %v130
    %v133 = vunpack.c.l.s4 1966171168
    %v134 = vunpack.c.0.s8 %v133
    %v135 = vlaneseq
    %v136 = vshrl.u32 %v135, 7
    %v137 = vsub.s32 %v134, %v136
    %v138 = vrot.slane %v130, %v137
    %v140 = vunpack.c.l.s4 1966171168
    %v141 = vunpack.c.0.s8 %v140
    %v142 = vlaneseq
    %v143 = vshrl.u32 %v142, 7
    %v144 = vsub.s32 %v141, %v143
    %v145 = vrot.slane %v131, %v144
    %v146 = vlaneseq
    %v147 = vshrl.u32 %v146, 7
    %v148 = vsub.s32 0, %v147
    %v149 = vrot.slane %v138, %v148
    %v150 = vlaneseq
    %v151 = vshrl.u32 %v150, 7
    %v152 = vsub.s32 0, %v151
    %v153 = vrot.slane %v145, %v152
    %v156 = vmul.f32 %v21, %v149
    %v157 = vmul.f32 %v22, %v153
    %v158 = vsel %vm116, %v156, 0.0
    %159 = vadd.xlane.f32.xlu0 %v158
    %v160 = vpop.xlane.xlu0 %159
    %v161 = vsel %vm116, %v157, 0.0
    %162 = vadd.xlane.f32.xlu0 %v161
    %v163 = vpop.xlane.xlu0 %162
    %v164 = vmul.f32 %v160, 0.17677669
    %v165 = vmul.f32 %v163, 0.17677669
    %v168 = vlaneseq
    %v169 = vand.u32 %v168, 127
    %v170 = vlaneseq
    %v171 = vshrl.u32 %v170, 7
    %v172 = vsub.s32 %v169, %v171
    %v173 = vrot.slane %v164, %v172
    %v174 = vlaneseq
    %v175 = vshrl.u32 %v174, 7
    %v176 = vsub.s32 %v169, %v175
    %v177 = vrot.slane %v165, %v176
    %vm178 = vcmask 1041409
    %v179 = vsel %vm178, %v177, %v173
    %vm181 = vcmask 58368
    %v182 = vsel %vm181, %v179, -inf
    %183 = vmax.xlane.f32.xlu0 %v182
    %v184 = vpop.xlane.xlu0 %183
    %v186 = vlaneseq
    %v187 = vshrl.u32 %v186, 7
    %v188 = vsub.s32 0, %v187
    %v189 = vrot.slane %v184, %v188
    %v190 = vlaneseq
    %v191 = vshrl.u32 %v190, 7
    %v192 = vsub.s32 1, %v191
    %v193 = vrot.slane %v184, %v192
    %v196 = vsub.f32 %v164, %v189
    %v197 = vsub.f32 %v165, %v193
    %v198 = vmul.f32 %v196, 1.442695
    %v199 = vpow.pop %v198
    %v200 = vmul.f32 %v197, 1.442695
    %v201 = vpow.pop %v200
    %204 = vset.pattern.permute.xlu0 0
    %205 = vperm.xlu0 %204, %v199
    %v206 = vpop.permute.xlu0 %205
    %207 = vset.pattern.permute.xlu0 0
    %208 = vperm.xlu0 %207, %v201
    %v209 = vpop.permute.xlu0 %208
    %v210 = vlaneseq
    %v211 = vshrl.u32 %v210, 7
    %v212 = vsub.s32 %v169, %v211
    %v213 = vrot.slane %v206, %v212
    %v214 = vlaneseq
    %v215 = vshrl.u32 %v214, 7
    %v216 = vsub.s32 %v169, %v215
    %v217 = vrot.slane %v209, %v216
    %v218 = vsel %vm178, %v217, %v213
    %v220 = vsel %vm181, %v218, 0.0
    %221 = vadd.xlane.f32.xlu0 %v220
    %v222 = vpop.xlane.xlu0 %221
    %v223 = vrcp.pop %v222
    %v225 = vlaneseq
    %v226 = vshrl.u32 %v225, 7
    %v227 = vsub.s32 0, %v226
    %v228 = vrot.slane %v223, %v227
    %v229 = vlaneseq
    %v230 = vshrl.u32 %v229, 7
    %v231 = vsub.s32 1, %v230
    %v232 = vrot.slane %v223, %v231
    %v235 = vmul.f32 %v199, %v228
    %v236 = vmul.f32 %v201, %v232
    %v239 = vlaneseq
    %v240 = vshrl.u32 %v239, 7
    %v241 = vsub.s32 %v169, %v240
    %v242 = vrot.slane %v119, %v241
    %v243 = vlaneseq
    %v244 = vshrl.u32 %v243, 7
    %v245 = vsub.s32 %v169, %v244
    %v246 = vrot.slane %v122, %v245
    %v247 = vsel %vm178, %v246, %v242
    %249 = vst.msk [vmem:[%s4] sm:$0x3] %vm181, %v247
    %252 = vset.pattern.permute.xlu0 0
    %253 = vperm.xlu0 %252, %v235
    %v254 = vpop.permute.xlu0 %253
    %255 = vset.pattern.permute.xlu0 0
    %256 = vperm.xlu0 %255, %v236
    %v257 = vpop.permute.xlu0 %256
    %v258 = vlaneseq
    %v259 = vshrl.u32 %v258, 7
    %v260 = vsub.s32 %v169, %v259
    %v261 = vrot.slane %v254, %v260
    %v262 = vlaneseq
    %v263 = vshrl.u32 %v262, 7
    %v264 = vsub.s32 %v169, %v263
    %v265 = vrot.slane %v257, %v264
    %v266 = vsel %vm178, %v265, %v261
    %268 = vst.msk [vmem:[#allocation2] sm:$0x3] %vm181, %v266
    %v271 = vmul.f32 %v254, %v21
    %v272 = vmul.f32 %v257, %v22
    %273 = vst.msk [vmem:[%s6] sm:$0xff] %vm116, %v271
    %274 = vst.msk [vmem:[%s6 + $0x8] sm:$0xff] %vm116, %v272
    // Predicated region
    $region18: #{ntlbg_llm_forward.13} parent=1 // pred_check
      _
    $region19: #{ntlbg_llm_forward.13} parent=1 // pred_check_branch
      %276 = sbr.rel (0) target = $region21
    $region20: #{ntlbg_llm_forward.13} parent=1 // pred_region
      _
    $region21: #{ntlbg_llm_forward.13} parent=1 // pred_fallthru
      _
    // Predicated region
    $region22: #{ntlbg_llm_forward.13} parent=1 // pred_check
      _
    $region23: #{ntlbg_llm_forward.13} parent=1 // pred_check_branch
      %278 = sbr.rel (0) target = $region25
    $region24: #{ntlbg_llm_forward.13} parent=1 // pred_region
      %s280 = ssub.s32 32, 32
      %281 = vsyncadd [#allocation3], %s280
      %s283 = sshll.u32 [#allocation2], 4
      %s284 = int_to_ptr.vmem [resolvable:$true] %s283
      %286 = dma.vmem_to_hbm [thread:$0]  %s284, 32, %s5, [#allocation3]
    $region25: #{ntlbg_llm_forward.13} parent=1 // pred_fallthru
      _
    // Predicated region
    $region26: #{ntlbg_llm_forward.13} parent=1 // pred_check
      _
    $region27: #{ntlbg_llm_forward.13} parent=1 // pred_check_branch
      %288 = sbr.rel (0) target = $region29
    $region28: #{ntlbg_llm_forward.13} parent=1 // pred_region
      _
    $region29: #{ntlbg_llm_forward.13} parent=1 // pred_fallthru
      _
    // Predicated region
    $region30: #{ntlbg_llm_forward.13} parent=1 // pred_check
      _
    $region31: #{ntlbg_llm_forward.13} parent=1 // pred_check_branch
      %290 = sbr.rel (0) target = $region33
    $region32: #{ntlbg_llm_forward.13} parent=1 // pred_region
      _
    $region33: #{ntlbg_llm_forward.13} parent=1 // pred_fallthru
      _
    // Predicated region
    $region34: #{ntlbg_llm_forward.13} parent=1 // pred_check
      _
    $region35: #{ntlbg_llm_forward.13} parent=1 // pred_check_branch
      %292 = sbr.rel (0) target = $region37
    $region36: #{ntlbg_llm_forward.13} parent=1 // pred_region
      %293 = dma.done [#allocation3], 32
    $region37: #{ntlbg_llm_forward.13} parent=1 // pred_fallthru
      _
    // Predicated region
    $region38: #{ntlbg_llm_forward.13} parent=1 // pred_check
      _
    $region39: #{ntlbg_llm_forward.13} parent=1 // pred_check_branch
      %295 = sbr.rel (0) target = $region41
    $region40: #{ntlbg_llm_forward.13} parent=1 // pred_region
      _
    $region41: #{ntlbg_llm_forward.13} parent=1 // pred_fallthru
      _
    %296 = vsyncpa [#allocation3], 1

// kernel: ntlbg_llm_forward.14
$region0: #{ntlbg_llm_forward.14}
  #allocation0 [shape = 'u32[]', space=smem, size = 0x4, offset = 0x4, fixed_abs, tag = 'smem constant byte address 0x4 - core index']
  #allocation1 [shape = 'u32[144,128]{1,0:T(1,128)}', space=vmem, size = 0x12000, scoped, tag = 'internal scratch']
  #allocation2 [shape = 'f32[32,128]{1,0:T(8,128)}', space=vmem, size = 0x4000, scoped, tag = 'scratch operand']
  %s0 = inlined_call_operand.vmem [shape: bf16[32,128], index: 0, kind: input, shape index: {}]
  %s1 = inlined_call_operand.vmem [shape: bf16[128,128], index: 1, kind: input, shape index: {}]
  %s2 = inlined_call_operand.vmem [shape: f32[1,128], index: 2, kind: input, shape index: {}]
  %s3 = inlined_call_operand.vmem [shape: f32[32,128], index: 3, kind: output, shape index: {}]
  %s4 = sld [smem:[#allocation0]]
  $region30: #{ntlbg_llm_forward.14} parent=0
    _
  %s6 = ssub.s32 1, %s4
  %s7 = scalar_select 0, %s6, %s4
  // Predicated region
  $region2: #{ntlbg_llm_forward.14} parent=0 // pred_check
    _
  $region3: #{ntlbg_llm_forward.14} parent=0 // pred_check_branch
    %9 = sbr.rel (0) target = $region5
  $region4: #{ntlbg_llm_forward.14} parent=0 // pred_region
    _
  $region5: #{ntlbg_llm_forward.14} parent=0 // pred_fallthru
    _
  // Predicated region
  $region6: #{ntlbg_llm_forward.14} parent=0 // pred_check
    _
  $region7: #{ntlbg_llm_forward.14} parent=0 // pred_check_branch
    %11 = sbr.rel (0) target = $region9
  $region8: #{ntlbg_llm_forward.14} parent=0 // pred_region
    _
  $region9: #{ntlbg_llm_forward.14} parent=0 // pred_fallthru
    _
  // Predicated region
  $region10: #{ntlbg_llm_forward.14} parent=0 // pred_check
    _
  $region11: #{ntlbg_llm_forward.14} parent=0 // pred_check_branch
    %13 = sbr.rel (0) target = $region13
  $region12: #{ntlbg_llm_forward.14} parent=0 // pred_region
    _
  $region13: #{ntlbg_llm_forward.14} parent=0 // pred_fallthru
    _
  %p15 = scmp.eq.s32.totalorder 0, 0
  // Predicated region
  $region14: #{ntlbg_llm_forward.14} parent=0 // pred_check
    %p16 = pneg %p15
  $region15: #{ntlbg_llm_forward.14} parent=0 // pred_check_branch
    %18 = sbr.rel (%p16) target = $region17
  $region16: #{ntlbg_llm_forward.14} parent=0 // pred_region
    %19 = vst [vmem:[#allocation2] sm:$0xff] 0.0
    %20 = vst [vmem:[#allocation2 + $0x8] sm:$0xff] 0.0
    %21 = vst [vmem:[#allocation2 + $0x10] sm:$0xff] 0.0
    %22 = vst [vmem:[#allocation2 + $0x18] sm:$0xff] 0.0
  $region17: #{ntlbg_llm_forward.14} parent=0 // pred_fallthru
    _
  %v23 = vld [vmem:[#allocation2] sm:$0xff]
  %v24 = vld [vmem:[#allocation2 + $0x8] sm:$0xff]
  %v25 = vld [vmem:[#allocation2 + $0x10] sm:$0xff]
  %v26 = vld [vmem:[#allocation2 + $0x18] sm:$0xff]
  %v27 = vld [vmem:[%s0] sm:$0xf]
  %v28 = vld [vmem:[%s0 + $0x4] sm:$0xf]
  %v29 = vld [vmem:[%s0 + $0x8] sm:$0xf]
  %v30 = vld [vmem:[%s0 + $0xc] sm:$0xf]
  %v31 = vld [vmem:[%s1] sm:$0xf]
  %v32 = vld [vmem:[%s1 + $0x4] sm:$0xf]
  %v33 = vld [vmem:[%s1 + $0x8] sm:$0xf]
  %v34 = vld [vmem:[%s1 + $0xc] sm:$0xf]
  %v35 = vld [vmem:[%s1 + $0x10] sm:$0xf]
  %v36 = vld [vmem:[%s1 + $0x14] sm:$0xf]
  %v37 = vld [vmem:[%s1 + $0x18] sm:$0xf]
  %v38 = vld [vmem:[%s1 + $0x1c] sm:$0xf]
  %v39 = vld [vmem:[%s1 + $0x20] sm:$0xf]
  %v40 = vld [vmem:[%s1 + $0x24] sm:$0xf]
  %v41 = vld [vmem:[%s1 + $0x28] sm:$0xf]
  %v42 = vld [vmem:[%s1 + $0x2c] sm:$0xf]
  %v43 = vld [vmem:[%s1 + $0x30] sm:$0xf]
  %v44 = vld [vmem:[%s1 + $0x34] sm:$0xf]
  %v45 = vld [vmem:[%s1 + $0x38] sm:$0xf]
  %v46 = vld [vmem:[%s1 + $0x3c] sm:$0xf]
  %v51 = vunpack.c.l.b16 %v27
  %v52 = vunpack.c.l.b16 %v28
  %v53 = vunpack.c.l.b16 %v29
  %v54 = vunpack.c.l.b16 %v30
  %v55 = vpack.c.b16 %v52, %v51
  %v56 = vpack.c.b16 %v54, %v53
  %v75 = vunpack.c.l.b16 %v31
  %v76 = vunpack.c.l.b16 %v32
  %v77 = vunpack.c.l.b16 %v33
  %v78 = vunpack.c.l.b16 %v34
  %v79 = vunpack.c.l.b16 %v35
  %v80 = vunpack.c.l.b16 %v36
  %v81 = vunpack.c.l.b16 %v37
  %v82 = vunpack.c.l.b16 %v38
  %v83 = vunpack.c.l.b16 %v39
  %v84 = vunpack.c.l.b16 %v40
  %v85 = vunpack.c.l.b16 %v41
  %v86 = vunpack.c.l.b16 %v42
  %v87 = vunpack.c.l.b16 %v43
  %v88 = vunpack.c.l.b16 %v44
  %v89 = vunpack.c.l.b16 %v45
  %v90 = vunpack.c.l.b16 %v46
  %v91 = vpack.c.b16 %v76, %v75
  %v92 = vpack.c.b16 %v78, %v77
  %v93 = vpack.c.b16 %v80, %v79
  %v94 = vpack.c.b16 %v82, %v81
  %v95 = vpack.c.b16 %v84, %v83
  %v96 = vpack.c.b16 %v86, %v85
  %v97 = vpack.c.b16 %v88, %v87
  %v98 = vpack.c.b16 %v90, %v89
  %107 = vmatprep.subr.bf16.mxu0 0
  %108 = vmatpush1.bf16.msra.mxu0 %v91
  %109 = vmatprep.subr.bf16.mxu0 0
  %110 = vmatpush1.bf16.msra.mxu0 %v92
  %111 = vmatprep.subr.bf16.mxu0 0
  %112 = vmatpush1.bf16.msra.mxu0 %v93
  %113 = vmatprep.subr.bf16.mxu0 0
  %114 = vmatpush1.bf16.msra.mxu0 %v94
  %115 = vmatprep.subr.bf16.mxu0 0
  %116 = vmatpush1.bf16.msra.mxu0 %v95
  %117 = vmatprep.subr.bf16.mxu0 0
  %118 = vmatpush1.bf16.msra.mxu0 %v96
  %119 = vmatprep.subr.bf16.mxu0 0
  %120 = vmatpush1.bf16.msra.mxu0 %v97
  %121 = vmatprep.subr.bf16.mxu0 0
  %122 = vmatpush1.bf16.msra.mxu0 %v98
  %123 = vmatprep.subr.bf16.mxu0 0
  %124 = vmatpush1.bf16.msra.mxu0 0
  %125 = vmatprep.subr.bf16.mxu0 0
  %126 = vmatpush1.bf16.msra.mxu0 0
  %127 = vmatprep.subr.bf16.mxu0 0
  %128 = vmatpush1.bf16.msra.mxu0 0
  %129 = vmatprep.subr.bf16.mxu0 0
  %130 = vmatpush1.bf16.msra.mxu0 0
  %131 = vmatprep.subr.bf16.mxu0 0
  %132 = vmatpush1.bf16.msra.mxu0 0
  %133 = vmatprep.subr.bf16.mxu0 0
  %134 = vmatpush1.bf16.msra.mxu0 0
  %135 = vmatprep.subr.bf16.mxu0 0
  %136 = vmatpush1.bf16.msra.mxu0 0
  %137 = vmatprep.subr.bf16.mxu0 0
  %138 = vmatpush1.bf16.msra.mxu0 0
  %139 = vmatprep.mubr.bf16.mxu0 0
  %140 = vmatmul.mubr.bf16.gmra.mrb[0].mxu0 %v55
  %v141 = vpop.f32.mrb[0].mxu0
  %v142 = vadd.f32 0.0, %v141
  %v143 = vpop.f32.mrb[0].mxu0
  %v144 = vpop.f32.mrb[0].mxu0
  %v145 = vadd.f32 0.0, %v144
  %v146 = vpop.f32.mrb[0].mxu0
  %147 = vmatprep.mubr.bf16.mxu0 0
  %148 = vmatmul.mubr.bf16.gmra.mrb[0].mxu0 %v56
  %v149 = vpop.f32.mrb[0].mxu0
  %v150 = vadd.f32 0.0, %v149
  %v151 = vpop.f32.mrb[0].mxu0
  %v152 = vpop.f32.mrb[0].mxu0
  %v153 = vadd.f32 0.0, %v152
  %v154 = vpop.f32.mrb[0].mxu0
  %155 = vdwg.mxu0
  %v156 = vadd.f32 %v23, %v142
  %v157 = vadd.f32 %v24, %v145
  %v158 = vadd.f32 %v25, %v150
  %v159 = vadd.f32 %v26, %v153
  %160 = vst [vmem:[#allocation2] sm:$0xff] %v156
  %161 = vst [vmem:[#allocation2 + $0x8] sm:$0xff] %v157
  %162 = vst [vmem:[#allocation2 + $0x10] sm:$0xff] %v158
  %163 = vst [vmem:[#allocation2 + $0x18] sm:$0xff] %v159
  // Predicated region
  $region18: #{ntlbg_llm_forward.14} parent=0 // pred_check
    %p164 = pneg %p15
  $region19: #{ntlbg_llm_forward.14} parent=0 // pred_check_branch
    %166 = sbr.rel (%p164) target = $region21
  $region20: #{ntlbg_llm_forward.14} parent=0 // pred_region
    %v167 = vld [vmem:[#allocation2] sm:$0xff]
    %v168 = vld [vmem:[#allocation2 + $0x8] sm:$0xff]
    %v169 = vld [vmem:[#allocation2 + $0x10] sm:$0xff]
    %v170 = vld [vmem:[#allocation2 + $0x18] sm:$0xff]
    %v171 = vld [vmem:[%s2] sm:$0x1]
    %v173 = vlaneseq
    %v174 = vshrl.u32 %v173, 7
    %v175 = vsub.s32 0, %v174
    %v176 = vrot.slane %v171, %v175
    %v178 = vadd.f32 %v167, %v176
    %v179 = vadd.f32 %v168, %v176
    %v180 = vadd.f32 %v169, %v176
    %v181 = vadd.f32 %v170, %v176
    %182 = vst [vmem:[%s3] sm:$0xff] %v178
    %183 = vst [vmem:[%s3 + $0x8] sm:$0xff] %v179
    %184 = vst [vmem:[%s3 + $0x10] sm:$0xff] %v180
    %185 = vst [vmem:[%s3 + $0x18] sm:$0xff] %v181
  $region21: #{ntlbg_llm_forward.14} parent=0 // pred_fallthru
    _
  // Predicated region
  $region22: #{ntlbg_llm_forward.14} parent=0 // pred_check
    _
  $region23: #{ntlbg_llm_forward.14} parent=0 // pred_check_branch
    %187 = sbr.rel (0) target = $region25
  $region24: #{ntlbg_llm_forward.14} parent=0 // pred_region
    _
  $region25: #{ntlbg_llm_forward.14} parent=0 // pred_fallthru
    _
  // Predicated region
  $region26: #{ntlbg_llm_forward.14} parent=0 // pred_check
    _
  $region27: #{ntlbg_llm_forward.14} parent=0 // pred_check_branch
    %189 = sbr.rel (0) target = $region29
  $region28: #{ntlbg_llm_forward.14} parent=0 // pred_region
    _
  $region29: #{ntlbg_llm_forward.14} parent=0 // pred_fallthru
    _

// kernel: ntlbg_llm_forward.16
$region0: #{ntlbg_llm_forward.16}
  #allocation0 [shape = 'u32[]', space=smem, size = 0x4, offset = 0x4, fixed_abs, tag = 'smem constant byte address 0x4 - core index']
  #allocation1 [shape = 'u32[144,128]{1,0:T(1,128)}', space=vmem, size = 0x12000, scoped, tag = 'internal scratch']
  #allocation2 [shape = 'f32[32,32]{1,0:T(8,128)}', space=vmem, size = 0x4000, scoped, tag = 'scratch operand']
  %s0 = inlined_call_operand.vmem [shape: f32[32,32], index: 0, kind: input, shape index: {}]
  %s1 = inlined_call_operand.vmem [shape: bf16[32,128], index: 1, kind: input, shape index: {}]
  %s2 = inlined_call_operand.vmem [shape: f32[1,128], index: 2, kind: input, shape index: {}]
  %s3 = inlined_call_operand.vmem [shape: bf16[128,32], index: 3, kind: input, shape index: {}]
  %s4 = inlined_call_operand.vmem [shape: f32[1,32], index: 4, kind: input, shape index: {}]
  %s5 = inlined_call_operand.vmem [shape: f32[1,32], index: 5, kind: input, shape index: {}]
  %s6 = inlined_call_operand.vmem [shape: f32[1,32], index: 6, kind: input, shape index: {}]
  %s7 = inlined_call_operand.vmem [shape: f32[32,32], index: 7, kind: output, shape index: {}]
  %s8 = sld [smem:[#allocation0]]
  $region46: #{ntlbg_llm_forward.16} parent=0
    _
  %s10 = ssub.s32 1, %s8
  %s11 = scalar_select 0, %s10, %s8
  // Predicated region
  $region2: #{ntlbg_llm_forward.16} parent=0 // pred_check
    _
  $region3: #{ntlbg_llm_forward.16} parent=0 // pred_check_branch
    %13 = sbr.rel (0) target = $region5
  $region4: #{ntlbg_llm_forward.16} parent=0 // pred_region
    _
  $region5: #{ntlbg_llm_forward.16} parent=0 // pred_fallthru
    _
  // Predicated region
  $region6: #{ntlbg_llm_forward.16} parent=0 // pred_check
    _
  $region7: #{ntlbg_llm_forward.16} parent=0 // pred_check_branch
    %15 = sbr.rel (0) target = $region9
  $region8: #{ntlbg_llm_forward.16} parent=0 // pred_region
    _
  $region9: #{ntlbg_llm_forward.16} parent=0 // pred_fallthru
    _
  // Predicated region
  $region10: #{ntlbg_llm_forward.16} parent=0 // pred_check
    _
  $region11: #{ntlbg_llm_forward.16} parent=0 // pred_check_branch
    %17 = sbr.rel (0) target = $region13
  $region12: #{ntlbg_llm_forward.16} parent=0 // pred_region
    _
  $region13: #{ntlbg_llm_forward.16} parent=0 // pred_fallthru
    _
  // Predicated region
  $region14: #{ntlbg_llm_forward.16} parent=0 // pred_check
    _
  $region15: #{ntlbg_llm_forward.16} parent=0 // pred_check_branch
    %19 = sbr.rel (0) target = $region17
  $region16: #{ntlbg_llm_forward.16} parent=0 // pred_region
    _
  $region17: #{ntlbg_llm_forward.16} parent=0 // pred_fallthru
    _
  // Predicated region
  $region18: #{ntlbg_llm_forward.16} parent=0 // pred_check
    _
  $region19: #{ntlbg_llm_forward.16} parent=0 // pred_check_branch
    %21 = sbr.rel (0) target = $region21
  $region20: #{ntlbg_llm_forward.16} parent=0 // pred_region
    _
  $region21: #{ntlbg_llm_forward.16} parent=0 // pred_fallthru
    _
  // Predicated region
  $region22: #{ntlbg_llm_forward.16} parent=0 // pred_check
    _
  $region23: #{ntlbg_llm_forward.16} parent=0 // pred_check_branch
    %23 = sbr.rel (0) target = $region25
  $region24: #{ntlbg_llm_forward.16} parent=0 // pred_region
    _
  $region25: #{ntlbg_llm_forward.16} parent=0 // pred_fallthru
    _
  // Predicated region
  $region26: #{ntlbg_llm_forward.16} parent=0 // pred_check
    _
  $region27: #{ntlbg_llm_forward.16} parent=0 // pred_check_branch
    %25 = sbr.rel (0) target = $region29
  $region28: #{ntlbg_llm_forward.16} parent=0 // pred_region
    _
  $region29: #{ntlbg_llm_forward.16} parent=0 // pred_fallthru
    _
  %p27 = scmp.eq.s32.totalorder 0, 0
  // Predicated region
  $region30: #{ntlbg_llm_forward.16} parent=0 // pred_check
    %p28 = pneg %p27
  $region31: #{ntlbg_llm_forward.16} parent=0 // pred_check_branch
    %30 = sbr.rel (%p28) target = $region33
  $region32: #{ntlbg_llm_forward.16} parent=0 // pred_region
    %vm31 = vcmask 261120
    %32 = vst.msk [vmem:[#allocation2] sm:$0xff] %vm31, 0.0
    %33 = vst.msk [vmem:[#allocation2 + $0x8] sm:$0xff] %vm31, 0.0
    %34 = vst.msk [vmem:[#allocation2 + $0x10] sm:$0xff] %vm31, 0.0
    %35 = vst.msk [vmem:[#allocation2 + $0x18] sm:$0xff] %vm31, 0.0
  $region33: #{ntlbg_llm_forward.16} parent=0 // pred_fallthru
    _
  %v36 = vld [vmem:[%s0] sm:$0xff]
  %v37 = vld [vmem:[%s0 + $0x8] sm:$0xff]
  %v38 = vld [vmem:[%s0 + $0x10] sm:$0xff]
  %v39 = vld [vmem:[%s0 + $0x18] sm:$0xff]
  %v40 = vpack.c.bf16 %v37, %v36
  %v41 = vpack.c.bf16 %v39, %v38
  %v42 = vld [vmem:[%s1] sm:$0xf]
  %v43 = vld [vmem:[%s1 + $0x4] sm:$0xf]
  %v44 = vld [vmem:[%s1 + $0x8] sm:$0xf]
  %v45 = vld [vmem:[%s1 + $0xc] sm:$0xf]
  %v46 = vld [vmem:[%s2] sm:$0x1]
  %v48 = vlaneseq
  %v49 = vshrl.u32 %v48, 7
  %v50 = vsub.s32 0, %v49
  %v51 = vrot.slane %v46, %v50
  %v57 = vunpack.c.l.b16 %v42
  %v58 = vunpack.c.l.b16 %v43
  %v59 = vunpack.c.l.b16 %v44
  %v60 = vunpack.c.l.b16 %v45
  %v61 = vpack.c.b16 %v58, %v57
  %v62 = vpack.c.b16 %v60, %v59
  %vm65 = vcmask 261120
  %v67 = vsel %vm65, %v40, 0
  %v70 = vsel %vm65, %v41, 0
  %72 = vmatprep.subr.bf16.mxu0 0
  %73 = vmatpush1.bf16.msra.mxu0 %v61
  %74 = vmatprep.subr.bf16.mxu0 0
  %75 = vmatpush1.bf16.msra.mxu0 %v62
  %76 = vmatprep.subr.bf16.mxu0 0
  %77 = vmatpush1.bf16.msra.mxu0 0
  %78 = vmatprep.subr.bf16.mxu0 0
  %79 = vmatpush1.bf16.msra.mxu0 0
  %80 = vmatprep.subr.bf16.mxu0 0
  %81 = vmatpush1.bf16.msra.mxu0 0
  %82 = vmatprep.subr.bf16.mxu0 0
  %83 = vmatpush1.bf16.msra.mxu0 0
  %84 = vmatprep.subr.bf16.mxu0 0
  %85 = vmatpush1.bf16.msra.mxu0 0
  %86 = vmatprep.subr.bf16.mxu0 0
  %87 = vmatpush1.bf16.msra.mxu0 0
  %88 = vmatprep.subr.bf16.mxu0 0
  %89 = vmatpush1.bf16.msra.mxu0 0
  %90 = vmatprep.subr.bf16.mxu0 0
  %91 = vmatpush1.bf16.msra.mxu0 0
  %92 = vmatprep.subr.bf16.mxu0 0
  %93 = vmatpush1.bf16.msra.mxu0 0
  %94 = vmatprep.subr.bf16.mxu0 0
  %95 = vmatpush1.bf16.msra.mxu0 0
  %96 = vmatprep.subr.bf16.mxu0 0
  %97 = vmatpush1.bf16.msra.mxu0 0
  %98 = vmatprep.subr.bf16.mxu0 0
  %99 = vmatpush1.bf16.msra.mxu0 0
  %100 = vmatprep.subr.bf16.mxu0 0
  %101 = vmatpush1.bf16.msra.mxu0 0
  %102 = vmatprep.subr.bf16.mxu0 0
  %103 = vmatpush1.bf16.msra.mxu0 0
  %104 = vmatprep.mubr.bf16.mxu0 0
  %105 = vmatmul.mubr.bf16.gmra.mrb[0].mxu0 %v67
  %v106 = vpop.f32.mrb[0].mxu0
  %v107 = vadd.f32 %v51, %v106
  %v108 = vpop.f32.mrb[0].mxu0
  %v109 = vpop.f32.mrb[0].mxu0
  %v110 = vadd.f32 %v51, %v109
  %v111 = vpop.f32.mrb[0].mxu0
  %112 = vmatprep.mubr.bf16.mxu0 0
  %113 = vmatmul.mubr.bf16.gmra.mrb[0].mxu0 %v70
  %v114 = vpop.f32.mrb[0].mxu0
  %v115 = vadd.f32 %v51, %v114
  %v116 = vpop.f32.mrb[0].mxu0
  %v117 = vpop.f32.mrb[0].mxu0
  %v118 = vadd.f32 %v51, %v117
  %v119 = vpop.f32.mrb[0].mxu0
  %120 = vdwg.mxu0
  %v121 = vmax.f32 %v107, 0.0
  %v122 = vmax.f32 %v110, 0.0
  %v123 = vmax.f32 %v115, 0.0
  %v124 = vmax.f32 %v118, 0.0
  %v125 = vld [vmem:[#allocation2] sm:$0xff]
  %v126 = vld [vmem:[#allocation2 + $0x8] sm:$0xff]
  %v127 = vld [vmem:[#allocation2 + $0x10] sm:$0xff]
  %v128 = vld [vmem:[#allocation2 + $0x18] sm:$0xff]
  %v129 = vpack.c.bf16 %v122, %v121
  %v130 = vpack.c.bf16 %v124, %v123
  %v131 = vld [vmem:[%s3] sm:$0xf]
  %v132 = vld [vmem:[%s3 + $0x4] sm:$0xf]
  %v133 = vld [vmem:[%s3 + $0x8] sm:$0xf]
  %v134 = vld [vmem:[%s3 + $0xc] sm:$0xf]
  %v135 = vld [vmem:[%s3 + $0x10] sm:$0xf]
  %v136 = vld [vmem:[%s3 + $0x14] sm:$0xf]
  %v137 = vld [vmem:[%s3 + $0x18] sm:$0xf]
  %v138 = vld [vmem:[%s3 + $0x1c] sm:$0xf]
  %v139 = vld [vmem:[%s3 + $0x20] sm:$0xf]
  %v140 = vld [vmem:[%s3 + $0x24] sm:$0xf]
  %v141 = vld [vmem:[%s3 + $0x28] sm:$0xf]
  %v142 = vld [vmem:[%s3 + $0x2c] sm:$0xf]
  %v143 = vld [vmem:[%s3 + $0x30] sm:$0xf]
  %v144 = vld [vmem:[%s3 + $0x34] sm:$0xf]
  %v145 = vld [vmem:[%s3 + $0x38] sm:$0xf]
  %v146 = vld [vmem:[%s3 + $0x3c] sm:$0xf]
  %v163 = vunpack.c.l.b16 %v131
  %v164 = vunpack.c.l.b16 %v132
  %v165 = vunpack.c.l.b16 %v133
  %v166 = vunpack.c.l.b16 %v134
  %v167 = vunpack.c.l.b16 %v135
  %v168 = vunpack.c.l.b16 %v136
  %v169 = vunpack.c.l.b16 %v137
  %v170 = vunpack.c.l.b16 %v138
  %v171 = vunpack.c.l.b16 %v139
  %v172 = vunpack.c.l.b16 %v140
  %v173 = vunpack.c.l.b16 %v141
  %v174 = vunpack.c.l.b16 %v142
  %v175 = vunpack.c.l.b16 %v143
  %v176 = vunpack.c.l.b16 %v144
  %v177 = vunpack.c.l.b16 %v145
  %v178 = vunpack.c.l.b16 %v146
  %v179 = vpack.c.b16 %v164, %v163
  %v180 = vpack.c.b16 %v166, %v165
  %v181 = vpack.c.b16 %v168, %v167
  %v182 = vpack.c.b16 %v170, %v169
  %v183 = vpack.c.b16 %v172, %v171
  %v184 = vpack.c.b16 %v174, %v173
  %v185 = vpack.c.b16 %v176, %v175
  %v186 = vpack.c.b16 %v178, %v177
  %195 = vmatprep.subr.bf16.mxu0 0
  %196 = vmatpush1.bf16.msra.mxu0 %v179
  %197 = vmatprep.subr.bf16.mxu0 0
  %198 = vmatpush1.bf16.msra.mxu0 %v180
  %199 = vmatprep.subr.bf16.mxu0 0
  %200 = vmatpush1.bf16.msra.mxu0 %v181
  %201 = vmatprep.subr.bf16.mxu0 0
  %202 = vmatpush1.bf16.msra.mxu0 %v182
  %203 = vmatprep.subr.bf16.mxu0 0
  %204 = vmatpush1.bf16.msra.mxu0 %v183
  %205 = vmatprep.subr.bf16.mxu0 0
  %206 = vmatpush1.bf16.msra.mxu0 %v184
  %207 = vmatprep.subr.bf16.mxu0 0
  %208 = vmatpush1.bf16.msra.mxu0 %v185
  %209 = vmatprep.subr.bf16.mxu0 0
  %210 = vmatpush1.bf16.msra.mxu0 %v186
  %211 = vmatprep.subr.bf16.mxu0 0
  %212 = vmatpush1.bf16.msra.mxu0 0
  %213 = vmatprep.subr.bf16.mxu0 0
  %214 = vmatpush1.bf16.msra.mxu0 0
  %215 = vmatprep.subr.bf16.mxu0 0
  %216 = vmatpush1.bf16.msra.mxu0 0
  %217 = vmatprep.subr.bf16.mxu0 0
  %218 = vmatpush1.bf16.msra.mxu0 0
  %219 = vmatprep.subr.bf16.mxu0 0
  %220 = vmatpush1.bf16.msra.mxu0 0
  %221 = vmatprep.subr.bf16.mxu0 0
  %222 = vmatpush1.bf16.msra.mxu0 0
  %223 = vmatprep.subr.bf16.mxu0 0
  %224 = vmatpush1.bf16.msra.mxu0 0
  %225 = vmatprep.subr.bf16.mxu0 0
  %226 = vmatpush1.bf16.msra.mxu0 0
  %227 = vmatprep.mubr.bf16.mxu0 0
  %228 = vmatmul.mubr.bf16.gmra.mrb[0].mxu0 %v129
  %v229 = vpop.f32.mrb[0].mxu0
  %v230 = vadd.f32 0.0, %v229
  %v231 = vpop.f32.mrb[0].mxu0
  %v232 = vpop.f32.mrb[0].mxu0
  %v233 = vadd.f32 0.0, %v232
  %v234 = vpop.f32.mrb[0].mxu0
  %235 = vmatprep.mubr.bf16.mxu0 0
  %236 = vmatmul.mubr.bf16.gmra.mrb[0].mxu0 %v130
  %v237 = vpop.f32.mrb[0].mxu0
  %v238 = vadd.f32 0.0, %v237
  %v239 = vpop.f32.mrb[0].mxu0
  %v240 = vpop.f32.mrb[0].mxu0
  %v241 = vadd.f32 0.0, %v240
  %v242 = vpop.f32.mrb[0].mxu0
  %243 = vdwg.mxu0
  %v244 = vadd.f32 %v125, %v230
  %v245 = vadd.f32 %v126, %v233
  %v246 = vadd.f32 %v127, %v238
  %v247 = vadd.f32 %v128, %v241
  %248 = vst.msk [vmem:[#allocation2] sm:$0xff] %vm65, %v244
  %249 = vst.msk [vmem:[#allocation2 + $0x8] sm:$0xff] %vm65, %v245
  %250 = vst.msk [vmem:[#allocation2 + $0x10] sm:$0xff] %vm65, %v246
  %251 = vst.msk [vmem:[#allocation2 + $0x18] sm:$0xff] %vm65, %v247
  // Predicated region
  $region34: #{ntlbg_llm_forward.16} parent=0 // pred_check
    %p252 = pneg %p27
  $region35: #{ntlbg_llm_forward.16} parent=0 // pred_check_branch
    %254 = sbr.rel (%p252) target = $region37
  $region36: #{ntlbg_llm_forward.16} parent=0 // pred_region
    %v255 = vld [vmem:[#allocation2] sm:$0xff]
    %v256 = vld [vmem:[#allocation2 + $0x8] sm:$0xff]
    %v257 = vld [vmem:[#allocation2 + $0x10] sm:$0xff]
    %v258 = vld [vmem:[#allocation2 + $0x18] sm:$0xff]
    %v259 = vld [vmem:[%s4] sm:$0x1]
    %v261 = vlaneseq
    %v262 = vshrl.u32 %v261, 7
    %v263 = vsub.s32 0, %v262
    %v264 = vrot.slane %v259, %v263
    %v266 = vadd.f32 %v255, %v264
    %v267 = vadd.f32 %v256, %v264
    %v268 = vadd.f32 %v257, %v264
    %v269 = vadd.f32 %v258, %v264
    %v270 = vld [vmem:[%s0] sm:$0xff]
    %v271 = vld [vmem:[%s0 + $0x8] sm:$0xff]
    %v272 = vld [vmem:[%s0 + $0x10] sm:$0xff]
    %v273 = vld [vmem:[%s0 + $0x18] sm:$0xff]
    %v274 = vadd.f32 %v266, %v270
    %v275 = vadd.f32 %v267, %v271
    %v276 = vadd.f32 %v268, %v272
    %v277 = vadd.f32 %v269, %v273
    %v278 = vsel %vm65, %v274, 0.0
    %279 = vadd.xlane.f32.xlu0 %v278
    %v280 = vpop.xlane.xlu0 %279
    %v281 = vsel %vm65, %v275, 0.0
    %282 = vadd.xlane.f32.xlu0 %v281
    %v283 = vpop.xlane.xlu0 %282
    %v284 = vsel %vm65, %v276, 0.0
    %285 = vadd.xlane.f32.xlu0 %v284
    %v286 = vpop.xlane.xlu0 %285
    %v287 = vsel %vm65, %v277, 0.0
    %288 = vadd.xlane.f32.xlu0 %v287
    %v289 = vpop.xlane.xlu0 %288
    %v290 = vrcp.pop 32.0
    %v291 = vmul.f32 %v280, %v290
    %v292 = vmul.f32 %v283, %v290
    %v293 = vmul.f32 %v286, %v290
    %v294 = vmul.f32 %v289, %v290
    %v295 = vsub.f32 %v274, %v291
    %v296 = vsub.f32 %v275, %v292
    %v297 = vsub.f32 %v276, %v293
    %v298 = vsub.f32 %v277, %v294
    %v299 = vmul.f32 %v295, %v295
    %v300 = vmul.f32 %v296, %v296
    %v301 = vmul.f32 %v297, %v297
    %v302 = vmul.f32 %v298, %v298
    %v303 = vsel %vm65, %v299, 0.0
    %304 = vadd.xlane.f32.xlu0 %v303
    %v305 = vpop.xlane.xlu0 %304
    %v306 = vsel %vm65, %v300, 0.0
    %307 = vadd.xlane.f32.xlu0 %v306
    %v308 = vpop.xlane.xlu0 %307
    %v309 = vsel %vm65, %v301, 0.0
    %310 = vadd.xlane.f32.xlu0 %v309
    %v311 = vpop.xlane.xlu0 %310
    %v312 = vsel %vm65, %v302, 0.0
    %313 = vadd.xlane.f32.xlu0 %v312
    %v314 = vpop.xlane.xlu0 %313
    %v315 = vmul.f32 %v305, %v290
    %v316 = vmul.f32 %v308, %v290
    %v317 = vmul.f32 %v311, %v290
    %v318 = vmul.f32 %v314, %v290
    %v319 = vadd.f32 %v315, 1e-05
    %v320 = vadd.f32 %v316, 1e-05
    %v321 = vadd.f32 %v317, 1e-05
    %v322 = vadd.f32 %v318, 1e-05
    %v323 = vrsqrt.pop %v319
    %v324 = vrsqrt.pop %v320
    %v325 = vrsqrt.pop %v321
    %v326 = vrsqrt.pop %v322
    %v327 = vmul.f32 %v295, %v323
    %v328 = vmul.f32 %v296, %v324
    %v329 = vmul.f32 %v297, %v325
    %v330 = vmul.f32 %v298, %v326
    %v331 = vld [vmem:[%s5] sm:$0x1]
    %v333 = vlaneseq
    %v334 = vshrl.u32 %v333, 7
    %v335 = vsub.s32 0, %v334
    %v336 = vrot.slane %v331, %v335
    %v338 = vmul.f32 %v327, %v336
    %v339 = vmul.f32 %v328, %v336
    %v340 = vmul.f32 %v329, %v336
    %v341 = vmul.f32 %v330, %v336
    %v342 = vld [vmem:[%s6] sm:$0x1]
    %v344 = vlaneseq
    %v345 = vshrl.u32 %v344, 7
    %v346 = vsub.s32 0, %v345
    %v347 = vrot.slane %v342, %v346
    %v349 = vadd.f32 %v338, %v347
    %v350 = vadd.f32 %v339, %v347
    %v351 = vadd.f32 %v340, %v347
    %v352 = vadd.f32 %v341, %v347
    %353 = vst.msk [vmem:[%s7] sm:$0xff] %vm65, %v349
    %354 = vst.msk [vmem:[%s7 + $0x8] sm:$0xff] %vm65, %v350
    %355 = vst.msk [vmem:[%s7 + $0x10] sm:$0xff] %vm65, %v351
    %356 = vst.msk [vmem:[%s7 + $0x18] sm:$0xff] %vm65, %v352
  $region37: #{ntlbg_llm_forward.16} parent=0 // pred_fallthru
    _
  // Predicated region
  $region38: #{ntlbg_llm_forward.16} parent=0 // pred_check
    _
  $region39: #{ntlbg_llm_forward.16} parent=0 // pred_check_branch
    %358 = sbr.rel (0) target = $region41
  $region40: #{ntlbg_llm_forward.16} parent=0 // pred_region
    _
  $region41: #{ntlbg_llm_forward.16} parent=0 // pred_fallthru
    _
  // Predicated region
  $region42: #{ntlbg_llm_forward.16} parent=0 // pred_check
    _
  $region43: #{ntlbg_llm_forward.16} parent=0 // pred_check_branch
    %360 = sbr.rel (0) target = $region45
  $region44: #{ntlbg_llm_forward.16} parent=0 // pred_region
    _
  $region45: #{ntlbg_llm_forward.16} parent=0 // pred_fallthru
    _

// kernel: ntlbg_llm_forward.20
$region0: #{ntlbg_llm_forward.20}
  #allocation0 [shape = 'u32[]', space=smem, size = 0x4, offset = 0x4, fixed_abs, tag = 'smem constant byte address 0x4 - core index']
  #allocation1 [shape = 'u32[144,128]{1,0:T(1,128)}', space=vmem, size = 0x12000, scoped, tag = 'internal scratch']
  #allocation2 [shape = 'f32[16,128]{1,0:T(8,128)}', space=vmem, size = 0x2000, scoped, tag = 'scratch operand']
  %s0 = inlined_call_operand.vmem [shape: bf16[16,128], index: 0, kind: input, shape index: {}]
  %s1 = inlined_call_operand.vmem [shape: bf16[128,128], index: 1, kind: input, shape index: {}]
  %s2 = inlined_call_operand.vmem [shape: f32[1,128], index: 2, kind: input, shape index: {}]
  %s3 = inlined_call_operand.vmem [shape: f32[16,128], index: 3, kind: output, shape index: {}]
  %s4 = sld [smem:[#allocation0]]
  $region30: #{ntlbg_llm_forward.20} parent=0
    _
  %s6 = ssub.s32 1, %s4
  %s7 = scalar_select 0, %s6, %s4
  // Predicated region
  $region2: #{ntlbg_llm_forward.20} parent=0 // pred_check
    _
  $region3: #{ntlbg_llm_forward.20} parent=0 // pred_check_branch
    %9 = sbr.rel (0) target = $region5
  $region4: #{ntlbg_llm_forward.20} parent=0 // pred_region
    _
  $region5: #{ntlbg_llm_forward.20} parent=0 // pred_fallthru
    _
  // Predicated region
  $region6: #{ntlbg_llm_forward.20} parent=0 // pred_check
    _
  $region7: #{ntlbg_llm_forward.20} parent=0 // pred_check_branch
    %11 = sbr.rel (0) target = $region9
  $region8: #{ntlbg_llm_forward.20} parent=0 // pred_region
    _
  $region9: #{ntlbg_llm_forward.20} parent=0 // pred_fallthru
    _
  // Predicated region
  $region10: #{ntlbg_llm_forward.20} parent=0 // pred_check
    _
  $region11: #{ntlbg_llm_forward.20} parent=0 // pred_check_branch
    %13 = sbr.rel (0) target = $region13
  $region12: #{ntlbg_llm_forward.20} parent=0 // pred_region
    _
  $region13: #{ntlbg_llm_forward.20} parent=0 // pred_fallthru
    _
  %p15 = scmp.eq.s32.totalorder 0, 0
  // Predicated region
  $region14: #{ntlbg_llm_forward.20} parent=0 // pred_check
    %p16 = pneg %p15
  $region15: #{ntlbg_llm_forward.20} parent=0 // pred_check_branch
    %18 = sbr.rel (%p16) target = $region17
  $region16: #{ntlbg_llm_forward.20} parent=0 // pred_region
    %19 = vst [vmem:[#allocation2] sm:$0xff] 0.0
    %20 = vst [vmem:[#allocation2 + $0x8] sm:$0xff] 0.0
  $region17: #{ntlbg_llm_forward.20} parent=0 // pred_fallthru
    _
  %v21 = vld [vmem:[#allocation2] sm:$0xff]
  %v22 = vld [vmem:[#allocation2 + $0x8] sm:$0xff]
  %v23 = vld [vmem:[%s0] sm:$0xf]
  %v24 = vld [vmem:[%s0 + $0x4] sm:$0xf]
  %v25 = vld [vmem:[%s1] sm:$0xf]
  %v26 = vld [vmem:[%s1 + $0x4] sm:$0xf]
  %v27 = vld [vmem:[%s1 + $0x8] sm:$0xf]
  %v28 = vld [vmem:[%s1 + $0xc] sm:$0xf]
  %v29 = vld [vmem:[%s1 + $0x10] sm:$0xf]
  %v30 = vld [vmem:[%s1 + $0x14] sm:$0xf]
  %v31 = vld [vmem:[%s1 + $0x18] sm:$0xf]
  %v32 = vld [vmem:[%s1 + $0x1c] sm:$0xf]
  %v33 = vld [vmem:[%s1 + $0x20] sm:$0xf]
  %v34 = vld [vmem:[%s1 + $0x24] sm:$0xf]
  %v35 = vld [vmem:[%s1 + $0x28] sm:$0xf]
  %v36 = vld [vmem:[%s1 + $0x2c] sm:$0xf]
  %v37 = vld [vmem:[%s1 + $0x30] sm:$0xf]
  %v38 = vld [vmem:[%s1 + $0x34] sm:$0xf]
  %v39 = vld [vmem:[%s1 + $0x38] sm:$0xf]
  %v40 = vld [vmem:[%s1 + $0x3c] sm:$0xf]
  %v43 = vunpack.c.l.b16 %v23
  %v44 = vunpack.c.l.b16 %v24
  %v45 = vpack.c.b16 %v44, %v43
  %v63 = vunpack.c.l.b16 %v25
  %v64 = vunpack.c.l.b16 %v26
  %v65 = vunpack.c.l.b16 %v27
  %v66 = vunpack.c.l.b16 %v28
  %v67 = vunpack.c.l.b16 %v29
  %v68 = vunpack.c.l.b16 %v30
  %v69 = vunpack.c.l.b16 %v31
  %v70 = vunpack.c.l.b16 %v32
  %v71 = vunpack.c.l.b16 %v33
  %v72 = vunpack.c.l.b16 %v34
  %v73 = vunpack.c.l.b16 %v35
  %v74 = vunpack.c.l.b16 %v36
  %v75 = vunpack.c.l.b16 %v37
  %v76 = vunpack.c.l.b16 %v38
  %v77 = vunpack.c.l.b16 %v39
  %v78 = vunpack.c.l.b16 %v40
  %v79 = vpack.c.b16 %v64, %v63
  %v80 = vpack.c.b16 %v66, %v65
  %v81 = vpack.c.b16 %v68, %v67
  %v82 = vpack.c.b16 %v70, %v69
  %v83 = vpack.c.b16 %v72, %v71
  %v84 = vpack.c.b16 %v74, %v73
  %v85 = vpack.c.b16 %v76, %v75
  %v86 = vpack.c.b16 %v78, %v77
  %95 = vmatprep.subr.bf16.mxu0 0
  %96 = vmatpush1.bf16.msra.mxu0 %v79
  %97 = vmatprep.subr.bf16.mxu0 0
  %98 = vmatpush1.bf16.msra.mxu0 %v80
  %99 = vmatprep.subr.bf16.mxu0 0
  %100 = vmatpush1.bf16.msra.mxu0 %v81
  %101 = vmatprep.subr.bf16.mxu0 0
  %102 = vmatpush1.bf16.msra.mxu0 %v82
  %103 = vmatprep.subr.bf16.mxu0 0
  %104 = vmatpush1.bf16.msra.mxu0 %v83
  %105 = vmatprep.subr.bf16.mxu0 0
  %106 = vmatpush1.bf16.msra.mxu0 %v84
  %107 = vmatprep.subr.bf16.mxu0 0
  %108 = vmatpush1.bf16.msra.mxu0 %v85
  %109 = vmatprep.subr.bf16.mxu0 0
  %110 = vmatpush1.bf16.msra.mxu0 %v86
  %111 = vmatprep.subr.bf16.mxu0 0
  %112 = vmatpush1.bf16.msra.mxu0 0
  %113 = vmatprep.subr.bf16.mxu0 0
  %114 = vmatpush1.bf16.msra.mxu0 0
  %115 = vmatprep.subr.bf16.mxu0 0
  %116 = vmatpush1.bf16.msra.mxu0 0
  %117 = vmatprep.subr.bf16.mxu0 0
  %118 = vmatpush1.bf16.msra.mxu0 0
  %119 = vmatprep.subr.bf16.mxu0 0
  %120 = vmatpush1.bf16.msra.mxu0 0
  %121 = vmatprep.subr.bf16.mxu0 0
  %122 = vmatpush1.bf16.msra.mxu0 0
  %123 = vmatprep.subr.bf16.mxu0 0
  %124 = vmatpush1.bf16.msra.mxu0 0
  %125 = vmatprep.subr.bf16.mxu0 0
  %126 = vmatpush1.bf16.msra.mxu0 0
  %127 = vmatprep.mubr.bf16.mxu0 0
  %128 = vmatmul.mubr.bf16.gmra.mrb[0].mxu0 %v45
  %v129 = vpop.f32.mrb[0].mxu0
  %v130 = vadd.f32 0.0, %v129
  %v131 = vpop.f32.mrb[0].mxu0
  %v132 = vpop.f32.mrb[0].mxu0
  %v133 = vadd.f32 0.0, %v132
  %v134 = vpop.f32.mrb[0].mxu0
  %135 = vdwg.mxu0
  %v136 = vadd.f32 %v21, %v130
  %v137 = vadd.f32 %v22, %v133
  %138 = vst [vmem:[#allocation2] sm:$0xff] %v136
  %139 = vst [vmem:[#allocation2 + $0x8] sm:$0xff] %v137
  // Predicated region
  $region18: #{ntlbg_llm_forward.20} parent=0 // pred_check
    %p140 = pneg %p15
  $region19: #{ntlbg_llm_forward.20} parent=0 // pred_check_branch
    %142 = sbr.rel (%p140) target = $region21
  $region20: #{ntlbg_llm_forward.20} parent=0 // pred_region
    %v143 = vld [vmem:[#allocation2] sm:$0xff]
    %v144 = vld [vmem:[#allocation2 + $0x8] sm:$0xff]
    %v145 = vld [vmem:[%s2] sm:$0x1]
    %v147 = vlaneseq
    %v148 = vshrl.u32 %v147, 7
    %v149 = vsub.s32 0, %v148
    %v150 = vrot.slane %v145, %v149
    %v152 = vadd.f32 %v143, %v150
    %v153 = vadd.f32 %v144, %v150
    %v154 = vmax.f32 %v152, 0.0
    %v155 = vmax.f32 %v153, 0.0
    %156 = vst [vmem:[%s3] sm:$0xff] %v154
    %157 = vst [vmem:[%s3 + $0x8] sm:$0xff] %v155
  $region21: #{ntlbg_llm_forward.20} parent=0 // pred_fallthru
    _
  // Predicated region
  $region22: #{ntlbg_llm_forward.20} parent=0 // pred_check
    _
  $region23: #{ntlbg_llm_forward.20} parent=0 // pred_check_branch
    %159 = sbr.rel (0) target = $region25
  $region24: #{ntlbg_llm_forward.20} parent=0 // pred_region
    _
  $region25: #{ntlbg_llm_forward.20} parent=0 // pred_fallthru
    _
  // Predicated region
  $region26: #{ntlbg_llm_forward.20} parent=0 // pred_check
    _
  $region27: #{ntlbg_llm_forward.20} parent=0 // pred_check_branch
    %161 = sbr.rel (0) target = $region29
  $region28: #{ntlbg_llm_forward.20} parent=0 // pred_region
    _
  $region29: #{ntlbg_llm_forward.20} parent=0 // pred_fallthru
    _

// kernel: ntlbg_llm_forward.15
$region0: #{ntlbg_llm_forward.15}
  #allocation0 [shape = 'u32[]', space=smem, size = 0x4, offset = 0x4, fixed_abs, tag = 'smem constant byte address 0x4 - core index']
  #allocation1 [shape = 'u32[144,128]{1,0:T(1,128)}', space=vmem, size = 0x12000, scoped, tag = 'internal scratch']
  %s0 = inlined_call_operand.vmem [shape: f32[2,15,96], index: 0, kind: input, shape index: {}]
  %s1 = inlined_call_operand.vmem [shape: f32[2,15,32], index: 1, kind: input, shape index: {}]
  %s2 = inlined_call_operand.vmem [shape: bf16[32,32], index: 2, kind: input, shape index: {}]
  %s3 = inlined_call_operand.vmem [shape: f32[1,32], index: 3, kind: input, shape index: {}]
  %s4 = inlined_call_operand.vmem [shape: f32[1,32], index: 4, kind: input, shape index: {}]
  %s5 = inlined_call_operand.vmem [shape: f32[1,32], index: 5, kind: input, shape index: {}]
  %s6 = inlined_call_operand.vmem [shape: f32[2,15,32], index: 6, kind: output, shape index: {}]
  %s7 = sld [smem:[#allocation0]]
  $region57: #{ntlbg_llm_forward.15} parent=0
    _
  %s9 = ssub.s32 1, %s7
  %s10 = scalar_select 0, %s9, %s7
  loop: start=0, step=1, limit=4
  $region2: #{ntlbg_llm_forward.15} parent=0 // loop_pre_header
    _
  $region3: #{ntlbg_llm_forward.15} parent=0 // loop_header
    %s12 = sphi 0, %s16
    %p13 = scmp.ge.s32.totalorder %s12, 4
    %s22 = sphi 0, %s24
    %s25 = sphi 0, %s22
    %s26 = sphi 0, %s25
    %s42 = sphi 0, %s26
    %s48 = sphi 0, %s50
    %s51 = sphi 0, %s48
    %s52 = sphi 0, %s51
    %s68 = sphi 0, %s52
    %s72 = sphi 0, %s72
    %s74 = sphi 0, %s72
    %s75 = sphi 0, %s74
    %s89 = sphi 0, %s75
    %s93 = sphi 0, %s93
    %s95 = sphi 0, %s93
    %s96 = sphi 0, %s95
    %s110 = sphi 0, %s96
    %s114 = sphi 0, %s114
    %s116 = sphi 0, %s114
    %s117 = sphi 0, %s116
    %s131 = sphi 0, %s117
    %s135 = sphi 0, %s135
    %s137 = sphi 0, %s135
    %s138 = sphi 0, %s137
    %s152 = sphi 0, %s138
    %s158 = sphi 0, %s160
    %s161 = sphi 0, %s158
    %s162 = sphi 0, %s161
    %s178 = sphi 0, %s162
  $region4: #{ntlbg_llm_forward.15} parent=0 // loop_header_branch
    %15 = sbr.rel (%p13) target = $region8
  $region5: #{ntlbg_llm_forward.15} parent=0 // loop_body
    %s17 = ssub.s32 %s12, 1
    %s18 = ssub.s32 %s12, 2
    %s19 = sadd.s32 %s12, 1
    %s20 = ssub.s32 %s12, %s19
    %p21 = scmp.eq.s32.totalorder %s20, 0
    %s23 = sadd.s32 %s22, 1
    %s24 = scalar_select %p21, %s22, %s23
    %p27 = pneg %p21
    %p28 = scmp.eq.s32.totalorder %s12, 1
    %p29 = por %p27, %p28
    %p30 = scmp.ne.s32.totalorder %s22, %s25
    %p31 = scmp.eq.s32.totalorder %s12, 0
    %p32 = por %p30, %p31
    %p33 = scmp.ne.s32.totalorder %s22, %s25
    %p34 = scmp.eq.s32.totalorder %s17, 1
    %p35 = por %p33, %p34
    %p36 = scmp.ne.s32.totalorder %s25, %s26
    %p37 = scmp.eq.s32.totalorder %s17, 0
    %p38 = por %p36, %p37
    %p39 = scmp.ne.s32.totalorder %s25, %s26
    %p40 = scmp.eq.s32.totalorder %s18, 1
    %p41 = por %p39, %p40
    %p43 = scmp.ne.s32.totalorder %s26, %s42
    %p44 = scmp.eq.s32.totalorder %s18, 0
    %p45 = por %p43, %p44
    %s46 = ssub.s32 %s12, %s19
    %p47 = scmp.eq.s32.totalorder %s46, 0
    %s49 = sadd.s32 %s48, 1
    %s50 = scalar_select %p47, %s48, %s49
    %p53 = pneg %p47
    %p54 = scmp.eq.s32.totalorder %s12, 1
    %p55 = por %p53, %p54
    %p56 = scmp.ne.s32.totalorder %s48, %s51
    %p57 = scmp.eq.s32.totalorder %s12, 0
    %p58 = por %p56, %p57
    %p59 = scmp.ne.s32.totalorder %s48, %s51
    %p60 = scmp.eq.s32.totalorder %s17, 1
    %p61 = por %p59, %p60
    %p62 = scmp.ne.s32.totalorder %s51, %s52
    %p63 = scmp.eq.s32.totalorder %s17, 0
    %p64 = por %p62, %p63
    %p65 = scmp.ne.s32.totalorder %s51, %s52
    %p66 = scmp.eq.s32.totalorder %s18, 1
    %p67 = por %p65, %p66
    %p69 = scmp.ne.s32.totalorder %s52, %s68
    %p70 = scmp.eq.s32.totalorder %s18, 0
    %p71 = por %p69, %p70
    %s73 = sadd.s32 %s72, 1
    %p76 = scmp.eq.s32.totalorder %s12, 1
    %p77 = scmp.ne.s32.totalorder %s72, %s74
    %p78 = scmp.eq.s32.totalorder %s12, 0
    %p79 = por %p77, %p78
    %p80 = scmp.ne.s32.totalorder %s72, %s74
    %p81 = scmp.eq.s32.totalorder %s17, 1
    %p82 = por %p80, %p81
    %p83 = scmp.ne.s32.totalorder %s74, %s75
    %p84 = scmp.eq.s32.totalorder %s17, 0
    %p85 = por %p83, %p84
    %p86 = scmp.ne.s32.totalorder %s74, %s75
    %p87 = scmp.eq.s32.totalorder %s18, 1
    %p88 = por %p86, %p87
    %p90 = scmp.ne.s32.totalorder %s75, %s89
    %p91 = scmp.eq.s32.totalorder %s18, 0
    %p92 = por %p90, %p91
    %s94 = sadd.s32 %s93, 1
    %p97 = scmp.eq.s32.totalorder %s12, 1
    %p98 = scmp.ne.s32.totalorder %s93, %s95
    %p99 = scmp.eq.s32.totalorder %s12, 0
    %p100 = por %p98, %p99
    %p101 = scmp.ne.s32.totalorder %s93, %s95
    %p102 = scmp.eq.s32.totalorder %s17, 1
    %p103 = por %p101, %p102
    %p104 = scmp.ne.s32.totalorder %s95, %s96
    %p105 = scmp.eq.s32.totalorder %s17, 0
    %p106 = por %p104, %p105
    %p107 = scmp.ne.s32.totalorder %s95, %s96
    %p108 = scmp.eq.s32.totalorder %s18, 1
    %p109 = por %p107, %p108
    %p111 = scmp.ne.s32.totalorder %s96, %s110
    %p112 = scmp.eq.s32.totalorder %s18, 0
    %p113 = por %p111, %p112
    %s115 = sadd.s32 %s114, 1
    %p118 = scmp.eq.s32.totalorder %s12, 1
    %p119 = scmp.ne.s32.totalorder %s114, %s116
    %p120 = scmp.eq.s32.totalorder %s12, 0
    %p121 = por %p119, %p120
    %p122 = scmp.ne.s32.totalorder %s114, %s116
    %p123 = scmp.eq.s32.totalorder %s17, 1
    %p124 = por %p122, %p123
    %p125 = scmp.ne.s32.totalorder %s116, %s117
    %p126 = scmp.eq.s32.totalorder %s17, 0
    %p127 = por %p125, %p126
    %p128 = scmp.ne.s32.totalorder %s116, %s117
    %p129 = scmp.eq.s32.totalorder %s18, 1
    %p130 = por %p128, %p129
    %p132 = scmp.ne.s32.totalorder %s117, %s131
    %p133 = scmp.eq.s32.totalorder %s18, 0
    %p134 = por %p132, %p133
    %s136 = sadd.s32 %s135, 1
    %p139 = scmp.eq.s32.totalorder %s12, 1
    %p140 = scmp.ne.s32.totalorder %s135, %s137
    %p141 = scmp.eq.s32.totalorder %s12, 0
    %p142 = por %p140, %p141
    %p143 = scmp.ne.s32.totalorder %s135, %s137
    %p144 = scmp.eq.s32.totalorder %s17, 1
    %p145 = por %p143, %p144
    %p146 = scmp.ne.s32.totalorder %s137, %s138
    %p147 = scmp.eq.s32.totalorder %s17, 0
    %p148 = por %p146, %p147
    %p149 = scmp.ne.s32.totalorder %s137, %s138
    %p150 = scmp.eq.s32.totalorder %s18, 1
    %p151 = por %p149, %p150
    %p153 = scmp.ne.s32.totalorder %s138, %s152
    %p154 = scmp.eq.s32.totalorder %s18, 0
    %p155 = por %p153, %p154
    %s156 = ssub.s32 %s12, %s19
    %p157 = scmp.eq.s32.totalorder %s156, 0
    %s159 = sadd.s32 %s158, 1
    %s160 = scalar_select %p157, %s158, %s159
    %p163 = pneg %p157
    %p164 = scmp.eq.s32.totalorder %s12, 1
    %p165 = por %p163, %p164
    %p166 = scmp.ne.s32.totalorder %s158, %s161
    %p167 = scmp.eq.s32.totalorder %s12, 0
    %p168 = por %p166, %p167
    %p169 = scmp.ne.s32.totalorder %s158, %s161
    %p170 = scmp.eq.s32.totalorder %s17, 1
    %p171 = por %p169, %p170
    %p172 = scmp.ne.s32.totalorder %s161, %s162
    %p173 = scmp.eq.s32.totalorder %s17, 0
    %p174 = por %p172, %p173
    %p175 = scmp.ne.s32.totalorder %s161, %s162
    %p176 = scmp.eq.s32.totalorder %s18, 1
    %p177 = por %p175, %p176
    %p179 = scmp.ne.s32.totalorder %s162, %s178
    %p180 = scmp.eq.s32.totalorder %s18, 0
    %p181 = por %p179, %p180
    %p182 = scmp.le.s32.totalorder 1, %s12
    %p183 = scmp.lt.s32.totalorder %s12, 3
    %p184 = pnand %p182, %p183
    %p185 = pneg %p184
    // Predicated region
    $region9: #{ntlbg_llm_forward.15} parent=5 // pred_check
      _
    $region10: #{ntlbg_llm_forward.15} parent=5 // pred_check_branch
      %187 = sbr.rel (%p184) target = $region12
    $region11: #{ntlbg_llm_forward.15} parent=5 // pred_region
      %s188 = ssub.s32 %s12, 1
      // Predicated region
      $region13: #{ntlbg_llm_forward.15} parent=11 // pred_check
        %p189 = pneg %p85
      $region14: #{ntlbg_llm_forward.15} parent=11 // pred_check_branch
        %191 = sbr.rel (%p189) target = $region16
      $region15: #{ntlbg_llm_forward.15} parent=11 // pred_region
        _
      $region16: #{ntlbg_llm_forward.15} parent=11 // pred_fallthru
        _
      // Predicated region
      $region17: #{ntlbg_llm_forward.15} parent=11 // pred_check
        %p192 = pneg %p106
      $region18: #{ntlbg_llm_forward.15} parent=11 // pred_check_branch
        %194 = sbr.rel (%p192) target = $region20
      $region19: #{ntlbg_llm_forward.15} parent=11 // pred_region
        _
      $region20: #{ntlbg_llm_forward.15} parent=11 // pred_fallthru
        _
      // Predicated region
      $region21: #{ntlbg_llm_forward.15} parent=11 // pred_check
        %p195 = pneg %p127
      $region22: #{ntlbg_llm_forward.15} parent=11 // pred_check_branch
        %197 = sbr.rel (%p195) target = $region24
      $region23: #{ntlbg_llm_forward.15} parent=11 // pred_region
        _
      $region24: #{ntlbg_llm_forward.15} parent=11 // pred_fallthru
        _
      // Predicated region
      $region25: #{ntlbg_llm_forward.15} parent=11 // pred_check
        %p198 = pneg %p148
      $region26: #{ntlbg_llm_forward.15} parent=11 // pred_check_branch
        %200 = sbr.rel (%p198) target = $region28
      $region27: #{ntlbg_llm_forward.15} parent=11 // pred_region
        _
      $region28: #{ntlbg_llm_forward.15} parent=11 // pred_fallthru
        _
    $region12: #{ntlbg_llm_forward.15} parent=5 // pred_fallthru
      _
    %p201 = scmp.lt.s32.totalorder %s12, 2
    // Predicated region
    $region29: #{ntlbg_llm_forward.15} parent=5 // pred_check
      %p202 = pneg %p201
    $region30: #{ntlbg_llm_forward.15} parent=5 // pred_check_branch
      %204 = sbr.rel (%p202) target = $region32
    $region31: #{ntlbg_llm_forward.15} parent=5 // pred_region
      // Predicated region
      $region33: #{ntlbg_llm_forward.15} parent=31 // pred_check
        %p205 = pneg %p32
      $region34: #{ntlbg_llm_forward.15} parent=31 // pred_check_branch
        %207 = sbr.rel (%p205) target = $region36
      $region35: #{ntlbg_llm_forward.15} parent=31 // pred_region
        %p208 = scmp.lt.s32.totalorder %s12, 1
        %s209 = scalar_select %p208, %s12, 1
        %s210 = smul.addr %s209, 2
        %s211 = smul.addr %s210, 8
        %s212 = scalar_lea.vmem %s0, %s211
      $region36: #{ntlbg_llm_forward.15} parent=31 // pred_fallthru
        _
      // Predicated region
      $region37: #{ntlbg_llm_forward.15} parent=31 // pred_check
        %p213 = pneg %p58
      $region38: #{ntlbg_llm_forward.15} parent=31 // pred_check_branch
        %215 = sbr.rel (%p213) target = $region40
      $region39: #{ntlbg_llm_forward.15} parent=31 // pred_region
        %p216 = scmp.lt.s32.totalorder %s12, 1
        %s217 = scalar_select %p216, %s12, 1
        %s218 = smul.addr %s217, 2
        %s219 = smul.addr %s218, 8
        %s220 = scalar_lea.vmem %s1, %s219
      $region40: #{ntlbg_llm_forward.15} parent=31 // pred_fallthru
        _
    $region32: #{ntlbg_llm_forward.15} parent=5 // pred_fallthru
      _
    %p221 = scmp.le.s32.totalorder 1, %s12
    %p222 = scmp.lt.s32.totalorder %s12, 3
    %p223 = pnand %p221, %p222
    %p224 = pneg %p223
    // Predicated region
    $region41: #{ntlbg_llm_forward.15} parent=5 // pred_check
      _
    $region42: #{ntlbg_llm_forward.15} parent=5 // pred_check_branch
      %226 = sbr.rel (%p223) target = $region44
    $region43: #{ntlbg_llm_forward.15} parent=5 // pred_region
      %s227 = ssub.s32 %s12, 1
      %p228 = scmp.lt.s32.totalorder %s17, 1
      %s229 = scalar_select %p228, %s17, 1
      %s230 = smul.addr %s229, 2
      %s231 = smul.addr %s230, 8
      %s232 = scalar_lea.vmem %s0, %s231
      %p233 = pneg %p38
      %p234 = pneg %p35
      %p235 = scmp.lt.s32.totalorder %s17, 1
      %s236 = scalar_select %p235, %s17, 1
      %s237 = smul.addr %s236, 2
      %s238 = smul.addr %s237, 8
      %s239 = scalar_lea.vmem %s1, %s238
      %p240 = pneg %p64
      %p241 = pneg %p61
      %p242 = pneg %p85
      %p243 = pneg %p82
      %p244 = pneg %p106
      %p245 = pneg %p103
      %p246 = pneg %p127
      %p247 = pneg %p124
      %p248 = pneg %p148
      %p249 = pneg %p145
      %p250 = pneg %p174
      %p251 = pneg %p171
      %p252 = scmp.lt.s32.totalorder %s17, 1
      %s253 = scalar_select %p252, %s17, 1
      %s254 = smul.addr %s253, 2
      %s255 = smul.addr %s254, 8
      %s256 = scalar_lea.vmem %s6, %s255
      %p257 = scmp.lt.s32.totalorder %s17, 1
      %s258 = scalar_select %p257, %s17, 1
      %s259 = smul.addr %s258, 2
      %s260 = smul.addr %s259, 8
      %s261 = scalar_lea.vmem %s0, %s260
      %p262 = scmp.lt.s32.totalorder %s17, 1
      %s263 = scalar_select %p262, %s17, 1
      %s264 = smul.addr %s263, 2
      %s265 = smul.addr %s264, 8
      %s266 = scalar_lea.vmem %s1, %s265
      %p267 = scmp.lt.s32.totalorder %s17, 1
      %s268 = scalar_select %p267, %s17, 1
      %s269 = smul.addr %s268, 2
      %s270 = smul.addr %s269, 8
      %s271 = scalar_lea.vmem %s6, %s270
      %v273 = vld [vmem:[%s261] sm:$0xff]
      %v274 = vld [vmem:[%s261 + $0x8] sm:$0x7f]
      %v275 = vld [vmem:[%s2] sm:$0xf]
      %v276 = vld [vmem:[%s2 + $0x4] sm:$0xf]
      %v277 = vld [vmem:[%s2 + $0x8] sm:$0xf]
      %v278 = vld [vmem:[%s2 + $0xc] sm:$0xf]
      %281 = vrot.lane.b32.xlu0 %v273, 96
      %v282 = vpop.permute.xlu0 %281
      %283 = vrot.lane.b32.xlu0 %v274, 96
      %v284 = vpop.permute.xlu0 %283
      %vm285 = vcmask 31744
      %v286 = vsel %vm285, %v273, 0
      %v288 = vsel %vm285, %v274, 0
      %v290 = vsel %vm285, %v282, 0
      %v292 = vsel %vm285, %v284, 0
      %294 = vmatprep.subr.mxu0 0.0
      %295 = vmatpush1.xpose.msra.mxu0 %v290
      %296 = vmatprep.subr.mxu0 0.0
      %297 = vmatpush1.xpose.msra.mxu0 %v292
      %298 = vmatprep.subr.mxu0 0.0
      %299 = vmatpush1.xpose.msra.mxu0 0.0
      %300 = vmatprep.subr.mxu0 0.0
      %301 = vmatpush1.xpose.msra.mxu0 0.0
      %302 = vmatprep.subr.mxu0 0.0
      %303 = vmatpush1.xpose.msra.mxu0 0.0
      %304 = vmatprep.subr.mxu0 0.0
      %305 = vmatpush1.xpose.msra.mxu0 0.0
      %306 = vmatprep.subr.mxu0 0.0
      %307 = vmatpush1.xpose.msra.mxu0 0.0
      %308 = vmatprep.subr.mxu0 0.0
      %309 = vmatpush1.xpose.msra.mxu0 0.0
      %310 = vmatprep.subr.mxu0 0.0
      %311 = vmatpush1.xpose.msra.mxu0 0.0
      %312 = vmatprep.subr.mxu0 0.0
      %313 = vmatpush1.xpose.msra.mxu0 0.0
      %314 = vmatprep.subr.mxu0 0.0
      %315 = vmatpush1.xpose.msra.mxu0 0.0
      %316 = vmatprep.subr.mxu0 0.0
      %317 = vmatpush1.xpose.msra.mxu0 0.0
      %318 = vmatprep.subr.mxu0 0.0
      %319 = vmatpush1.xpose.msra.mxu0 0.0
      %320 = vmatprep.subr.mxu0 0.0
      %321 = vmatpush1.xpose.msra.mxu0 0.0
      %322 = vmatprep.subr.mxu0 0.0
      %323 = vmatpush1.xpose.msra.mxu0 0.0
      %324 = vmatprep.subr.mxu0 0.0
      %325 = vmatpush1.xpose.msra.mxu0 0.0
      %326 = vmatprep.subr.mxu0 0.0
      %327 = vmatpush1.xpose.msra.mxu0 0.0
      %328 = vmatprep.subr.mxu0 0.0
      %329 = vmatpush1.xpose.msra.mxu0 0.0
      %330 = vmatprep.subr.mxu0 0.0
      %331 = vmatpush1.xpose.msra.mxu0 0.0
      %332 = vmatprep.subr.mxu0 0.0
      %333 = vmatpush1.xpose.msra.mxu0 0.0
      %334 = vmatprep.subr.mxu0 0.0
      %335 = vmatpush1.xpose.msra.mxu0 0.0
      %336 = vmatprep.subr.mxu0 0.0
      %337 = vmatpush1.xpose.msra.mxu0 0.0
      %338 = vmatprep.subr.mxu0 0.0
      %339 = vmatpush1.xpose.msra.mxu0 0.0
      %340 = vmatprep.subr.mxu0 0.0
      %341 = vmatpush1.xpose.msra.mxu0 0.0
      %342 = vmatprep.subr.mxu0 0.0
      %343 = vmatpush1.xpose.msra.mxu0 0.0
      %344 = vmatprep.subr.mxu0 0.0
      %345 = vmatpush1.xpose.msra.mxu0 0.0
      %346 = vmatprep.subr.mxu0 0.0
      %347 = vmatpush1.xpose.msra.mxu0 0.0
      %348 = vmatprep.subr.mxu0 0.0
      %349 = vmatpush1.xpose.msra.mxu0 0.0
      %350 = vmatprep.subr.mxu0 0.0
      %351 = vmatpush1.xpose.msra.mxu0 0.0
      %352 = vmatprep.subr.mxu0 0.0
      %353 = vmatpush1.xpose.msra.mxu0 0.0
      %354 = vmatprep.subr.mxu0 0.0
      %355 = vmatpush1.xpose.msra.mxu0 0.0
      %356 = vmatprep.subr.mxu0 0.0
      %357 = vmatpush1.xpose.msra.mxu0 0.0
      %358 = vmatprep.mubr.f32.mxu0 0.0
      %359 = vmatmul.mubr.f32.gmra.mrb[0].mxu0 %v286
      %v360 = vpop.f32.mrb[0].mxu0
      %v361 = vadd.f32 0.0, %v360
      %v362 = vpop.f32.mrb[0].mxu0
      %363 = vmatprep.mubr.f32.mxu0 0.0
      %364 = vmatmul.mubr.f32.gmra.mrb[0].mxu0 %v288
      %v365 = vpop.f32.mrb[0].mxu0
      %v366 = vadd.f32 0.0, %v365
      %v367 = vpop.f32.mrb[0].mxu0
      %368 = vdwg.mxu0
      %v369 = vmul.f32 %v361, 0.5
      %v370 = vmul.f32 %v366, 0.5
      %vm371 = vcmask 121856
      %v372 = vsel %vm371, %v369, -inf
      %373 = vmax.xlane.f32.xlu0 %v372
      %v374 = vpop.xlane.xlu0 %373
      %vm375 = vcmask 120832
      %v376 = vsel %vm375, %v370, -inf
      %377 = vmax.xlane.f32.xlu0 %v376
      %v378 = vpop.xlane.xlu0 %377
      %v379 = vsub.f32 %v369, %v374
      %v380 = vsub.f32 %v370, %v378
      %v381 = vmul.f32 %v379, 1.442695
      %v382 = vpow.pop %v381
      %v383 = vmul.f32 %v380, 1.442695
      %v384 = vpow.pop %v383
      %v385 = vsel %vm371, %v382, 0.0
      %386 = vadd.xlane.f32.xlu0 %v385
      %v387 = vpop.xlane.xlu0 %386
      %v388 = vsel %vm375, %v384, 0.0
      %389 = vadd.xlane.f32.xlu0 %v388
      %v390 = vpop.xlane.xlu0 %389
      %v391 = vrcp.pop %v387
      %v392 = vrcp.pop %v390
      %v393 = vmul.f32 %v382, %v391
      %v394 = vmul.f32 %v384, %v392
      %395 = vrot.lane.b32.xlu0 %v273, 64
      %v396 = vpop.permute.xlu0 %395
      %397 = vrot.lane.b32.xlu0 %v274, 64
      %v398 = vpop.permute.xlu0 %397
      %v401 = vsel %vm371, %v393, 0
      %v404 = vsel %vm371, %v394, 0
      %vm406 = vcmask 1046528
      %v407 = vsel %vm406, %v398, 0
      %409 = vmatprep.subr.mxu0 0.0
      %410 = vmatpush1.msra.mxu0 %v396
      %411 = vmatprep.subr.mxu0 0.0
      %412 = vmatpush1.msra.mxu0 %v407
      %413 = vmatprep.subr.mxu0 0.0
      %414 = vmatpush1.msra.mxu0 0.0
      %415 = vmatprep.subr.mxu0 0.0
      %416 = vmatpush1.msra.mxu0 0.0
      %417 = vmatprep.subr.mxu0 0.0
      %418 = vmatpush1.msra.mxu0 0.0
      %419 = vmatprep.subr.mxu0 0.0
      %420 = vmatpush1.msra.mxu0 0.0
      %421 = vmatprep.subr.mxu0 0.0
      %422 = vmatpush1.msra.mxu0 0.0
      %423 = vmatprep.subr.mxu0 0.0
      %424 = vmatpush1.msra.mxu0 0.0
      %425 = vmatprep.subr.mxu0 0.0
      %426 = vmatpush1.msra.mxu0 0.0
      %427 = vmatprep.subr.mxu0 0.0
      %428 = vmatpush1.msra.mxu0 0.0
      %429 = vmatprep.subr.mxu0 0.0
      %430 = vmatpush1.msra.mxu0 0.0
      %431 = vmatprep.subr.mxu0 0.0
      %432 = vmatpush1.msra.mxu0 0.0
      %433 = vmatprep.subr.mxu0 0.0
      %434 = vmatpush1.msra.mxu0 0.0
      %435 = vmatprep.subr.mxu0 0.0
      %436 = vmatpush1.msra.mxu0 0.0
      %437 = vmatprep.subr.mxu0 0.0
      %438 = vmatpush1.msra.mxu0 0.0
      %439 = vmatprep.subr.mxu0 0.0
      %440 = vmatpush1.msra.mxu0 0.0
      %441 = vmatprep.subr.mxu0 0.0
      %442 = vmatpush1.msra.mxu0 0.0
      %443 = vmatprep.subr.mxu0 0.0
      %444 = vmatpush1.msra.mxu0 0.0
      %445 = vmatprep.subr.mxu0 0.0
      %446 = vmatpush1.msra.mxu0 0.0
      %447 = vmatprep.subr.mxu0 0.0
      %448 = vmatpush1.msra.mxu0 0.0
      %449 = vmatprep.subr.mxu0 0.0
      %450 = vmatpush1.msra.mxu0 0.0
      %451 = vmatprep.subr.mxu0 0.0
      %452 = vmatpush1.msra.mxu0 0.0
      %453 = vmatprep.subr.mxu0 0.0
      %454 = vmatpush1.msra.mxu0 0.0
      %455 = vmatprep.subr.mxu0 0.0
      %456 = vmatpush1.msra.mxu0 0.0
      %457 = vmatprep.subr.mxu0 0.0
      %458 = vmatpush1.msra.mxu0 0.0
      %459 = vmatprep.subr.mxu0 0.0
      %460 = vmatpush1.msra.mxu0 0.0
      %461 = vmatprep.subr.mxu0 0.0
      %462 = vmatpush1.msra.mxu0 0.0
      %463 = vmatprep.subr.mxu0 0.0
      %464 = vmatpush1.msra.mxu0 0.0
      %465 = vmatprep.subr.mxu0 0.0
      %466 = vmatpush1.msra.mxu0 0.0
      %467 = vmatprep.subr.mxu0 0.0
      %468 = vmatpush1.msra.mxu0 0.0
      %469 = vmatprep.subr.mxu0 0.0
      %470 = vmatpush1.msra.mxu0 0.0
      %471 = vmatprep.subr.mxu0 0.0
      %472 = vmatpush1.msra.mxu0 0.0
      %473 = vmatprep.mubr.f32.mxu0 0.0
      %474 = vmatmul.mubr.f32.gmra.mrb[0].mxu0 %v401
      %v475 = vpop.f32.mrb[0].mxu0
      %v476 = vadd.f32 0.0, %v475
      %v477 = vpop.f32.mrb[0].mxu0
      %478 = vmatprep.mubr.f32.mxu0 0.0
      %479 = vmatmul.mubr.f32.gmra.mrb[0].mxu0 %v404
      %v480 = vpop.f32.mrb[0].mxu0
      %v481 = vadd.f32 0.0, %v480
      %v482 = vpop.f32.mrb[0].mxu0
      %483 = vdwg.mxu0
      %v484 = vpack.c.bf16 %v481, %v476
      %485 = vrot.lane.b32.xlu0 %v273, 124
      %v486 = vpop.permute.xlu0 %485
      %487 = vrot.lane.b32.xlu0 %v274, 124
      %v488 = vpop.permute.xlu0 %487
      %489 = vrot.lane.b32.xlu0 %v273, 92
      %v490 = vpop.permute.xlu0 %489
      %491 = vrot.lane.b32.xlu0 %v274, 92
      %v492 = vpop.permute.xlu0 %491
      %v493 = vsel %vm285, %v486, 0
      %v495 = vsel %vm285, %v488, 0
      %v497 = vsel %vm285, %v490, 0
      %v499 = vsel %vm285, %v492, 0
      %501 = vmatprep.subr.mxu0 0.0
      %502 = vmatpush1.xpose.msra.mxu0 %v497
      %503 = vmatprep.subr.mxu0 0.0
      %504 = vmatpush1.xpose.msra.mxu0 %v499
      %505 = vmatprep.subr.mxu0 0.0
      %506 = vmatpush1.xpose.msra.mxu0 0.0
      %507 = vmatprep.subr.mxu0 0.0
      %508 = vmatpush1.xpose.msra.mxu0 0.0
      %509 = vmatprep.subr.mxu0 0.0
      %510 = vmatpush1.xpose.msra.mxu0 0.0
      %511 = vmatprep.subr.mxu0 0.0
      %512 = vmatpush1.xpose.msra.mxu0 0.0
      %513 = vmatprep.subr.mxu0 0.0
      %514 = vmatpush1.xpose.msra.mxu0 0.0
      %515 = vmatprep.subr.mxu0 0.0
      %516 = vmatpush1.xpose.msra.mxu0 0.0
      %517 = vmatprep.subr.mxu0 0.0
      %518 = vmatpush1.xpose.msra.mxu0 0.0
      %519 = vmatprep.subr.mxu0 0.0
      %520 = vmatpush1.xpose.msra.mxu0 0.0
      %521 = vmatprep.subr.mxu0 0.0
      %522 = vmatpush1.xpose.msra.mxu0 0.0
      %523 = vmatprep.subr.mxu0 0.0
      %524 = vmatpush1.xpose.msra.mxu0 0.0
      %525 = vmatprep.subr.mxu0 0.0
      %526 = vmatpush1.xpose.msra.mxu0 0.0
      %527 = vmatprep.subr.mxu0 0.0
      %528 = vmatpush1.xpose.msra.mxu0 0.0
      %529 = vmatprep.subr.mxu0 0.0
      %530 = vmatpush1.xpose.msra.mxu0 0.0
      %531 = vmatprep.subr.mxu0 0.0
      %532 = vmatpush1.xpose.msra.mxu0 0.0
      %533 = vmatprep.subr.mxu0 0.0
      %534 = vmatpush1.xpose.msra.mxu0 0.0
      %535 = vmatprep.subr.mxu0 0.0
      %536 = vmatpush1.xpose.msra.mxu0 0.0
      %537 = vmatprep.subr.mxu0 0.0
      %538 = vmatpush1.xpose.msra.mxu0 0.0
      %539 = vmatprep.subr.mxu0 0.0
      %540 = vmatpush1.xpose.msra.mxu0 0.0
      %541 = vmatprep.subr.mxu0 0.0
      %542 = vmatpush1.xpose.msra.mxu0 0.0
      %543 = vmatprep.subr.mxu0 0.0
      %544 = vmatpush1.xpose.msra.mxu0 0.0
      %545 = vmatprep.subr.mxu0 0.0
      %546 = vmatpush1.xpose.msra.mxu0 0.0
      %547 = vmatprep.subr.mxu0 0.0
      %548 = vmatpush1.xpose.msra.mxu0 0.0
      %549 = vmatprep.subr.mxu0 0.0
      %550 = vmatpush1.xpose.msra.mxu0 0.0
      %551 = vmatprep.subr.mxu0 0.0
      %552 = vmatpush1.xpose.msra.mxu0 0.0
      %553 = vmatprep.subr.mxu0 0.0
      %554 = vmatpush1.xpose.msra.mxu0 0.0
      %555 = vmatprep.subr.mxu0 0.0
      %556 = vmatpush1.xpose.msra.mxu0 0.0
      %557 = vmatprep.subr.mxu0 0.0
      %558 = vmatpush1.xpose.msra.mxu0 0.0
      %559 = vmatprep.subr.mxu0 0.0
      %560 = vmatpush1.xpose.msra.mxu0 0.0
      %561 = vmatprep.subr.mxu0 0.0
      %562 = vmatpush1.xpose.msra.mxu0 0.0
      %563 = vmatprep.subr.mxu0 0.0
      %564 = vmatpush1.xpose.msra.mxu0 0.0
      %565 = vmatprep.mubr.f32.mxu0 0.0
      %566 = vmatmul.mubr.f32.gmra.mrb[0].mxu0 %v493
      %v567 = vpop.f32.mrb[0].mxu0
      %v568 = vadd.f32 0.0, %v567
      %v569 = vpop.f32.mrb[0].mxu0
      %570 = vmatprep.mubr.f32.mxu0 0.0
      %571 = vmatmul.mubr.f32.gmra.mrb[0].mxu0 %v495
      %v572 = vpop.f32.mrb[0].mxu0
      %v573 = vadd.f32 0.0, %v572
      %v574 = vpop.f32.mrb[0].mxu0
      %575 = vdwg.mxu0
      %v576 = vmul.f32 %v568, 0.5
      %v577 = vmul.f32 %v573, 0.5
      %v578 = vsel %vm371, %v576, -inf
      %579 = vmax.xlane.f32.xlu0 %v578
      %v580 = vpop.xlane.xlu0 %579
      %v581 = vsel %vm375, %v577, -inf
      %582 = vmax.xlane.f32.xlu0 %v581
      %v583 = vpop.xlane.xlu0 %582
      %v584 = vsub.f32 %v576, %v580
      %v585 = vsub.f32 %v577, %v583
      %v586 = vmul.f32 %v584, 1.442695
      %v587 = vpow.pop %v586
      %v588 = vmul.f32 %v585, 1.442695
      %v589 = vpow.pop %v588
      %v590 = vsel %vm371, %v587, 0.0
      %591 = vadd.xlane.f32.xlu0 %v590
      %v592 = vpop.xlane.xlu0 %591
      %v593 = vsel %vm375, %v589, 0.0
      %594 = vadd.xlane.f32.xlu0 %v593
      %v595 = vpop.xlane.xlu0 %594
      %v596 = vrcp.pop %v592
      %v597 = vrcp.pop %v595
      %v598 = vmul.f32 %v587, %v596
      %v599 = vmul.f32 %v589, %v597
      %600 = vrot.lane.b32.xlu0 %v273, 60
      %v601 = vpop.permute.xlu0 %600
      %602 = vrot.lane.b32.xlu0 %v274, 60
      %v603 = vpop.permute.xlu0 %602
      %v606 = vsel %vm371, %v598, 0
      %v609 = vsel %vm371, %v599, 0
      %v611 = vsel %vm406, %v603, 0
      %613 = vmatprep.subr.mxu0 0.0
      %614 = vmatpush1.msra.mxu0 %v601
      %615 = vmatprep.subr.mxu0 0.0
      %616 = vmatpush1.msra.mxu0 %v611
      %617 = vmatprep.subr.mxu0 0.0
      %618 = vmatpush1.msra.mxu0 0.0
      %619 = vmatprep.subr.mxu0 0.0
      %620 = vmatpush1.msra.mxu0 0.0
      %621 = vmatprep.subr.mxu0 0.0
      %622 = vmatpush1.msra.mxu0 0.0
      %623 = vmatprep.subr.mxu0 0.0
      %624 = vmatpush1.msra.mxu0 0.0
      %625 = vmatprep.subr.mxu0 0.0
      %626 = vmatpush1.msra.mxu0 0.0
      %627 = vmatprep.subr.mxu0 0.0
      %628 = vmatpush1.msra.mxu0 0.0
      %629 = vmatprep.subr.mxu0 0.0
      %630 = vmatpush1.msra.mxu0 0.0
      %631 = vmatprep.subr.mxu0 0.0
      %632 = vmatpush1.msra.mxu0 0.0
      %633 = vmatprep.subr.mxu0 0.0
      %634 = vmatpush1.msra.mxu0 0.0
      %635 = vmatprep.subr.mxu0 0.0
      %636 = vmatpush1.msra.mxu0 0.0
      %637 = vmatprep.subr.mxu0 0.0
      %638 = vmatpush1.msra.mxu0 0.0
      %639 = vmatprep.subr.mxu0 0.0
      %640 = vmatpush1.msra.mxu0 0.0
      %641 = vmatprep.subr.mxu0 0.0
      %642 = vmatpush1.msra.mxu0 0.0
      %643 = vmatprep.subr.mxu0 0.0
      %644 = vmatpush1.msra.mxu0 0.0
      %645 = vmatprep.subr.mxu0 0.0
      %646 = vmatpush1.msra.mxu0 0.0
      %647 = vmatprep.subr.mxu0 0.0
      %648 = vmatpush1.msra.mxu0 0.0
      %649 = vmatprep.subr.mxu0 0.0
      %650 = vmatpush1.msra.mxu0 0.0
      %651 = vmatprep.subr.mxu0 0.0
      %652 = vmatpush1.msra.mxu0 0.0
      %653 = vmatprep.subr.mxu0 0.0
      %654 = vmatpush1.msra.mxu0 0.0
      %655 = vmatprep.subr.mxu0 0.0
      %656 = vmatpush1.msra.mxu0 0.0
      %657 = vmatprep.subr.mxu0 0.0
      %658 = vmatpush1.msra.mxu0 0.0
      %659 = vmatprep.subr.mxu0 0.0
      %660 = vmatpush1.msra.mxu0 0.0
      %661 = vmatprep.subr.mxu0 0.0
      %662 = vmatpush1.msra.mxu0 0.0
      %663 = vmatprep.subr.mxu0 0.0
      %664 = vmatpush1.msra.mxu0 0.0
      %665 = vmatprep.subr.mxu0 0.0
      %666 = vmatpush1.msra.mxu0 0.0
      %667 = vmatprep.subr.mxu0 0.0
      %668 = vmatpush1.msra.mxu0 0.0
      %669 = vmatprep.subr.mxu0 0.0
      %670 = vmatpush1.msra.mxu0 0.0
      %671 = vmatprep.subr.mxu0 0.0
      %672 = vmatpush1.msra.mxu0 0.0
      %673 = vmatprep.subr.mxu0 0.0
      %674 = vmatpush1.msra.mxu0 0.0
      %675 = vmatprep.subr.mxu0 0.0
      %676 = vmatpush1.msra.mxu0 0.0
      %677 = vmatprep.mubr.f32.mxu0 0.0
      %678 = vmatmul.mubr.f32.gmra.mrb[0].mxu0 %v606
      %v679 = vpop.f32.mrb[0].mxu0
      %v680 = vadd.f32 0.0, %v679
      %v681 = vpop.f32.mrb[0].mxu0
      %682 = vmatprep.mubr.f32.mxu0 0.0
      %683 = vmatmul.mubr.f32.gmra.mrb[0].mxu0 %v609
      %v684 = vpop.f32.mrb[0].mxu0
      %v685 = vadd.f32 0.0, %v684
      %v686 = vpop.f32.mrb[0].mxu0
      %687 = vdwg.mxu0
      %v688 = vpack.c.bf16 %v685, %v680
      %v690 = vunpack.c.l.b16 %v275
      %v691 = vpack.c.b16 %v690, %v690
      %v692 = vrot.slane %v691, 2
      %v694 = vsel %vm285, %v688, 0
      %vm696 = vcmask 1041408
      %v698 = vsel %vm696, %v692, 0
      %700 = vmatprep.subr.bf16.mxu0 0
      %701 = vmatpush1.bf16.msra.mxu0 %v698
      %702 = vmatprep.subr.bf16.mxu0 0
      %703 = vmatpush1.bf16.msra.mxu0 0
      %704 = vmatprep.subr.bf16.mxu0 0
      %705 = vmatpush1.bf16.msra.mxu0 0
      %706 = vmatprep.subr.bf16.mxu0 0
      %707 = vmatpush1.bf16.msra.mxu0 0
      %708 = vmatprep.subr.bf16.mxu0 0
      %709 = vmatpush1.bf16.msra.mxu0 0
      %710 = vmatprep.subr.bf16.mxu0 0
      %711 = vmatpush1.bf16.msra.mxu0 0
      %712 = vmatprep.subr.bf16.mxu0 0
      %713 = vmatpush1.bf16.msra.mxu0 0
      %714 = vmatprep.subr.bf16.mxu0 0
      %715 = vmatpush1.bf16.msra.mxu0 0
      %716 = vmatprep.subr.bf16.mxu0 0
      %717 = vmatpush1.bf16.msra.mxu0 0
      %718 = vmatprep.subr.bf16.mxu0 0
      %719 = vmatpush1.bf16.msra.mxu0 0
      %720 = vmatprep.subr.bf16.mxu0 0
      %721 = vmatpush1.bf16.msra.mxu0 0
      %722 = vmatprep.subr.bf16.mxu0 0
      %723 = vmatpush1.bf16.msra.mxu0 0
      %724 = vmatprep.subr.bf16.mxu0 0
      %725 = vmatpush1.bf16.msra.mxu0 0
      %726 = vmatprep.subr.bf16.mxu0 0
      %727 = vmatpush1.bf16.msra.mxu0 0
      %728 = vmatprep.subr.bf16.mxu0 0
      %729 = vmatpush1.bf16.msra.mxu0 0
      %730 = vmatprep.subr.bf16.mxu0 0
      %731 = vmatpush1.bf16.msra.mxu0 0
      %732 = vmatprep.mubr.bf16.mxu0 0
      %733 = vmatmul.mubr.bf16.gmra.mrb[0].mxu0 %v694
      %v734 = vpop.f32.mrb[0].mxu0
      %v735 = vadd.f32 0.0, %v734
      %v736 = vpop.f32.mrb[0].mxu0
      %v737 = vpop.f32.mrb[0].mxu0
      %v738 = vadd.f32 0.0, %v737
      %v739 = vpop.f32.mrb[0].mxu0
      %740 = vdwg.mxu0
      %v742 = vsel %vm285, %v484, 0
      %v745 = vsel %vm696, %v275, 0
      %747 = vmatprep.subr.bf16.mxu0 0
      %748 = vmatpush1.bf16.msra.mxu0 %v745
      %749 = vmatprep.subr.bf16.mxu0 0
      %750 = vmatpush1.bf16.msra.mxu0 0
      %751 = vmatprep.subr.bf16.mxu0 0
      %752 = vmatpush1.bf16.msra.mxu0 0
      %753 = vmatprep.subr.bf16.mxu0 0
      %754 = vmatpush1.bf16.msra.mxu0 0
      %755 = vmatprep.subr.bf16.mxu0 0
      %756 = vmatpush1.bf16.msra.mxu0 0
      %757 = vmatprep.subr.bf16.mxu0 0
      %758 = vmatpush1.bf16.msra.mxu0 0
      %759 = vmatprep.subr.bf16.mxu0 0
      %760 = vmatpush1.bf16.msra.mxu0 0
      %761 = vmatprep.subr.bf16.mxu0 0
      %762 = vmatpush1.bf16.msra.mxu0 0
      %763 = vmatprep.subr.bf16.mxu0 0
      %764 = vmatpush1.bf16.msra.mxu0 0
      %765 = vmatprep.subr.bf16.mxu0 0
      %766 = vmatpush1.bf16.msra.mxu0 0
      %767 = vmatprep.subr.bf16.mxu0 0
      %768 = vmatpush1.bf16.msra.mxu0 0
      %769 = vmatprep.subr.bf16.mxu0 0
      %770 = vmatpush1.bf16.msra.mxu0 0
      %771 = vmatprep.subr.bf16.mxu0 0
      %772 = vmatpush1.bf16.msra.mxu0 0
      %773 = vmatprep.subr.bf16.mxu0 0
      %774 = vmatpush1.bf16.msra.mxu0 0
      %775 = vmatprep.subr.bf16.mxu0 0
      %776 = vmatpush1.bf16.msra.mxu0 0
      %777 = vmatprep.subr.bf16.mxu0 0
      %778 = vmatpush1.bf16.msra.mxu0 0
      %779 = vmatprep.mubr.bf16.mxu0 0
      %780 = vmatmul.mubr.bf16.gmra.mrb[0].mxu0 %v742
      %v781 = vpop.f32.mrb[0].mxu0
      %v782 = vadd.f32 %v735, %v781
      %v783 = vpop.f32.mrb[0].mxu0
      %v784 = vpop.f32.mrb[0].mxu0
      %v785 = vadd.f32 %v738, %v784
      %v786 = vpop.f32.mrb[0].mxu0
      %787 = vdwg.mxu0
      %788 = vrot.lane.b32.xlu0 %v273, 120
      %v789 = vpop.permute.xlu0 %788
      %790 = vrot.lane.b32.xlu0 %v274, 120
      %v791 = vpop.permute.xlu0 %790
      %792 = vrot.lane.b32.xlu0 %v273, 88
      %v793 = vpop.permute.xlu0 %792
      %794 = vrot.lane.b32.xlu0 %v274, 88
      %v795 = vpop.permute.xlu0 %794
      %v796 = vsel %vm285, %v789, 0
      %v798 = vsel %vm285, %v791, 0
      %v800 = vsel %vm285, %v793, 0
      %v802 = vsel %vm285, %v795, 0
      %804 = vmatprep.subr.mxu0 0.0
      %805 = vmatpush1.xpose.msra.mxu0 %v800
      %806 = vmatprep.subr.mxu0 0.0
      %807 = vmatpush1.xpose.msra.mxu0 %v802
      %808 = vmatprep.subr.mxu0 0.0
      %809 = vmatpush1.xpose.msra.mxu0 0.0
      %810 = vmatprep.subr.mxu0 0.0
      %811 = vmatpush1.xpose.msra.mxu0 0.0
      %812 = vmatprep.subr.mxu0 0.0
      %813 = vmatpush1.xpose.msra.mxu0 0.0
      %814 = vmatprep.subr.mxu0 0.0
      %815 = vmatpush1.xpose.msra.mxu0 0.0
      %816 = vmatprep.subr.mxu0 0.0
      %817 = vmatpush1.xpose.msra.mxu0 0.0
      %818 = vmatprep.subr.mxu0 0.0
      %819 = vmatpush1.xpose.msra.mxu0 0.0
      %820 = vmatprep.subr.mxu0 0.0
      %821 = vmatpush1.xpose.msra.mxu0 0.0
      %822 = vmatprep.subr.mxu0 0.0
      %823 = vmatpush1.xpose.msra.mxu0 0.0
      %824 = vmatprep.subr.mxu0 0.0
      %825 = vmatpush1.xpose.msra.mxu0 0.0
      %826 = vmatprep.subr.mxu0 0.0
      %827 = vmatpush1.xpose.msra.mxu0 0.0
      %828 = vmatprep.subr.mxu0 0.0
      %829 = vmatpush1.xpose.msra.mxu0 0.0
      %830 = vmatprep.subr.mxu0 0.0
      %831 = vmatpush1.xpose.msra.mxu0 0.0
      %832 = vmatprep.subr.mxu0 0.0
      %833 = vmatpush1.xpose.msra.mxu0 0.0
      %834 = vmatprep.subr.mxu0 0.0
      %835 = vmatpush1.xpose.msra.mxu0 0.0
      %836 = vmatprep.subr.mxu0 0.0
      %837 = vmatpush1.xpose.msra.mxu0 0.0
      %838 = vmatprep.subr.mxu0 0.0
      %839 = vmatpush1.xpose.msra.mxu0 0.0
      %840 = vmatprep.subr.mxu0 0.0
      %841 = vmatpush1.xpose.msra.mxu0 0.0
      %842 = vmatprep.subr.mxu0 0.0
      %843 = vmatpush1.xpose.msra.mxu0 0.0
      %844 = vmatprep.subr.mxu0 0.0
      %845 = vmatpush1.xpose.msra.mxu0 0.0
      %846 = vmatprep.subr.mxu0 0.0
      %847 = vmatpush1.xpose.msra.mxu0 0.0
      %848 = vmatprep.subr.mxu0 0.0
      %849 = vmatpush1.xpose.msra.mxu0 0.0
      %850 = vmatprep.subr.mxu0 0.0
      %851 = vmatpush1.xpose.msra.mxu0 0.0
      %852 = vmatprep.subr.mxu0 0.0
      %853 = vmatpush1.xpose.msra.mxu0 0.0
      %854 = vmatprep.subr.mxu0 0.0
      %855 = vmatpush1.xpose.msra.mxu0 0.0
      %856 = vmatprep.subr.mxu0 0.0
      %857 = vmatpush1.xpose.msra.mxu0 0.0
      %858 = vmatprep.subr.mxu0 0.0
      %859 = vmatpush1.xpose.msra.mxu0 0.0
      %860 = vmatprep.subr.mxu0 0.0
      %861 = vmatpush1.xpose.msra.mxu0 0.0
      %862 = vmatprep.subr.mxu0 0.0
      %863 = vmatpush1.xpose.msra.mxu0 0.0
      %864 = vmatprep.subr.mxu0 0.0
      %865 = vmatpush1.xpose.msra.mxu0 0.0
      %866 = vmatprep.subr.mxu0 0.0
      %867 = vmatpush1.xpose.msra.mxu0 0.0
      %868 = vmatprep.mubr.f32.mxu0 0.0
      %869 = vmatmul.mubr.f32.gmra.mrb[0].mxu0 %v796
      %v870 = vpop.f32.mrb[0].mxu0
      %v871 = vadd.f32 0.0, %v870
      %v872 = vpop.f32.mrb[0].mxu0
      %873 = vmatprep.mubr.f32.mxu0 0.0
      %874 = vmatmul.mubr.f32.gmra.mrb[0].mxu0 %v798
      %v875 = vpop.f32.mrb[0].mxu0
      %v876 = vadd.f32 0.0, %v875
      %v877 = vpop.f32.mrb[0].mxu0
      %878 = vdwg.mxu0
      %v879 = vmul.f32 %v871, 0.5
      %v880 = vmul.f32 %v876, 0.5
      %v881 = vsel %vm371, %v879, -inf
      %882 = vmax.xlane.f32.xlu0 %v881
      %v883 = vpop.xlane.xlu0 %882
      %v884 = vsel %vm375, %v880, -inf
      %885 = vmax.xlane.f32.xlu0 %v884
      %v886 = vpop.xlane.xlu0 %885
      %v887 = vsub.f32 %v879, %v883
      %v888 = vsub.f32 %v880, %v886
      %v889 = vmul.f32 %v887, 1.442695
      %v890 = vpow.pop %v889
      %v891 = vmul.f32 %v888, 1.442695
      %v892 = vpow.pop %v891
      %v893 = vsel %vm371, %v890, 0.0
      %894 = vadd.xlane.f32.xlu0 %v893
      %v895 = vpop.xlane.xlu0 %894
      %v896 = vsel %vm375, %v892, 0.0
      %897 = vadd.xlane.f32.xlu0 %v896
      %v898 = vpop.xlane.xlu0 %897
      %v899 = vrcp.pop %v895
      %v900 = vrcp.pop %v898
      %v901 = vmul.f32 %v890, %v899
      %v902 = vmul.f32 %v892, %v900
      %903 = vrot.lane.b32.xlu0 %v273, 56
      %v904 = vpop.permute.xlu0 %903
      %905 = vrot.lane.b32.xlu0 %v274, 56
      %v906 = vpop.permute.xlu0 %905
      %v909 = vsel %vm371, %v901, 0
      %v912 = vsel %vm371, %v902, 0
      %v914 = vsel %vm406, %v906, 0
      %916 = vmatprep.subr.mxu0 0.0
      %917 = vmatpush1.msra.mxu0 %v904
      %918 = vmatprep.subr.mxu0 0.0
      %919 = vmatpush1.msra.mxu0 %v914
      %920 = vmatprep.subr.mxu0 0.0
      %921 = vmatpush1.msra.mxu0 0.0
      %922 = vmatprep.subr.mxu0 0.0
      %923 = vmatpush1.msra.mxu0 0.0
      %924 = vmatprep.subr.mxu0 0.0
      %925 = vmatpush1.msra.mxu0 0.0
      %926 = vmatprep.subr.mxu0 0.0
      %927 = vmatpush1.msra.mxu0 0.0
      %928 = vmatprep.subr.mxu0 0.0
      %929 = vmatpush1.msra.mxu0 0.0
      %930 = vmatprep.subr.mxu0 0.0
      %931 = vmatpush1.msra.mxu0 0.0
      %932 = vmatprep.subr.mxu0 0.0
      %933 = vmatpush1.msra.mxu0 0.0
      %934 = vmatprep.subr.mxu0 0.0
      %935 = vmatpush1.msra.mxu0 0.0
      %936 = vmatprep.subr.mxu0 0.0
      %937 = vmatpush1.msra.mxu0 0.0
      %938 = vmatprep.subr.mxu0 0.0
      %939 = vmatpush1.msra.mxu0 0.0
      %940 = vmatprep.subr.mxu0 0.0
      %941 = vmatpush1.msra.mxu0 0.0
      %942 = vmatprep.subr.mxu0 0.0
      %943 = vmatpush1.msra.mxu0 0.0
      %944 = vmatprep.subr.mxu0 0.0
      %945 = vmatpush1.msra.mxu0 0.0
      %946 = vmatprep.subr.mxu0 0.0
      %947 = vmatpush1.msra.mxu0 0.0
      %948 = vmatprep.subr.mxu0 0.0
      %949 = vmatpush1.msra.mxu0 0.0
      %950 = vmatprep.subr.mxu0 0.0
      %951 = vmatpush1.msra.mxu0 0.0
      %952 = vmatprep.subr.mxu0 0.0
      %953 = vmatpush1.msra.mxu0 0.0
      %954 = vmatprep.subr.mxu0 0.0
      %955 = vmatpush1.msra.mxu0 0.0
      %956 = vmatprep.subr.mxu0 0.0
      %957 = vmatpush1.msra.mxu0 0.0
      %958 = vmatprep.subr.mxu0 0.0
      %959 = vmatpush1.msra.mxu0 0.0
      %960 = vmatprep.subr.mxu0 0.0
      %961 = vmatpush1.msra.mxu0 0.0
      %962 = vmatprep.subr.mxu0 0.0
      %963 = vmatpush1.msra.mxu0 0.0
      %964 = vmatprep.subr.mxu0 0.0
      %965 = vmatpush1.msra.mxu0 0.0
      %966 = vmatprep.subr.mxu0 0.0
      %967 = vmatpush1.msra.mxu0 0.0
      %968 = vmatprep.subr.mxu0 0.0
      %969 = vmatpush1.msra.mxu0 0.0
      %970 = vmatprep.subr.mxu0 0.0
      %971 = vmatpush1.msra.mxu0 0.0
      %972 = vmatprep.subr.mxu0 0.0
      %973 = vmatpush1.msra.mxu0 0.0
      %974 = vmatprep.subr.mxu0 0.0
      %975 = vmatpush1.msra.mxu0 0.0
      %976 = vmatprep.subr.mxu0 0.0
      %977 = vmatpush1.msra.mxu0 0.0
      %978 = vmatprep.subr.mxu0 0.0
      %979 = vmatpush1.msra.mxu0 0.0
      %980 = vmatprep.mubr.f32.mxu0 0.0
      %981 = vmatmul.mubr.f32.gmra.mrb[0].mxu0 %v909
      %v982 = vpop.f32.mrb[0].mxu0
      %v983 = vadd.f32 0.0, %v982
      %v984 = vpop.f32.mrb[0].mxu0
      %985 = vmatprep.mubr.f32.mxu0 0.0
      %986 = vmatmul.mubr.f32.gmra.mrb[0].mxu0 %v912
      %v987 = vpop.f32.mrb[0].mxu0
      %v988 = vadd.f32 0.0, %v987
      %v989 = vpop.f32.mrb[0].mxu0
      %990 = vdwg.mxu0
      %v991 = vpack.c.bf16 %v988, %v983
      %v993 = vsel %vm285, %v991, 0
      %v996 = vsel %vm696, %v276, 0
      %998 = vmatprep.subr.bf16.mxu0 0
      %999 = vmatpush1.bf16.msra.mxu0 %v996
      %1000 = vmatprep.subr.bf16.mxu0 0
      %1001 = vmatpush1.bf16.msra.mxu0 0
      %1002 = vmatprep.subr.bf16.mxu0 0
      %1003 = vmatpush1.bf16.msra.mxu0 0
      %1004 = vmatprep.subr.bf16.mxu0 0
      %1005 = vmatpush1.bf16.msra.mxu0 0
      %1006 = vmatprep.subr.bf16.mxu0 0
      %1007 = vmatpush1.bf16.msra.mxu0 0
      %1008 = vmatprep.subr.bf16.mxu0 0
      %1009 = vmatpush1.bf16.msra.mxu0 0
      %1010 = vmatprep.subr.bf16.mxu0 0
      %1011 = vmatpush1.bf16.msra.mxu0 0
      %1012 = vmatprep.subr.bf16.mxu0 0
      %1013 = vmatpush1.bf16.msra.mxu0 0
      %1014 = vmatprep.subr.bf16.mxu0 0
      %1015 = vmatpush1.bf16.msra.mxu0 0
      %1016 = vmatprep.subr.bf16.mxu0 0
      %1017 = vmatpush1.bf16.msra.mxu0 0
      %1018 = vmatprep.subr.bf16.mxu0 0
      %1019 = vmatpush1.bf16.msra.mxu0 0
      %1020 = vmatprep.subr.bf16.mxu0 0
      %1021 = vmatpush1.bf16.msra.mxu0 0
      %1022 = vmatprep.subr.bf16.mxu0 0
      %1023 = vmatpush1.bf16.msra.mxu0 0
      %1024 = vmatprep.subr.bf16.mxu0 0
      %1025 = vmatpush1.bf16.msra.mxu0 0
      %1026 = vmatprep.subr.bf16.mxu0 0
      %1027 = vmatpush1.bf16.msra.mxu0 0
      %1028 = vmatprep.subr.bf16.mxu0 0
      %1029 = vmatpush1.bf16.msra.mxu0 0
      %1030 = vmatprep.mubr.bf16.mxu0 0
      %1031 = vmatmul.mubr.bf16.gmra.mrb[0].mxu0 %v993
      %v1032 = vpop.f32.mrb[0].mxu0
      %v1033 = vadd.f32 0.0, %v1032
      %v1034 = vpop.f32.mrb[0].mxu0
      %v1035 = vpop.f32.mrb[0].mxu0
      %v1036 = vadd.f32 0.0, %v1035
      %v1037 = vpop.f32.mrb[0].mxu0
      %1038 = vdwg.mxu0
      %v1039 = vadd.f32 %v782, %v1033
      %v1040 = vadd.f32 %v785, %v1036
      %1041 = vrot.lane.b32.xlu0 %v273, 116
      %v1042 = vpop.permute.xlu0 %1041
      %1043 = vrot.lane.b32.xlu0 %v274, 116
      %v1044 = vpop.permute.xlu0 %1043
      %1045 = vrot.lane.b32.xlu0 %v273, 84
      %v1046 = vpop.permute.xlu0 %1045
      %1047 = vrot.lane.b32.xlu0 %v274, 84
      %v1048 = vpop.permute.xlu0 %1047
      %v1049 = vsel %vm285, %v1042, 0
      %v1051 = vsel %vm285, %v1044, 0
      %v1053 = vsel %vm285, %v1046, 0
      %v1055 = vsel %vm285, %v1048, 0
      %1057 = vmatprep.subr.mxu0 0.0
      %1058 = vmatpush1.xpose.msra.mxu0 %v1053
      %1059 = vmatprep.subr.mxu0 0.0
      %1060 = vmatpush1.xpose.msra.mxu0 %v1055
      %1061 = vmatprep.subr.mxu0 0.0
      %1062 = vmatpush1.xpose.msra.mxu0 0.0
      %1063 = vmatprep.subr.mxu0 0.0
      %1064 = vmatpush1.xpose.msra.mxu0 0.0
      %1065 = vmatprep.subr.mxu0 0.0
      %1066 = vmatpush1.xpose.msra.mxu0 0.0
      %1067 = vmatprep.subr.mxu0 0.0
      %1068 = vmatpush1.xpose.msra.mxu0 0.0
      %1069 = vmatprep.subr.mxu0 0.0
      %1070 = vmatpush1.xpose.msra.mxu0 0.0
      %1071 = vmatprep.subr.mxu0 0.0
      %1072 = vmatpush1.xpose.msra.mxu0 0.0
      %1073 = vmatprep.subr.mxu0 0.0
      %1074 = vmatpush1.xpose.msra.mxu0 0.0
      %1075 = vmatprep.subr.mxu0 0.0
      %1076 = vmatpush1.xpose.msra.mxu0 0.0
      %1077 = vmatprep.subr.mxu0 0.0
      %1078 = vmatpush1.xpose.msra.mxu0 0.0
      %1079 = vmatprep.subr.mxu0 0.0
      %1080 = vmatpush1.xpose.msra.mxu0 0.0
      %1081 = vmatprep.subr.mxu0 0.0
      %1082 = vmatpush1.xpose.msra.mxu0 0.0
      %1083 = vmatprep.subr.mxu0 0.0
      %1084 = vmatpush1.xpose.msra.mxu0 0.0
      %1085 = vmatprep.subr.mxu0 0.0
      %1086 = vmatpush1.xpose.msra.mxu0 0.0
      %1087 = vmatprep.subr.mxu0 0.0
      %1088 = vmatpush1.xpose.msra.mxu0 0.0
      %1089 = vmatprep.subr.mxu0 0.0
      %1090 = vmatpush1.xpose.msra.mxu0 0.0
      %1091 = vmatprep.subr.mxu0 0.0
      %1092 = vmatpush1.xpose.msra.mxu0 0.0
      %1093 = vmatprep.subr.mxu0 0.0
      %1094 = vmatpush1.xpose.msra.mxu0 0.0
      %1095 = vmatprep.subr.mxu0 0.0
      %1096 = vmatpush1.xpose.msra.mxu0 0.0
      %1097 = vmatprep.subr.mxu0 0.0
      %1098 = vmatpush1.xpose.msra.mxu0 0.0
      %1099 = vmatprep.subr.mxu0 0.0
      %1100 = vmatpush1.xpose.msra.mxu0 0.0
      %1101 = vmatprep.subr.mxu0 0.0
      %1102 = vmatpush1.xpose.msra.mxu0 0.0
      %1103 = vmatprep.subr.mxu0 0.0
      %1104 = vmatpush1.xpose.msra.mxu0 0.0
      %1105 = vmatprep.subr.mxu0 0.0
      %1106 = vmatpush1.xpose.msra.mxu0 0.0
      %1107 = vmatprep.subr.mxu0 0.0
      %1108 = vmatpush1.xpose.msra.mxu0 0.0
      %1109 = vmatprep.subr.mxu0 0.0
      %1110 = vmatpush1.xpose.msra.mxu0 0.0
      %1111 = vmatprep.subr.mxu0 0.0
      %1112 = vmatpush1.xpose.msra.mxu0 0.0
      %1113 = vmatprep.subr.mxu0 0.0
      %1114 = vmatpush1.xpose.msra.mxu0 0.0
      %1115 = vmatprep.subr.mxu0 0.0
      %1116 = vmatpush1.xpose.msra.mxu0 0.0
      %1117 = vmatprep.subr.mxu0 0.0
      %1118 = vmatpush1.xpose.msra.mxu0 0.0
      %1119 = vmatprep.subr.mxu0 0.0
      %1120 = vmatpush1.xpose.msra.mxu0 0.0
      %1121 = vmatprep.mubr.f32.mxu0 0.0
      %1122 = vmatmul.mubr.f32.gmra.mrb[0].mxu0 %v1049
      %v1123 = vpop.f32.mrb[0].mxu0
      %v1124 = vadd.f32 0.0, %v1123
      %v1125 = vpop.f32.mrb[0].mxu0
      %1126 = vmatprep.mubr.f32.mxu0 0.0
      %1127 = vmatmul.mubr.f32.gmra.mrb[0].mxu0 %v1051
      %v1128 = vpop.f32.mrb[0].mxu0
      %v1129 = vadd.f32 0.0, %v1128
      %v1130 = vpop.f32.mrb[0].mxu0
      %1131 = vdwg.mxu0
      %v1132 = vmul.f32 %v1124, 0.5
      %v1133 = vmul.f32 %v1129, 0.5
      %v1134 = vsel %vm371, %v1132, -inf
      %1135 = vmax.xlane.f32.xlu0 %v1134
      %v1136 = vpop.xlane.xlu0 %1135
      %v1137 = vsel %vm375, %v1133, -inf
      %1138 = vmax.xlane.f32.xlu0 %v1137
      %v1139 = vpop.xlane.xlu0 %1138
      %v1140 = vsub.f32 %v1132, %v1136
      %v1141 = vsub.f32 %v1133, %v1139
      %v1142 = vmul.f32 %v1140, 1.442695
      %v1143 = vpow.pop %v1142
      %v1144 = vmul.f32 %v1141, 1.442695
      %v1145 = vpow.pop %v1144
      %v1146 = vsel %vm371, %v1143, 0.0
      %1147 = vadd.xlane.f32.xlu0 %v1146
      %v1148 = vpop.xlane.xlu0 %1147
      %v1149 = vsel %vm375, %v1145, 0.0
      %1150 = vadd.xlane.f32.xlu0 %v1149
      %v1151 = vpop.xlane.xlu0 %1150
      %v1152 = vrcp.pop %v1148
      %v1153 = vrcp.pop %v1151
      %v1154 = vmul.f32 %v1143, %v1152
      %v1155 = vmul.f32 %v1145, %v1153
      %1156 = vrot.lane.b32.xlu0 %v273, 52
      %v1157 = vpop.permute.xlu0 %1156
      %1158 = vrot.lane.b32.xlu0 %v274, 52
      %v1159 = vpop.permute.xlu0 %1158
      %v1162 = vsel %vm371, %v1154, 0
      %v1165 = vsel %vm371, %v1155, 0
      %v1167 = vsel %vm406, %v1159, 0
      %1169 = vmatprep.subr.mxu0 0.0
      %1170 = vmatpush1.msra.mxu0 %v1157
      %1171 = vmatprep.subr.mxu0 0.0
      %1172 = vmatpush1.msra.mxu0 %v1167
      %1173 = vmatprep.subr.mxu0 0.0
      %1174 = vmatpush1.msra.mxu0 0.0
      %1175 = vmatprep.subr.mxu0 0.0
      %1176 = vmatpush1.msra.mxu0 0.0
      %1177 = vmatprep.subr.mxu0 0.0
      %1178 = vmatpush1.msra.mxu0 0.0
      %1179 = vmatprep.subr.mxu0 0.0
      %1180 = vmatpush1.msra.mxu0 0.0
      %1181 = vmatprep.subr.mxu0 0.0
      %1182 = vmatpush1.msra.mxu0 0.0
      %1183 = vmatprep.subr.mxu0 0.0
      %1184 = vmatpush1.msra.mxu0 0.0
      %1185 = vmatprep.subr.mxu0 0.0
      %1186 = vmatpush1.msra.mxu0 0.0
      %1187 = vmatprep.subr.mxu0 0.0
      %1188 = vmatpush1.msra.mxu0 0.0
      %1189 = vmatprep.subr.mxu0 0.0
      %1190 = vmatpush1.msra.mxu0 0.0
      %1191 = vmatprep.subr.mxu0 0.0
      %1192 = vmatpush1.msra.mxu0 0.0
      %1193 = vmatprep.subr.mxu0 0.0
      %1194 = vmatpush1.msra.mxu0 0.0
      %1195 = vmatprep.subr.mxu0 0.0
      %1196 = vmatpush1.msra.mxu0 0.0
      %1197 = vmatprep.subr.mxu0 0.0
      %1198 = vmatpush1.msra.mxu0 0.0
      %1199 = vmatprep.subr.mxu0 0.0
      %1200 = vmatpush1.msra.mxu0 0.0
      %1201 = vmatprep.subr.mxu0 0.0
      %1202 = vmatpush1.msra.mxu0 0.0
      %1203 = vmatprep.subr.mxu0 0.0
      %1204 = vmatpush1.msra.mxu0 0.0
      %1205 = vmatprep.subr.mxu0 0.0
      %1206 = vmatpush1.msra.mxu0 0.0
      %1207 = vmatprep.subr.mxu0 0.0
      %1208 = vmatpush1.msra.mxu0 0.0
      %1209 = vmatprep.subr.mxu0 0.0
      %1210 = vmatpush1.msra.mxu0 0.0
      %1211 = vmatprep.subr.mxu0 0.0
      %1212 = vmatpush1.msra.mxu0 0.0
      %1213 = vmatprep.subr.mxu0 0.0
      %1214 = vmatpush1.msra.mxu0 0.0
      %1215 = vmatprep.subr.mxu0 0.0
      %1216 = vmatpush1.msra.mxu0 0.0
      %1217 = vmatprep.subr.mxu0 0.0
      %1218 = vmatpush1.msra.mxu0 0.0
      %1219 = vmatprep.subr.mxu0 0.0
      %1220 = vmatpush1.msra.mxu0 0.0
      %1221 = vmatprep.subr.mxu0 0.0
      %1222 = vmatpush1.msra.mxu0 0.0
      %1223 = vmatprep.subr.mxu0 0.0
      %1224 = vmatpush1.msra.mxu0 0.0
      %1225 = vmatprep.subr.mxu0 0.0
      %1226 = vmatpush1.msra.mxu0 0.0
      %1227 = vmatprep.subr.mxu0 0.0
      %1228 = vmatpush1.msra.mxu0 0.0
      %1229 = vmatprep.subr.mxu0 0.0
      %1230 = vmatpush1.msra.mxu0 0.0
      %1231 = vmatprep.subr.mxu0 0.0
      %1232 = vmatpush1.msra.mxu0 0.0
      %1233 = vmatprep.mubr.f32.mxu0 0.0
      %1234 = vmatmul.mubr.f32.gmra.mrb[0].mxu0 %v1162
      %v1235 = vpop.f32.mrb[0].mxu0
      %v1236 = vadd.f32 0.0, %v1235
      %v1237 = vpop.f32.mrb[0].mxu0
      %1238 = vmatprep.mubr.f32.mxu0 0.0
      %1239 = vmatmul.mubr.f32.gmra.mrb[0].mxu0 %v1165
      %v1240 = vpop.f32.mrb[0].mxu0
      %v1241 = vadd.f32 0.0, %v1240
      %v1242 = vpop.f32.mrb[0].mxu0
      %1243 = vdwg.mxu0
      %v1244 = vpack.c.bf16 %v1241, %v1236
      %v1246 = vunpack.c.l.b16 %v276
      %v1247 = vpack.c.b16 %v1246, %v1246
      %v1248 = vrot.slane %v1247, 2
      %v1250 = vsel %vm285, %v1244, 0
      %v1253 = vsel %vm696, %v1248, 0
      %1255 = vmatprep.subr.bf16.mxu0 0
      %1256 = vmatpush1.bf16.msra.mxu0 %v1253
      %1257 = vmatprep.subr.bf16.mxu0 0
      %1258 = vmatpush1.bf16.msra.mxu0 0
      %1259 = vmatprep.subr.bf16.mxu0 0
      %1260 = vmatpush1.bf16.msra.mxu0 0
      %1261 = vmatprep.subr.bf16.mxu0 0
      %1262 = vmatpush1.bf16.msra.mxu0 0
      %1263 = vmatprep.subr.bf16.mxu0 0
      %1264 = vmatpush1.bf16.msra.mxu0 0
      %1265 = vmatprep.subr.bf16.mxu0 0
      %1266 = vmatpush1.bf16.msra.mxu0 0
      %1267 = vmatprep.subr.bf16.mxu0 0
      %1268 = vmatpush1.bf16.msra.mxu0 0
      %1269 = vmatprep.subr.bf16.mxu0 0
      %1270 = vmatpush1.bf16.msra.mxu0 0
      %1271 = vmatprep.subr.bf16.mxu0 0
      %1272 = vmatpush1.bf16.msra.mxu0 0
      %1273 = vmatprep.subr.bf16.mxu0 0
      %1274 = vmatpush1.bf16.msra.mxu0 0
      %1275 = vmatprep.subr.bf16.mxu0 0
      %1276 = vmatpush1.bf16.msra.mxu0 0
      %1277 = vmatprep.subr.bf16.mxu0 0
      %1278 = vmatpush1.bf16.msra.mxu0 0
      %1279 = vmatprep.subr.bf16.mxu0 0
      %1280 = vmatpush1.bf16.msra.mxu0 0
      %1281 = vmatprep.subr.bf16.mxu0 0
      %1282 = vmatpush1.bf16.msra.mxu0 0
      %1283 = vmatprep.subr.bf16.mxu0 0
      %1284 = vmatpush1.bf16.msra.mxu0 0
      %1285 = vmatprep.subr.bf16.mxu0 0
      %1286 = vmatpush1.bf16.msra.mxu0 0
      %1287 = vmatprep.mubr.bf16.mxu0 0
      %1288 = vmatmul.mubr.bf16.gmra.mrb[0].mxu0 %v1250
      %v1289 = vpop.f32.mrb[0].mxu0
      %v1290 = vadd.f32 0.0, %v1289
      %v1291 = vpop.f32.mrb[0].mxu0
      %v1292 = vpop.f32.mrb[0].mxu0
      %v1293 = vadd.f32 0.0, %v1292
      %v1294 = vpop.f32.mrb[0].mxu0
      %1295 = vdwg.mxu0
      %v1296 = vadd.f32 %v1039, %v1290
      %v1297 = vadd.f32 %v1040, %v1293
      %1298 = vrot.lane.b32.xlu0 %v273, 112
      %v1299 = vpop.permute.xlu0 %1298
      %1300 = vrot.lane.b32.xlu0 %v274, 112
      %v1301 = vpop.permute.xlu0 %1300
      %1302 = vrot.lane.b32.xlu0 %v273, 80
      %v1303 = vpop.permute.xlu0 %1302
      %1304 = vrot.lane.b32.xlu0 %v274, 80
      %v1305 = vpop.permute.xlu0 %1304
      %v1306 = vsel %vm285, %v1299, 0
      %v1308 = vsel %vm285, %v1301, 0
      %v1310 = vsel %vm285, %v1303, 0
      %v1312 = vsel %vm285, %v1305, 0
      %1314 = vmatprep.subr.mxu0 0.0
      %1315 = vmatpush1.xpose.msra.mxu0 %v1310
      %1316 = vmatprep.subr.mxu0 0.0
      %1317 = vmatpush1.xpose.msra.mxu0 %v1312
      %1318 = vmatprep.subr.mxu0 0.0
      %1319 = vmatpush1.xpose.msra.mxu0 0.0
      %1320 = vmatprep.subr.mxu0 0.0
      %1321 = vmatpush1.xpose.msra.mxu0 0.0
      %1322 = vmatprep.subr.mxu0 0.0
      %1323 = vmatpush1.xpose.msra.mxu0 0.0
      %1324 = vmatprep.subr.mxu0 0.0
      %1325 = vmatpush1.xpose.msra.mxu0 0.0
      %1326 = vmatprep.subr.mxu0 0.0
      %1327 = vmatpush1.xpose.msra.mxu0 0.0
      %1328 = vmatprep.subr.mxu0 0.0
      %1329 = vmatpush1.xpose.msra.mxu0 0.0
      %1330 = vmatprep.subr.mxu0 0.0
      %1331 = vmatpush1.xpose.msra.mxu0 0.0
      %1332 = vmatprep.subr.mxu0 0.0
      %1333 = vmatpush1.xpose.msra.mxu0 0.0
      %1334 = vmatprep.subr.mxu0 0.0
      %1335 = vmatpush1.xpose.msra.mxu0 0.0
      %1336 = vmatprep.subr.mxu0 0.0
      %1337 = vmatpush1.xpose.msra.mxu0 0.0
      %1338 = vmatprep.subr.mxu0 0.0
      %1339 = vmatpush1.xpose.msra.mxu0 0.0
      %1340 = vmatprep.subr.mxu0 0.0
      %1341 = vmatpush1.xpose.msra.mxu0 0.0
      %1342 = vmatprep.subr.mxu0 0.0
      %1343 = vmatpush1.xpose.msra.mxu0 0.0
      %1344 = vmatprep.subr.mxu0 0.0
      %1345 = vmatpush1.xpose.msra.mxu0 0.0
      %1346 = vmatprep.subr.mxu0 0.0
      %1347 = vmatpush1.xpose.msra.mxu0 0.0
      %1348 = vmatprep.subr.mxu0 0.0
      %1349 = vmatpush1.xpose.msra.mxu0 0.0
      %1350 = vmatprep.subr.mxu0 0.0
      %1351 = vmatpush1.xpose.msra.mxu0 0.0
      %1352 = vmatprep.subr.mxu0 0.0
      %1353 = vmatpush1.xpose.msra.mxu0 0.0
      %1354 = vmatprep.subr.mxu0 0.0
      %1355 = vmatpush1.xpose.msra.mxu0 0.0
      %1356 = vmatprep.subr.mxu0 0.0
      %1357 = vmatpush1.xpose.msra.mxu0 0.0
      %1358 = vmatprep.subr.mxu0 0.0
      %1359 = vmatpush1.xpose.msra.mxu0 0.0
      %1360 = vmatprep.subr.mxu0 0.0
      %1361 = vmatpush1.xpose.msra.mxu0 0.0
      %1362 = vmatprep.subr.mxu0 0.0
      %1363 = vmatpush1.xpose.msra.mxu0 0.0
      %1364 = vmatprep.subr.mxu0 0.0
      %1365 = vmatpush1.xpose.msra.mxu0 0.0
      %1366 = vmatprep.subr.mxu0 0.0
      %1367 = vmatpush1.xpose.msra.mxu0 0.0
      %1368 = vmatprep.subr.mxu0 0.0
      %1369 = vmatpush1.xpose.msra.mxu0 0.0
      %1370 = vmatprep.subr.mxu0 0.0
      %1371 = vmatpush1.xpose.msra.mxu0 0.0
      %1372 = vmatprep.subr.mxu0 0.0
      %1373 = vmatpush1.xpose.msra.mxu0 0.0
      %1374 = vmatprep.subr.mxu0 0.0
      %1375 = vmatpush1.xpose.msra.mxu0 0.0
      %1376 = vmatprep.subr.mxu0 0.0
      %1377 = vmatpush1.xpose.msra.mxu0 0.0
      %1378 = vmatprep.mubr.f32.mxu0 0.0
      %1379 = vmatmul.mubr.f32.gmra.mrb[0].mxu0 %v1306
      %v1380 = vpop.f32.mrb[0].mxu0
      %v1381 = vadd.f32 0.0, %v1380
      %v1382 = vpop.f32.mrb[0].mxu0
      %1383 = vmatprep.mubr.f32.mxu0 0.0
      %1384 = vmatmul.mubr.f32.gmra.mrb[0].mxu0 %v1308
      %v1385 = vpop.f32.mrb[0].mxu0
      %v1386 = vadd.f32 0.0, %v1385
      %v1387 = vpop.f32.mrb[0].mxu0
      %1388 = vdwg.mxu0
      %v1389 = vmul.f32 %v1381, 0.5
      %v1390 = vmul.f32 %v1386, 0.5
      %v1391 = vsel %vm371, %v1389, -inf
      %1392 = vmax.xlane.f32.xlu0 %v1391
      %v1393 = vpop.xlane.xlu0 %1392
      %v1394 = vsel %vm375, %v1390, -inf
      %1395 = vmax.xlane.f32.xlu0 %v1394
      %v1396 = vpop.xlane.xlu0 %1395
      %v1397 = vsub.f32 %v1389, %v1393
      %v1398 = vsub.f32 %v1390, %v1396
      %v1399 = vmul.f32 %v1397, 1.442695
      %v1400 = vpow.pop %v1399
      %v1401 = vmul.f32 %v1398, 1.442695
      %v1402 = vpow.pop %v1401
      %v1403 = vsel %vm371, %v1400, 0.0
      %1404 = vadd.xlane.f32.xlu0 %v1403
      %v1405 = vpop.xlane.xlu0 %1404
      %v1406 = vsel %vm375, %v1402, 0.0
      %1407 = vadd.xlane.f32.xlu0 %v1406
      %v1408 = vpop.xlane.xlu0 %1407
      %v1409 = vrcp.pop %v1405
      %v1410 = vrcp.pop %v1408
      %v1411 = vmul.f32 %v1400, %v1409
      %v1412 = vmul.f32 %v1402, %v1410
      %1413 = vrot.lane.b32.xlu0 %v273, 48
      %v1414 = vpop.permute.xlu0 %1413
      %1415 = vrot.lane.b32.xlu0 %v274, 48
      %v1416 = vpop.permute.xlu0 %1415
      %v1419 = vsel %vm371, %v1411, 0
      %v1422 = vsel %vm371, %v1412, 0
      %v1424 = vsel %vm406, %v1416, 0
      %1426 = vmatprep.subr.mxu0 0.0
      %1427 = vmatpush1.msra.mxu0 %v1414
      %1428 = vmatprep.subr.mxu0 0.0
      %1429 = vmatpush1.msra.mxu0 %v1424
      %1430 = vmatprep.subr.mxu0 0.0
      %1431 = vmatpush1.msra.mxu0 0.0
      %1432 = vmatprep.subr.mxu0 0.0
      %1433 = vmatpush1.msra.mxu0 0.0
      %1434 = vmatprep.subr.mxu0 0.0
      %1435 = vmatpush1.msra.mxu0 0.0
      %1436 = vmatprep.subr.mxu0 0.0
      %1437 = vmatpush1.msra.mxu0 0.0
      %1438 = vmatprep.subr.mxu0 0.0
      %1439 = vmatpush1.msra.mxu0 0.0
      %1440 = vmatprep.subr.mxu0 0.0
      %1441 = vmatpush1.msra.mxu0 0.0
      %1442 = vmatprep.subr.mxu0 0.0
      %1443 = vmatpush1.msra.mxu0 0.0
      %1444 = vmatprep.subr.mxu0 0.0
      %1445 = vmatpush1.msra.mxu0 0.0
      %1446 = vmatprep.subr.mxu0 0.0
      %1447 = vmatpush1.msra.mxu0 0.0
      %1448 = vmatprep.subr.mxu0 0.0
      %1449 = vmatpush1.msra.mxu0 0.0
      %1450 = vmatprep.subr.mxu0 0.0
      %1451 = vmatpush1.msra.mxu0 0.0
      %1452 = vmatprep.subr.mxu0 0.0
      %1453 = vmatpush1.msra.mxu0 0.0
      %1454 = vmatprep.subr.mxu0 0.0
      %1455 = vmatpush1.msra.mxu0 0.0
      %1456 = vmatprep.subr.mxu0 0.0
      %1457 = vmatpush1.msra.mxu0 0.0
      %1458 = vmatprep.subr.mxu0 0.0
      %1459 = vmatpush1.msra.mxu0 0.0
      %1460 = vmatprep.subr.mxu0 0.0
      %1461 = vmatpush1.msra.mxu0 0.0
      %1462 = vmatprep.subr.mxu0 0.0
      %1463 = vmatpush1.msra.mxu0 0.0
      %1464 = vmatprep.subr.mxu0 0.0
      %1465 = vmatpush1.msra.mxu0 0.0
      %1466 = vmatprep.subr.mxu0 0.0
      %1467 = vmatpush1.msra.mxu0 0.0
      %1468 = vmatprep.subr.mxu0 0.0
      %1469 = vmatpush1.msra.mxu0 0.0
      %1470 = vmatprep.subr.mxu0 0.0
      %1471 = vmatpush1.msra.mxu0 0.0
      %1472 = vmatprep.subr.mxu0 0.0
      %1473 = vmatpush1.msra.mxu0 0.0
      %1474 = vmatprep.subr.mxu0 0.0
      %1475 = vmatpush1.msra.mxu0 0.0
      %1476 = vmatprep.subr.mxu0 0.0
      %1477 = vmatpush1.msra.mxu0 0.0
      %1478 = vmatprep.subr.mxu0 0.0
      %1479 = vmatpush1.msra.mxu0 0.0
      %1480 = vmatprep.subr.mxu0 0.0
      %1481 = vmatpush1.msra.mxu0 0.0
      %1482 = vmatprep.subr.mxu0 0.0
      %1483 = vmatpush1.msra.mxu0 0.0
      %1484 = vmatprep.subr.mxu0 0.0
      %1485 = vmatpush1.msra.mxu0 0.0
      %1486 = vmatprep.subr.mxu0 0.0
      %1487 = vmatpush1.msra.mxu0 0.0
      %1488 = vmatprep.subr.mxu0 0.0
      %1489 = vmatpush1.msra.mxu0 0.0
      %1490 = vmatprep.mubr.f32.mxu0 0.0
      %1491 = vmatmul.mubr.f32.gmra.mrb[0].mxu0 %v1419
      %v1492 = vpop.f32.mrb[0].mxu0
      %v1493 = vadd.f32 0.0, %v1492
      %v1494 = vpop.f32.mrb[0].mxu0
      %1495 = vmatprep.mubr.f32.mxu0 0.0
      %1496 = vmatmul.mubr.f32.gmra.mrb[0].mxu0 %v1422
      %v1497 = vpop.f32.mrb[0].mxu0
      %v1498 = vadd.f32 0.0, %v1497
      %v1499 = vpop.f32.mrb[0].mxu0
      %1500 = vdwg.mxu0
      %v1501 = vpack.c.bf16 %v1498, %v1493
      %v1503 = vsel %vm285, %v1501, 0
      %v1506 = vsel %vm696, %v277, 0
      %1508 = vmatprep.subr.bf16.mxu0 0
      %1509 = vmatpush1.bf16.msra.mxu0 %v1506
      %1510 = vmatprep.subr.bf16.mxu0 0
      %1511 = vmatpush1.bf16.msra.mxu0 0
      %1512 = vmatprep.subr.bf16.mxu0 0
      %1513 = vmatpush1.bf16.msra.mxu0 0
      %1514 = vmatprep.subr.bf16.mxu0 0
      %1515 = vmatpush1.bf16.msra.mxu0 0
      %1516 = vmatprep.subr.bf16.mxu0 0
      %1517 = vmatpush1.bf16.msra.mxu0 0
      %1518 = vmatprep.subr.bf16.mxu0 0
      %1519 = vmatpush1.bf16.msra.mxu0 0
      %1520 = vmatprep.subr.bf16.mxu0 0
      %1521 = vmatpush1.bf16.msra.mxu0 0
      %1522 = vmatprep.subr.bf16.mxu0 0
      %1523 = vmatpush1.bf16.msra.mxu0 0
      %1524 = vmatprep.subr.bf16.mxu0 0
      %1525 = vmatpush1.bf16.msra.mxu0 0
      %1526 = vmatprep.subr.bf16.mxu0 0
      %1527 = vmatpush1.bf16.msra.mxu0 0
      %1528 = vmatprep.subr.bf16.mxu0 0
      %1529 = vmatpush1.bf16.msra.mxu0 0
      %1530 = vmatprep.subr.bf16.mxu0 0
      %1531 = vmatpush1.bf16.msra.mxu0 0
      %1532 = vmatprep.subr.bf16.mxu0 0
      %1533 = vmatpush1.bf16.msra.mxu0 0
      %1534 = vmatprep.subr.bf16.mxu0 0
      %1535 = vmatpush1.bf16.msra.mxu0 0
      %1536 = vmatprep.subr.bf16.mxu0 0
      %1537 = vmatpush1.bf16.msra.mxu0 0
      %1538 = vmatprep.subr.bf16.mxu0 0
      %1539 = vmatpush1.bf16.msra.mxu0 0
      %1540 = vmatprep.mubr.bf16.mxu0 0
      %1541 = vmatmul.mubr.bf16.gmra.mrb[0].mxu0 %v1503
      %v1542 = vpop.f32.mrb[0].mxu0
      %v1543 = vadd.f32 0.0, %v1542
      %v1544 = vpop.f32.mrb[0].mxu0
      %v1545 = vpop.f32.mrb[0].mxu0
      %v1546 = vadd.f32 0.0, %v1545
      %v1547 = vpop.f32.mrb[0].mxu0
      %1548 = vdwg.mxu0
      %v1549 = vadd.f32 %v1296, %v1543
      %v1550 = vadd.f32 %v1297, %v1546
      %1551 = vrot.lane.b32.xlu0 %v273, 108
      %v1552 = vpop.permute.xlu0 %1551
      %1553 = vrot.lane.b32.xlu0 %v274, 108
      %v1554 = vpop.permute.xlu0 %1553
      %1555 = vrot.lane.b32.xlu0 %v273, 76
      %v1556 = vpop.permute.xlu0 %1555
      %1557 = vrot.lane.b32.xlu0 %v274, 76
      %v1558 = vpop.permute.xlu0 %1557
      %v1559 = vsel %vm285, %v1552, 0
      %v1561 = vsel %vm285, %v1554, 0
      %v1563 = vsel %vm285, %v1556, 0
      %v1565 = vsel %vm285, %v1558, 0
      %1567 = vmatprep.subr.mxu0 0.0
      %1568 = vmatpush1.xpose.msra.mxu0 %v1563
      %1569 = vmatprep.subr.mxu0 0.0
      %1570 = vmatpush1.xpose.msra.mxu0 %v1565
      %1571 = vmatprep.subr.mxu0 0.0
      %1572 = vmatpush1.xpose.msra.mxu0 0.0
      %1573 = vmatprep.subr.mxu0 0.0
      %1574 = vmatpush1.xpose.msra.mxu0 0.0
      %1575 = vmatprep.subr.mxu0 0.0
      %1576 = vmatpush1.xpose.msra.mxu0 0.0
      %1577 = vmatprep.subr.mxu0 0.0
      %1578 = vmatpush1.xpose.msra.mxu0 0.0
      %1579 = vmatprep.subr.mxu0 0.0
      %1580 = vmatpush1.xpose.msra.mxu0 0.0
      %1581 = vmatprep.subr.mxu0 0.0
      %1582 = vmatpush1.xpose.msra.mxu0 0.0
      %1583 = vmatprep.subr.mxu0 0.0
      %1584 = vmatpush1.xpose.msra.mxu0 0.0
      %1585 = vmatprep.subr.mxu0 0.0
      %1586 = vmatpush1.xpose.msra.mxu0 0.0
      %1587 = vmatprep.subr.mxu0 0.0
      %1588 = vmatpush1.xpose.msra.mxu0 0.0
      %1589 = vmatprep.subr.mxu0 0.0
      %1590 = vmatpush1.xpose.msra.mxu0 0.0
      %1591 = vmatprep.subr.mxu0 0.0
      %1592 = vmatpush1.xpose.msra.mxu0 0.0
      %1593 = vmatprep.subr.mxu0 0.0
      %1594 = vmatpush1.xpose.msra.mxu0 0.0
      %1595 = vmatprep.subr.mxu0 0.0
      %1596 = vmatpush1.xpose.msra.mxu0 0.0
      %1597 = vmatprep.subr.mxu0 0.0
      %1598 = vmatpush1.xpose.msra.mxu0 0.0
      %1599 = vmatprep.subr.mxu0 0.0
      %1600 = vmatpush1.xpose.msra.mxu0 0.0
      %1601 = vmatprep.subr.mxu0 0.0
      %1602 = vmatpush1.xpose.msra.mxu0 0.0
      %1603 = vmatprep.subr.mxu0 0.0
      %1604 = vmatpush1.xpose.msra.mxu0 0.0
      %1605 = vmatprep.subr.mxu0 0.0
      %1606 = vmatpush1.xpose.msra.mxu0 0.0
      %1607 = vmatprep.subr.mxu0 0.0
      %1608 = vmatpush1.xpose.msra.mxu0 0.0
      %1609 = vmatprep.subr.mxu0 0.0
      %1610 = vmatpush1.xpose.msra.mxu0 0.0
      %1611 = vmatprep.subr.mxu0 0.0
      %1612 = vmatpush1.xpose.msra.mxu0 0.0
      %1613 = vmatprep.subr.mxu0 0.0
      %1614 = vmatpush1.xpose.msra.mxu0 0.0
      %1615 = vmatprep.subr.mxu0 0.0
      %1616 = vmatpush1.xpose.msra.mxu0 0.0
      %1617 = vmatprep.subr.mxu0 0.0
      %1618 = vmatpush1.xpose.msra.mxu0 0.0
      %1619 = vmatprep.subr.mxu0 0.0
      %1620 = vmatpush1.xpose.msra.mxu0 0.0
      %1621 = vmatprep.subr.mxu0 0.0
      %1622 = vmatpush1.xpose.msra.mxu0 0.0
      %1623 = vmatprep.subr.mxu0 0.0
      %1624 = vmatpush1.xpose.msra.mxu0 0.0
      %1625 = vmatprep.subr.mxu0 0.0
      %1626 = vmatpush1.xpose.msra.mxu0 0.0
      %1627 = vmatprep.subr.mxu0 0.0
      %1628 = vmatpush1.xpose.msra.mxu0 0.0
      %1629 = vmatprep.subr.mxu0 0.0
      %1630 = vmatpush1.xpose.msra.mxu0 0.0
      %1631 = vmatprep.mubr.f32.mxu0 0.0
      %1632 = vmatmul.mubr.f32.gmra.mrb[0].mxu0 %v1559
      %v1633 = vpop.f32.mrb[0].mxu0
      %v1634 = vadd.f32 0.0, %v1633
      %v1635 = vpop.f32.mrb[0].mxu0
      %1636 = vmatprep.mubr.f32.mxu0 0.0
      %1637 = vmatmul.mubr.f32.gmra.mrb[0].mxu0 %v1561
      %v1638 = vpop.f32.mrb[0].mxu0
      %v1639 = vadd.f32 0.0, %v1638
      %v1640 = vpop.f32.mrb[0].mxu0
      %1641 = vdwg.mxu0
      %v1642 = vmul.f32 %v1634, 0.5
      %v1643 = vmul.f32 %v1639, 0.5
      %v1644 = vsel %vm371, %v1642, -inf
      %1645 = vmax.xlane.f32.xlu0 %v1644
      %v1646 = vpop.xlane.xlu0 %1645
      %v1647 = vsel %vm375, %v1643, -inf
      %1648 = vmax.xlane.f32.xlu0 %v1647
      %v1649 = vpop.xlane.xlu0 %1648
      %v1650 = vsub.f32 %v1642, %v1646
      %v1651 = vsub.f32 %v1643, %v1649
      %v1652 = vmul.f32 %v1650, 1.442695
      %v1653 = vpow.pop %v1652
      %v1654 = vmul.f32 %v1651, 1.442695
      %v1655 = vpow.pop %v1654
      %v1656 = vsel %vm371, %v1653, 0.0
      %1657 = vadd.xlane.f32.xlu0 %v1656
      %v1658 = vpop.xlane.xlu0 %1657
      %v1659 = vsel %vm375, %v1655, 0.0
      %1660 = vadd.xlane.f32.xlu0 %v1659
      %v1661 = vpop.xlane.xlu0 %1660
      %v1662 = vrcp.pop %v1658
      %v1663 = vrcp.pop %v1661
      %v1664 = vmul.f32 %v1653, %v1662
      %v1665 = vmul.f32 %v1655, %v1663
      %1666 = vrot.lane.b32.xlu0 %v273, 44
      %v1667 = vpop.permute.xlu0 %1666
      %1668 = vrot.lane.b32.xlu0 %v274, 44
      %v1669 = vpop.permute.xlu0 %1668
      %v1672 = vsel %vm371, %v1664, 0
      %v1675 = vsel %vm371, %v1665, 0
      %v1677 = vsel %vm406, %v1669, 0
      %1679 = vmatprep.subr.mxu0 0.0
      %1680 = vmatpush1.msra.mxu0 %v1667
      %1681 = vmatprep.subr.mxu0 0.0
      %1682 = vmatpush1.msra.mxu0 %v1677
      %1683 = vmatprep.subr.mxu0 0.0
      %1684 = vmatpush1.msra.mxu0 0.0
      %1685 = vmatprep.subr.mxu0 0.0
      %1686 = vmatpush1.msra.mxu0 0.0
      %1687 = vmatprep.subr.mxu0 0.0
      %1688 = vmatpush1.msra.mxu0 0.0
      %1689 = vmatprep.subr.mxu0 0.0
      %1690 = vmatpush1.msra.mxu0 0.0
      %1691 = vmatprep.subr.mxu0 0.0
      %1692 = vmatpush1.msra.mxu0 0.0
      %1693 = vmatprep.subr.mxu0 0.0
      %1694 = vmatpush1.msra.mxu0 0.0
      %1695 = vmatprep.subr.mxu0 0.0
      %1696 = vmatpush1.msra.mxu0 0.0
      %1697 = vmatprep.subr.mxu0 0.0
      %1698 = vmatpush1.msra.mxu0 0.0
      %1699 = vmatprep.subr.mxu0 0.0
      %1700 = vmatpush1.msra.mxu0 0.0
      %1701 = vmatprep.subr.mxu0 0.0
      %1702 = vmatpush1.msra.mxu0 0.0
      %1703 = vmatprep.subr.mxu0 0.0
      %1704 = vmatpush1.msra.mxu0 0.0
      %1705 = vmatprep.subr.mxu0 0.0
      %1706 = vmatpush1.msra.mxu0 0.0
      %1707 = vmatprep.subr.mxu0 0.0
      %1708 = vmatpush1.msra.mxu0 0.0
      %1709 = vmatprep.subr.mxu0 0.0
      %1710 = vmatpush1.msra.mxu0 0.0
      %1711 = vmatprep.subr.mxu0 0.0
      %1712 = vmatpush1.msra.mxu0 0.0
      %1713 = vmatprep.subr.mxu0 0.0
      %1714 = vmatpush1.msra.mxu0 0.0
      %1715 = vmatprep.subr.mxu0 0.0
      %1716 = vmatpush1.msra.mxu0 0.0
      %1717 = vmatprep.subr.mxu0 0.0
      %1718 = vmatpush1.msra.mxu0 0.0
      %1719 = vmatprep.subr.mxu0 0.0
      %1720 = vmatpush1.msra.mxu0 0.0
      %1721 = vmatprep.subr.mxu0 0.0
      %1722 = vmatpush1.msra.mxu0 0.0
      %1723 = vmatprep.subr.mxu0 0.0
      %1724 = vmatpush1.msra.mxu0 0.0
      %1725 = vmatprep.subr.mxu0 0.0
      %1726 = vmatpush1.msra.mxu0 0.0
      %1727 = vmatprep.subr.mxu0 0.0
      %1728 = vmatpush1.msra.mxu0 0.0
      %1729 = vmatprep.subr.mxu0 0.0
      %1730 = vmatpush1.msra.mxu0 0.0
      %1731 = vmatprep.subr.mxu0 0.0
      %1732 = vmatpush1.msra.mxu0 0.0
      %1733 = vmatprep.subr.mxu0 0.0
      %1734 = vmatpush1.msra.mxu0 0.0
      %1735 = vmatprep.subr.mxu0 0.0
      %1736 = vmatpush1.msra.mxu0 0.0
      %1737 = vmatprep.subr.mxu0 0.0
      %1738 = vmatpush1.msra.mxu0 0.0
      %1739 = vmatprep.subr.mxu0 0.0
      %1740 = vmatpush1.msra.mxu0 0.0
      %1741 = vmatprep.subr.mxu0 0.0
      %1742 = vmatpush1.msra.mxu0 0.0
      %1743 = vmatprep.mubr.f32.mxu0 0.0
      %1744 = vmatmul.mubr.f32.gmra.mrb[0].mxu0 %v1672
      %v1745 = vpop.f32.mrb[0].mxu0
      %v1746 = vadd.f32 0.0, %v1745
      %v1747 = vpop.f32.mrb[0].mxu0
      %1748 = vmatprep.mubr.f32.mxu0 0.0
      %1749 = vmatmul.mubr.f32.gmra.mrb[0].mxu0 %v1675
      %v1750 = vpop.f32.mrb[0].mxu0
      %v1751 = vadd.f32 0.0, %v1750
      %v1752 = vpop.f32.mrb[0].mxu0
      %1753 = vdwg.mxu0
      %v1754 = vpack.c.bf16 %v1751, %v1746
      %v1756 = vunpack.c.l.b16 %v277
      %v1757 = vpack.c.b16 %v1756, %v1756
      %v1758 = vrot.slane %v1757, 2
      %v1760 = vsel %vm285, %v1754, 0
      %v1763 = vsel %vm696, %v1758, 0
      %1765 = vmatprep.subr.bf16.mxu0 0
      %1766 = vmatpush1.bf16.msra.mxu0 %v1763
      %1767 = vmatprep.subr.bf16.mxu0 0
      %1768 = vmatpush1.bf16.msra.mxu0 0
      %1769 = vmatprep.subr.bf16.mxu0 0
      %1770 = vmatpush1.bf16.msra.mxu0 0
      %1771 = vmatprep.subr.bf16.mxu0 0
      %1772 = vmatpush1.bf16.msra.mxu0 0
      %1773 = vmatprep.subr.bf16.mxu0 0
      %1774 = vmatpush1.bf16.msra.mxu0 0
      %1775 = vmatprep.subr.bf16.mxu0 0
      %1776 = vmatpush1.bf16.msra.mxu0 0
      %1777 = vmatprep.subr.bf16.mxu0 0
      %1778 = vmatpush1.bf16.msra.mxu0 0
      %1779 = vmatprep.subr.bf16.mxu0 0
      %1780 = vmatpush1.bf16.msra.mxu0 0
      %1781 = vmatprep.subr.bf16.mxu0 0
      %1782 = vmatpush1.bf16.msra.mxu0 0
      %1783 = vmatprep.subr.bf16.mxu0 0
      %1784 = vmatpush1.bf16.msra.mxu0 0
      %1785 = vmatprep.subr.bf16.mxu0 0
      %1786 = vmatpush1.bf16.msra.mxu0 0
      %1787 = vmatprep.subr.bf16.mxu0 0
      %1788 = vmatpush1.bf16.msra.mxu0 0
      %1789 = vmatprep.subr.bf16.mxu0 0
      %1790 = vmatpush1.bf16.msra.mxu0 0
      %1791 = vmatprep.subr.bf16.mxu0 0
      %1792 = vmatpush1.bf16.msra.mxu0 0
      %1793 = vmatprep.subr.bf16.mxu0 0
      %1794 = vmatpush1.bf16.msra.mxu0 0
      %1795 = vmatprep.subr.bf16.mxu0 0
      %1796 = vmatpush1.bf16.msra.mxu0 0
      %1797 = vmatprep.mubr.bf16.mxu0 0
      %1798 = vmatmul.mubr.bf16.gmra.mrb[0].mxu0 %v1760
      %v1799 = vpop.f32.mrb[0].mxu0
      %v1800 = vadd.f32 0.0, %v1799
      %v1801 = vpop.f32.mrb[0].mxu0
      %v1802 = vpop.f32.mrb[0].mxu0
      %v1803 = vadd.f32 0.0, %v1802
      %v1804 = vpop.f32.mrb[0].mxu0
      %1805 = vdwg.mxu0
      %v1806 = vadd.f32 %v1549, %v1800
      %v1807 = vadd.f32 %v1550, %v1803
      %1808 = vrot.lane.b32.xlu0 %v273, 104
      %v1809 = vpop.permute.xlu0 %1808
      %1810 = vrot.lane.b32.xlu0 %v274, 104
      %v1811 = vpop.permute.xlu0 %1810
      %1812 = vrot.lane.b32.xlu0 %v273, 72
      %v1813 = vpop.permute.xlu0 %1812
      %1814 = vrot.lane.b32.xlu0 %v274, 72
      %v1815 = vpop.permute.xlu0 %1814
      %v1816 = vsel %vm285, %v1809, 0
      %v1818 = vsel %vm285, %v1811, 0
      %v1820 = vsel %vm285, %v1813, 0
      %v1822 = vsel %vm285, %v1815, 0
      %1824 = vmatprep.subr.mxu0 0.0
      %1825 = vmatpush1.xpose.msra.mxu0 %v1820
      %1826 = vmatprep.subr.mxu0 0.0
      %1827 = vmatpush1.xpose.msra.mxu0 %v1822
      %1828 = vmatprep.subr.mxu0 0.0
      %1829 = vmatpush1.xpose.msra.mxu0 0.0
      %1830 = vmatprep.subr.mxu0 0.0
      %1831 = vmatpush1.xpose.msra.mxu0 0.0
      %1832 = vmatprep.subr.mxu0 0.0
      %1833 = vmatpush1.xpose.msra.mxu0 0.0
      %1834 = vmatprep.subr.mxu0 0.0
      %1835 = vmatpush1.xpose.msra.mxu0 0.0
      %1836 = vmatprep.subr.mxu0 0.0
      %1837 = vmatpush1.xpose.msra.mxu0 0.0
      %1838 = vmatprep.subr.mxu0 0.0
      %1839 = vmatpush1.xpose.msra.mxu0 0.0
      %1840 = vmatprep.subr.mxu0 0.0
      %1841 = vmatpush1.xpose.msra.mxu0 0.0
      %1842 = vmatprep.subr.mxu0 0.0
      %1843 = vmatpush1.xpose.msra.mxu0 0.0
      %1844 = vmatprep.subr.mxu0 0.0
      %1845 = vmatpush1.xpose.msra.mxu0 0.0
      %1846 = vmatprep.subr.mxu0 0.0
      %1847 = vmatpush1.xpose.msra.mxu0 0.0
      %1848 = vmatprep.subr.mxu0 0.0
      %1849 = vmatpush1.xpose.msra.mxu0 0.0
      %1850 = vmatprep.subr.mxu0 0.0
      %1851 = vmatpush1.xpose.msra.mxu0 0.0
      %1852 = vmatprep.subr.mxu0 0.0
      %1853 = vmatpush1.xpose.msra.mxu0 0.0
      %1854 = vmatprep.subr.mxu0 0.0
      %1855 = vmatpush1.xpose.msra.mxu0 0.0
      %1856 = vmatprep.subr.mxu0 0.0
      %1857 = vmatpush1.xpose.msra.mxu0 0.0
      %1858 = vmatprep.subr.mxu0 0.0
      %1859 = vmatpush1.xpose.msra.mxu0 0.0
      %1860 = vmatprep.subr.mxu0 0.0
      %1861 = vmatpush1.xpose.msra.mxu0 0.0
      %1862 = vmatprep.subr.mxu0 0.0
      %1863 = vmatpush1.xpose.msra.mxu0 0.0
      %1864 = vmatprep.subr.mxu0 0.0
      %1865 = vmatpush1.xpose.msra.mxu0 0.0
      %1866 = vmatprep.subr.mxu0 0.0
      %1867 = vmatpush1.xpose.msra.mxu0 0.0
      %1868 = vmatprep.subr.mxu0 0.0
      %1869 = vmatpush1.xpose.msra.mxu0 0.0
      %1870 = vmatprep.subr.mxu0 0.0
      %1871 = vmatpush1.xpose.msra.mxu0 0.0
      %1872 = vmatprep.subr.mxu0 0.0
      %1873 = vmatpush1.xpose.msra.mxu0 0.0
      %1874 = vmatprep.subr.mxu0 0.0
      %1875 = vmatpush1.xpose.msra.mxu0 0.0
      %1876 = vmatprep.subr.mxu0 0.0
      %1877 = vmatpush1.xpose.msra.mxu0 0.0
      %1878 = vmatprep.subr.mxu0 0.0
      %1879 = vmatpush1.xpose.msra.mxu0 0.0
      %1880 = vmatprep.subr.mxu0 0.0
      %1881 = vmatpush1.xpose.msra.mxu0 0.0
      %1882 = vmatprep.subr.mxu0 0.0
      %1883 = vmatpush1.xpose.msra.mxu0 0.0
      %1884 = vmatprep.subr.mxu0 0.0
      %1885 = vmatpush1.xpose.msra.mxu0 0.0
      %1886 = vmatprep.subr.mxu0 0.0
      %1887 = vmatpush1.xpose.msra.mxu0 0.0
      %1888 = vmatprep.mubr.f32.mxu0 0.0
      %1889 = vmatmul.mubr.f32.gmra.mrb[0].mxu0 %v1816
      %v1890 = vpop.f32.mrb[0].mxu0
      %v1891 = vadd.f32 0.0, %v1890
      %v1892 = vpop.f32.mrb[0].mxu0
      %1893 = vmatprep.mubr.f32.mxu0 0.0
      %1894 = vmatmul.mubr.f32.gmra.mrb[0].mxu0 %v1818
      %v1895 = vpop.f32.mrb[0].mxu0
      %v1896 = vadd.f32 0.0, %v1895
      %v1897 = vpop.f32.mrb[0].mxu0
      %1898 = vdwg.mxu0
      %v1899 = vmul.f32 %v1891, 0.5
      %v1900 = vmul.f32 %v1896, 0.5
      %v1901 = vsel %vm371, %v1899, -inf
      %1902 = vmax.xlane.f32.xlu0 %v1901
      %v1903 = vpop.xlane.xlu0 %1902
      %v1904 = vsel %vm375, %v1900, -inf
      %1905 = vmax.xlane.f32.xlu0 %v1904
      %v1906 = vpop.xlane.xlu0 %1905
      %v1907 = vsub.f32 %v1899, %v1903
      %v1908 = vsub.f32 %v1900, %v1906
      %v1909 = vmul.f32 %v1907, 1.442695
      %v1910 = vpow.pop %v1909
      %v1911 = vmul.f32 %v1908, 1.442695
      %v1912 = vpow.pop %v1911
      %v1913 = vsel %vm371, %v1910, 0.0
      %1914 = vadd.xlane.f32.xlu0 %v1913
      %v1915 = vpop.xlane.xlu0 %1914
      %v1916 = vsel %vm375, %v1912, 0.0
      %1917 = vadd.xlane.f32.xlu0 %v1916
      %v1918 = vpop.xlane.xlu0 %1917
      %v1919 = vrcp.pop %v1915
      %v1920 = vrcp.pop %v1918
      %v1921 = vmul.f32 %v1910, %v1919
      %v1922 = vmul.f32 %v1912, %v1920
      %1923 = vrot.lane.b32.xlu0 %v273, 40
      %v1924 = vpop.permute.xlu0 %1923
      %1925 = vrot.lane.b32.xlu0 %v274, 40
      %v1926 = vpop.permute.xlu0 %1925
      %v1929 = vsel %vm371, %v1921, 0
      %v1932 = vsel %vm371, %v1922, 0
      %v1934 = vsel %vm406, %v1926, 0
      %1936 = vmatprep.subr.mxu0 0.0
      %1937 = vmatpush1.msra.mxu0 %v1924
      %1938 = vmatprep.subr.mxu0 0.0
      %1939 = vmatpush1.msra.mxu0 %v1934
      %1940 = vmatprep.subr.mxu0 0.0
      %1941 = vmatpush1.msra.mxu0 0.0
      %1942 = vmatprep.subr.mxu0 0.0
      %1943 = vmatpush1.msra.mxu0 0.0
      %1944 = vmatprep.subr.mxu0 0.0
      %1945 = vmatpush1.msra.mxu0 0.0
      %1946 = vmatprep.subr.mxu0 0.0
      %1947 = vmatpush1.msra.mxu0 0.0
      %1948 = vmatprep.subr.mxu0 0.0
      %1949 = vmatpush1.msra.mxu0 0.0
      %1950 = vmatprep.subr.mxu0 0.0
      %1951 = vmatpush1.msra.mxu0 0.0
      %1952 = vmatprep.subr.mxu0 0.0
      %1953 = vmatpush1.msra.mxu0 0.0
      %1954 = vmatprep.subr.mxu0 0.0
      %1955 = vmatpush1.msra.mxu0 0.0
      %1956 = vmatprep.subr.mxu0 0.0
      %1957 = vmatpush1.msra.mxu0 0.0
      %1958 = vmatprep.subr.mxu0 0.0
      %1959 = vmatpush1.msra.mxu0 0.0
      %1960 = vmatprep.subr.mxu0 0.0
      %1961 = vmatpush1.msra.mxu0 0.0
      %1962 = vmatprep.subr.mxu0 0.0
      %1963 = vmatpush1.msra.mxu0 0.0
      %1964 = vmatprep.subr.mxu0 0.0
      %1965 = vmatpush1.msra.mxu0 0.0
      %1966 = vmatprep.subr.mxu0 0.0
      %1967 = vmatpush1.msra.mxu0 0.0
      %1968 = vmatprep.subr.mxu0 0.0
      %1969 = vmatpush1.msra.mxu0 0.0
      %1970 = vmatprep.subr.mxu0 0.0
      %1971 = vmatpush1.msra.mxu0 0.0
      %1972 = vmatprep.subr.mxu0 0.0
      %1973 = vmatpush1.msra.mxu0 0.0
      %1974 = vmatprep.subr.mxu0 0.0
      %1975 = vmatpush1.msra.mxu0 0.0
      %1976 = vmatprep.subr.mxu0 0.0
      %1977 = vmatpush1.msra.mxu0 0.0
      %1978 = vmatprep.subr.mxu0 0.0
      %1979 = vmatpush1.msra.mxu0 0.0
      %1980 = vmatprep.subr.mxu0 0.0
      %1981 = vmatpush1.msra.mxu0 0.0
      %1982 = vmatprep.subr.mxu0 0.0
      %1983 = vmatpush1.msra.mxu0 0.0
      %1984 = vmatprep.subr.mxu0 0.0
      %1985 = vmatpush1.msra.mxu0 0.0
      %1986 = vmatprep.subr.mxu0 0.0
      %1987 = vmatpush1.msra.mxu0 0.0
      %1988 = vmatprep.subr.mxu0 0.0
      %1989 = vmatpush1.msra.mxu0 0.0
      %1990 = vmatprep.subr.mxu0 0.0
      %1991 = vmatpush1.msra.mxu0 0.0
      %1992 = vmatprep.subr.mxu0 0.0
      %1993 = vmatpush1.msra.mxu0 0.0
      %1994 = vmatprep.subr.mxu0 0.0
      %1995 = vmatpush1.msra.mxu0 0.0
      %1996 = vmatprep.subr.mxu0 0.0
      %1997 = vmatpush1.msra.mxu0 0.0
      %1998 = vmatprep.subr.mxu0 0.0
      %1999 = vmatpush1.msra.mxu0 0.0
      %2000 = vmatprep.mubr.f32.mxu0 0.0
      %2001 = vmatmul.mubr.f32.gmra.mrb[0].mxu0 %v1929
      %v2002 = vpop.f32.mrb[0].mxu0
      %v2003 = vadd.f32 0.0, %v2002
      %v2004 = vpop.f32.mrb[0].mxu0
      %2005 = vmatprep.mubr.f32.mxu0 0.0
      %2006 = vmatmul.mubr.f32.gmra.mrb[0].mxu0 %v1932
      %v2007 = vpop.f32.mrb[0].mxu0
      %v2008 = vadd.f32 0.0, %v2007
      %v2009 = vpop.f32.mrb[0].mxu0
      %2010 = vdwg.mxu0
      %v2011 = vpack.c.bf16 %v2008, %v2003
      %v2013 = vsel %vm285, %v2011, 0
      %v2016 = vsel %vm696, %v278, 0
      %2018 = vmatprep.subr.bf16.mxu0 0
      %2019 = vmatpush1.bf16.msra.mxu0 %v2016
      %2020 = vmatprep.subr.bf16.mxu0 0
      %2021 = vmatpush1.bf16.msra.mxu0 0
      %2022 = vmatprep.subr.bf16.mxu0 0
      %2023 = vmatpush1.bf16.msra.mxu0 0
      %2024 = vmatprep.subr.bf16.mxu0 0
      %2025 = vmatpush1.bf16.msra.mxu0 0
      %2026 = vmatprep.subr.bf16.mxu0 0
      %2027 = vmatpush1.bf16.msra.mxu0 0
      %2028 = vmatprep.subr.bf16.mxu0 0
      %2029 = vmatpush1.bf16.msra.mxu0 0
      %2030 = vmatprep.subr.bf16.mxu0 0
      %2031 = vmatpush1.bf16.msra.mxu0 0
      %2032 = vmatprep.subr.bf16.mxu0 0
      %2033 = vmatpush1.bf16.msra.mxu0 0
      %2034 = vmatprep.subr.bf16.mxu0 0
      %2035 = vmatpush1.bf16.msra.mxu0 0
      %2036 = vmatprep.subr.bf16.mxu0 0
      %2037 = vmatpush1.bf16.msra.mxu0 0
      %2038 = vmatprep.subr.bf16.mxu0 0
      %2039 = vmatpush1.bf16.msra.mxu0 0
      %2040 = vmatprep.subr.bf16.mxu0 0
      %2041 = vmatpush1.bf16.msra.mxu0 0
      %2042 = vmatprep.subr.bf16.mxu0 0
      %2043 = vmatpush1.bf16.msra.mxu0 0
      %2044 = vmatprep.subr.bf16.mxu0 0
      %2045 = vmatpush1.bf16.msra.mxu0 0
      %2046 = vmatprep.subr.bf16.mxu0 0
      %2047 = vmatpush1.bf16.msra.mxu0 0
      %2048 = vmatprep.subr.bf16.mxu0 0
      %2049 = vmatpush1.bf16.msra.mxu0 0
      %2050 = vmatprep.mubr.bf16.mxu0 0
      %2051 = vmatmul.mubr.bf16.gmra.mrb[0].mxu0 %v2013
      %v2052 = vpop.f32.mrb[0].mxu0
      %v2053 = vadd.f32 0.0, %v2052
      %v2054 = vpop.f32.mrb[0].mxu0
      %v2055 = vpop.f32.mrb[0].mxu0
      %v2056 = vadd.f32 0.0, %v2055
      %v2057 = vpop.f32.mrb[0].mxu0
      %2058 = vdwg.mxu0
      %v2059 = vadd.f32 %v1806, %v2053
      %v2060 = vadd.f32 %v1807, %v2056
      %2061 = vrot.lane.b32.xlu0 %v273, 100
      %v2062 = vpop.permute.xlu0 %2061
      %2063 = vrot.lane.b32.xlu0 %v274, 100
      %v2064 = vpop.permute.xlu0 %2063
      %2065 = vrot.lane.b32.xlu0 %v273, 68
      %v2066 = vpop.permute.xlu0 %2065
      %2067 = vrot.lane.b32.xlu0 %v274, 68
      %v2068 = vpop.permute.xlu0 %2067
      %v2069 = vsel %vm285, %v2062, 0
      %v2071 = vsel %vm285, %v2064, 0
      %v2073 = vsel %vm285, %v2066, 0
      %v2075 = vsel %vm285, %v2068, 0
      %2077 = vmatprep.subr.mxu0 0.0
      %2078 = vmatpush1.xpose.msra.mxu0 %v2073
      %2079 = vmatprep.subr.mxu0 0.0
      %2080 = vmatpush1.xpose.msra.mxu0 %v2075
      %2081 = vmatprep.subr.mxu0 0.0
      %2082 = vmatpush1.xpose.msra.mxu0 0.0
      %2083 = vmatprep.subr.mxu0 0.0
      %2084 = vmatpush1.xpose.msra.mxu0 0.0
      %2085 = vmatprep.subr.mxu0 0.0
      %2086 = vmatpush1.xpose.msra.mxu0 0.0
      %2087 = vmatprep.subr.mxu0 0.0
      %2088 = vmatpush1.xpose.msra.mxu0 0.0
      %2089 = vmatprep.subr.mxu0 0.0
      %2090 = vmatpush1.xpose.msra.mxu0 0.0
      %2091 = vmatprep.subr.mxu0 0.0
      %2092 = vmatpush1.xpose.msra.mxu0 0.0
      %2093 = vmatprep.subr.mxu0 0.0
      %2094 = vmatpush1.xpose.msra.mxu0 0.0
      %2095 = vmatprep.subr.mxu0 0.0
      %2096 = vmatpush1.xpose.msra.mxu0 0.0
      %2097 = vmatprep.subr.mxu0 0.0
      %2098 = vmatpush1.xpose.msra.mxu0 0.0
      %2099 = vmatprep.subr.mxu0 0.0
      %2100 = vmatpush1.xpose.msra.mxu0 0.0
      %2101 = vmatprep.subr.mxu0 0.0
      %2102 = vmatpush1.xpose.msra.mxu0 0.0
      %2103 = vmatprep.subr.mxu0 0.0
      %2104 = vmatpush1.xpose.msra.mxu0 0.0
      %2105 = vmatprep.subr.mxu0 0.0
      %2106 = vmatpush1.xpose.msra.mxu0 0.0
      %2107 = vmatprep.subr.mxu0 0.0
      %2108 = vmatpush1.xpose.msra.mxu0 0.0
      %2109 = vmatprep.subr.mxu0 0.0
      %2110 = vmatpush1.xpose.msra.mxu0 0.0
      %2111 = vmatprep.subr.mxu0 0.0
      %2112 = vmatpush1.xpose.msra.mxu0 0.0
      %2113 = vmatprep.subr.mxu0 0.0
      %2114 = vmatpush1.xpose.msra.mxu0 0.0
      %2115 = vmatprep.subr.mxu0 0.0
      %2116 = vmatpush1.xpose.msra.mxu0 0.0
      %2117 = vmatprep.subr.mxu0 0.0
      %2118 = vmatpush1.xpose.msra.mxu0 0.0
      %2119 = vmatprep.subr.mxu0 0.0
      %2120 = vmatpush1.xpose.msra.mxu0 0.0
      %2121 = vmatprep.subr.mxu0 0.0
      %2122 = vmatpush1.xpose.msra.mxu0 0.0
      %2123 = vmatprep.subr.mxu0 0.0
      %2124 = vmatpush1.xpose.msra.mxu0 0.0
      %2125 = vmatprep.subr.mxu0 0.0
      %2126 = vmatpush1.xpose.msra.mxu0 0.0
      %2127 = vmatprep.subr.mxu0 0.0
      %2128 = vmatpush1.xpose.msra.mxu0 0.0
      %2129 = vmatprep.subr.mxu0 0.0
      %2130 = vmatpush1.xpose.msra.mxu0 0.0
      %2131 = vmatprep.subr.mxu0 0.0
      %2132 = vmatpush1.xpose.msra.mxu0 0.0
      %2133 = vmatprep.subr.mxu0 0.0
      %2134 = vmatpush1.xpose.msra.mxu0 0.0
      %2135 = vmatprep.subr.mxu0 0.0
      %2136 = vmatpush1.xpose.msra.mxu0 0.0
      %2137 = vmatprep.subr.mxu0 0.0
      %2138 = vmatpush1.xpose.msra.mxu0 0.0
      %2139 = vmatprep.subr.mxu0 0.0
      %2140 = vmatpush1.xpose.msra.mxu0 0.0
      %2141 = vmatprep.mubr.f32.mxu0 0.0
      %2142 = vmatmul.mubr.f32.gmra.mrb[0].mxu0 %v2069
      %v2143 = vpop.f32.mrb[0].mxu0
      %v2144 = vadd.f32 0.0, %v2143
      %v2145 = vpop.f32.mrb[0].mxu0
      %2146 = vmatprep.mubr.f32.mxu0 0.0
      %2147 = vmatmul.mubr.f32.gmra.mrb[0].mxu0 %v2071
      %v2148 = vpop.f32.mrb[0].mxu0
      %v2149 = vadd.f32 0.0, %v2148
      %v2150 = vpop.f32.mrb[0].mxu0
      %2151 = vdwg.mxu0
      %v2152 = vmul.f32 %v2144, 0.5
      %v2153 = vmul.f32 %v2149, 0.5
      %v2154 = vsel %vm371, %v2152, -inf
      %2155 = vmax.xlane.f32.xlu0 %v2154
      %v2156 = vpop.xlane.xlu0 %2155
      %v2157 = vsel %vm375, %v2153, -inf
      %2158 = vmax.xlane.f32.xlu0 %v2157
      %v2159 = vpop.xlane.xlu0 %2158
      %v2160 = vsub.f32 %v2152, %v2156
      %v2161 = vsub.f32 %v2153, %v2159
      %v2162 = vmul.f32 %v2160, 1.442695
      %v2163 = vpow.pop %v2162
      %v2164 = vmul.f32 %v2161, 1.442695
      %v2165 = vpow.pop %v2164
      %v2166 = vsel %vm371, %v2163, 0.0
      %2167 = vadd.xlane.f32.xlu0 %v2166
      %v2168 = vpop.xlane.xlu0 %2167
      %v2169 = vsel %vm375, %v2165, 0.0
      %2170 = vadd.xlane.f32.xlu0 %v2169
      %v2171 = vpop.xlane.xlu0 %2170
      %v2172 = vrcp.pop %v2168
      %v2173 = vrcp.pop %v2171
      %v2174 = vmul.f32 %v2163, %v2172
      %v2175 = vmul.f32 %v2165, %v2173
      %2176 = vrot.lane.b32.xlu0 %v273, 36
      %v2177 = vpop.permute.xlu0 %2176
      %2178 = vrot.lane.b32.xlu0 %v274, 36
      %v2179 = vpop.permute.xlu0 %2178
      %v2182 = vsel %vm371, %v2174, 0
      %v2185 = vsel %vm371, %v2175, 0
      %v2187 = vsel %vm406, %v2179, 0
      %2189 = vmatprep.subr.mxu0 0.0
      %2190 = vmatpush1.msra.mxu0 %v2177
      %2191 = vmatprep.subr.mxu0 0.0
      %2192 = vmatpush1.msra.mxu0 %v2187
      %2193 = vmatprep.subr.mxu0 0.0
      %2194 = vmatpush1.msra.mxu0 0.0
      %2195 = vmatprep.subr.mxu0 0.0
      %2196 = vmatpush1.msra.mxu0 0.0
      %2197 = vmatprep.subr.mxu0 0.0
      %2198 = vmatpush1.msra.mxu0 0.0
      %2199 = vmatprep.subr.mxu0 0.0
      %2200 = vmatpush1.msra.mxu0 0.0
      %2201 = vmatprep.subr.mxu0 0.0
      %2202 = vmatpush1.msra.mxu0 0.0
      %2203 = vmatprep.subr.mxu0 0.0
      %2204 = vmatpush1.msra.mxu0 0.0
      %2205 = vmatprep.subr.mxu0 0.0
      %2206 = vmatpush1.msra.mxu0 0.0
      %2207 = vmatprep.subr.mxu0 0.0
      %2208 = vmatpush1.msra.mxu0 0.0
      %2209 = vmatprep.subr.mxu0 0.0
      %2210 = vmatpush1.msra.mxu0 0.0
      %2211 = vmatprep.subr.mxu0 0.0
      %2212 = vmatpush1.msra.mxu0 0.0
      %2213 = vmatprep.subr.mxu0 0.0
      %2214 = vmatpush1.msra.mxu0 0.0
      %2215 = vmatprep.subr.mxu0 0.0
      %2216 = vmatpush1.msra.mxu0 0.0
      %2217 = vmatprep.subr.mxu0 0.0
      %2218 = vmatpush1.msra.mxu0 0.0
      %2219 = vmatprep.subr.mxu0 0.0
      %2220 = vmatpush1.msra.mxu0 0.0
      %2221 = vmatprep.subr.mxu0 0.0
      %2222 = vmatpush1.msra.mxu0 0.0
      %2223 = vmatprep.subr.mxu0 0.0
      %2224 = vmatpush1.msra.mxu0 0.0
      %2225 = vmatprep.subr.mxu0 0.0
      %2226 = vmatpush1.msra.mxu0 0.0
      %2227 = vmatprep.subr.mxu0 0.0
      %2228 = vmatpush1.msra.mxu0 0.0
      %2229 = vmatprep.subr.mxu0 0.0
      %2230 = vmatpush1.msra.mxu0 0.0
      %2231 = vmatprep.subr.mxu0 0.0
      %2232 = vmatpush1.msra.mxu0 0.0
      %2233 = vmatprep.subr.mxu0 0.0
      %2234 = vmatpush1.msra.mxu0 0.0
      %2235 = vmatprep.subr.mxu0 0.0
      %2236 = vmatpush1.msra.mxu0 0.0
      %2237 = vmatprep.subr.mxu0 0.0
      %2238 = vmatpush1.msra.mxu0 0.0
      %2239 = vmatprep.subr.mxu0 0.0
      %2240 = vmatpush1.msra.mxu0 0.0
      %2241 = vmatprep.subr.mxu0 0.0
      %2242 = vmatpush1.msra.mxu0 0.0
      %2243 = vmatprep.subr.mxu0 0.0
      %2244 = vmatpush1.msra.mxu0 0.0
      %2245 = vmatprep.subr.mxu0 0.0
      %2246 = vmatpush1.msra.mxu0 0.0
      %2247 = vmatprep.subr.mxu0 0.0
      %2248 = vmatpush1.msra.mxu0 0.0
      %2249 = vmatprep.subr.mxu0 0.0
      %2250 = vmatpush1.msra.mxu0 0.0
      %2251 = vmatprep.subr.mxu0 0.0
      %2252 = vmatpush1.msra.mxu0 0.0
      %2253 = vmatprep.mubr.f32.mxu0 0.0
      %2254 = vmatmul.mubr.f32.gmra.mrb[0].mxu0 %v2182
      %v2255 = vpop.f32.mrb[0].mxu0
      %v2256 = vadd.f32 0.0, %v2255
      %v2257 = vpop.f32.mrb[0].mxu0
      %2258 = vmatprep.mubr.f32.mxu0 0.0
      %2259 = vmatmul.mubr.f32.gmra.mrb[0].mxu0 %v2185
      %v2260 = vpop.f32.mrb[0].mxu0
      %v2261 = vadd.f32 0.0, %v2260
      %v2262 = vpop.f32.mrb[0].mxu0
      %2263 = vdwg.mxu0
      %v2264 = vpack.c.bf16 %v2261, %v2256
      %v2266 = vunpack.c.l.b16 %v278
      %v2267 = vpack.c.b16 %v2266, %v2266
      %v2268 = vrot.slane %v2267, 2
      %v2270 = vsel %vm285, %v2264, 0
      %v2273 = vsel %vm696, %v2268, 0
      %2275 = vmatprep.subr.bf16.mxu0 0
      %2276 = vmatpush1.bf16.msra.mxu0 %v2273
      %2277 = vmatprep.subr.bf16.mxu0 0
      %2278 = vmatpush1.bf16.msra.mxu0 0
      %2279 = vmatprep.subr.bf16.mxu0 0
      %2280 = vmatpush1.bf16.msra.mxu0 0
      %2281 = vmatprep.subr.bf16.mxu0 0
      %2282 = vmatpush1.bf16.msra.mxu0 0
      %2283 = vmatprep.subr.bf16.mxu0 0
      %2284 = vmatpush1.bf16.msra.mxu0 0
      %2285 = vmatprep.subr.bf16.mxu0 0
      %2286 = vmatpush1.bf16.msra.mxu0 0
      %2287 = vmatprep.subr.bf16.mxu0 0
      %2288 = vmatpush1.bf16.msra.mxu0 0
      %2289 = vmatprep.subr.bf16.mxu0 0
      %2290 = vmatpush1.bf16.msra.mxu0 0
      %2291 = vmatprep.subr.bf16.mxu0 0
      %2292 = vmatpush1.bf16.msra.mxu0 0
      %2293 = vmatprep.subr.bf16.mxu0 0
      %2294 = vmatpush1.bf16.msra.mxu0 0
      %2295 = vmatprep.subr.bf16.mxu0 0
      %2296 = vmatpush1.bf16.msra.mxu0 0
      %2297 = vmatprep.subr.bf16.mxu0 0
      %2298 = vmatpush1.bf16.msra.mxu0 0
      %2299 = vmatprep.subr.bf16.mxu0 0
      %2300 = vmatpush1.bf16.msra.mxu0 0
      %2301 = vmatprep.subr.bf16.mxu0 0
      %2302 = vmatpush1.bf16.msra.mxu0 0
      %2303 = vmatprep.subr.bf16.mxu0 0
      %2304 = vmatpush1.bf16.msra.mxu0 0
      %2305 = vmatprep.subr.bf16.mxu0 0
      %2306 = vmatpush1.bf16.msra.mxu0 0
      %2307 = vmatprep.mubr.bf16.mxu0 0
      %2308 = vmatmul.mubr.bf16.gmra.mrb[0].mxu0 %v2270
      %v2309 = vpop.f32.mrb[0].mxu0
      %v2310 = vadd.f32 0.0, %v2309
      %v2311 = vpop.f32.mrb[0].mxu0
      %v2312 = vpop.f32.mrb[0].mxu0
      %v2313 = vadd.f32 0.0, %v2312
      %v2314 = vpop.f32.mrb[0].mxu0
      %2315 = vdwg.mxu0
      %v2316 = vadd.f32 %v2059, %v2310
      %v2317 = vadd.f32 %v2060, %v2313
      %v2318 = vld [vmem:[%s266] sm:$0xff]
      %v2319 = vld [vmem:[%s266 + $0x8] sm:$0x7f]
      %v2320 = vadd.f32 %v2318, %v2316
      %v2321 = vadd.f32 %v2319, %v2317
      %v2322 = vld [vmem:[%s3] sm:$0x1]
      %v2324 = vlaneseq
      %v2325 = vshrl.u32 %v2324, 7
      %v2326 = vsub.s32 0, %v2325
      %v2327 = vrot.slane %v2322, %v2326
      %v2329 = vadd.f32 %v2320, %v2327
      %v2330 = vadd.f32 %v2321, %v2327
      %vm2331 = vcmask 261120
      %v2332 = vsel %vm2331, %v2329, 0.0
      %2333 = vadd.xlane.f32.xlu0 %v2332
      %v2334 = vpop.xlane.xlu0 %2333
      %vm2335 = vcmask 260096
      %v2336 = vsel %vm2335, %v2330, 0.0
      %2337 = vadd.xlane.f32.xlu0 %v2336
      %v2338 = vpop.xlane.xlu0 %2337
      %v2339 = vrcp.pop 32.0
      %v2340 = vmul.f32 %v2334, %v2339
      %v2341 = vmul.f32 %v2338, %v2339
      %v2342 = vsub.f32 %v2329, %v2340
      %v2343 = vsub.f32 %v2330, %v2341
      %v2344 = vmul.f32 %v2342, %v2342
      %v2345 = vmul.f32 %v2343, %v2343
      %v2346 = vsel %vm2331, %v2344, 0.0
      %2347 = vadd.xlane.f32.xlu0 %v2346
      %v2348 = vpop.xlane.xlu0 %2347
      %v2349 = vsel %vm2335, %v2345, 0.0
      %2350 = vadd.xlane.f32.xlu0 %v2349
      %v2351 = vpop.xlane.xlu0 %2350
      %v2352 = vmul.f32 %v2348, %v2339
      %v2353 = vmul.f32 %v2351, %v2339
      %v2354 = vadd.f32 %v2352, 1e-05
      %v2355 = vadd.f32 %v2353, 1e-05
      %v2356 = vrsqrt.pop %v2354
      %v2357 = vrsqrt.pop %v2355
      %v2358 = vmul.f32 %v2342, %v2356
      %v2359 = vmul.f32 %v2343, %v2357
      %v2360 = vld [vmem:[%s4] sm:$0x1]
      %v2362 = vlaneseq
      %v2363 = vshrl.u32 %v2362, 7
      %v2364 = vsub.s32 0, %v2363
      %v2365 = vrot.slane %v2360, %v2364
      %v2367 = vmul.f32 %v2358, %v2365
      %v2368 = vmul.f32 %v2359, %v2365
      %v2369 = vld [vmem:[%s5] sm:$0x1]
      %v2371 = vlaneseq
      %v2372 = vshrl.u32 %v2371, 7
      %v2373 = vsub.s32 0, %v2372
      %v2374 = vrot.slane %v2369, %v2373
      %v2376 = vadd.f32 %v2367, %v2374
      %v2377 = vadd.f32 %v2368, %v2374
      %2378 = vst.msk [vmem:[%s271] sm:$0xff] %vm2331, %v2376
      %2379 = vst.msk [vmem:[%s271 + $0x8] sm:$0x7f] %vm2335, %v2377
      %p2380 = scmp.lt.s32.totalorder %s17, 1
      %s2381 = scalar_select %p2380, %s17, 1
      %s2382 = smul.addr %s2381, 2
      %s2383 = smul.addr %s2382, 8
      %s2384 = scalar_lea.vmem %s6, %s2383
      // Predicated region
      $region45: #{ntlbg_llm_forward.15} parent=43 // pred_check
        %p2385 = pneg %p171
      $region46: #{ntlbg_llm_forward.15} parent=43 // pred_check_branch
        %2387 = sbr.rel (%p2385) target = $region48
      $region47: #{ntlbg_llm_forward.15} parent=43 // pred_region
        _
      $region48: #{ntlbg_llm_forward.15} parent=43 // pred_fallthru
        _
    $region44: #{ntlbg_llm_forward.15} parent=5 // pred_fallthru
      _
    %p2388 = scmp.le.s32.totalorder 2, %s12
    // Predicated region
    $region49: #{ntlbg_llm_forward.15} parent=5 // pred_check
      %p2389 = pneg %p2388
    $region50: #{ntlbg_llm_forward.15} parent=5 // pred_check_branch
      %2391 = sbr.rel (%p2389) target = $region52
    $region51: #{ntlbg_llm_forward.15} parent=5 // pred_region
      %s2392 = ssub.s32 %s12, 2
      // Predicated region
      $region53: #{ntlbg_llm_forward.15} parent=51 // pred_check
        %p2393 = pneg %p177
      $region54: #{ntlbg_llm_forward.15} parent=51 // pred_check_branch
        %2395 = sbr.rel (%p2393) target = $region56
      $region55: #{ntlbg_llm_forward.15} parent=51 // pred_region
        %p2396 = scmp.lt.s32.totalorder %s18, 1
        %s2397 = scalar_select %p2396, %s18, 1
        %s2398 = smul.addr %s2397, 2
        %s2399 = smul.addr %s2398, 8
        %s2400 = scalar_lea.vmem %s6, %s2399
      $region56: #{ntlbg_llm_forward.15} parent=51 // pred_fallthru
        _
    $region52: #{ntlbg_llm_forward.15} parent=5 // pred_fallthru
      _
  $region6: #{ntlbg_llm_forward.15} parent=0 // loop_footer
    %s16 = sadd.s32 1, %s12
  $region7: #{ntlbg_llm_forward.15} parent=0 // loop_footer_branch
    %11 = sbr.rel target = $region3
  $region8: #{ntlbg_llm_forward.15} parent=0 // loop_exit
    _

</llo_original>
